<compile_context>
chip_gen: v7x
topology: tpu7x:2x2x1
jax: 0.10.0
libtpu: 0.0.40
codegen_flags: <defaults>
</compile_context>

<pallas_src>
import math

import jax
import jax.numpy as jnp
from jax.experimental import pallas as pl
from jax.experimental.pallas import tpu as pltpu

# ---------------- synthetic configuration ----------------
B, T = 2, 8
INPUT_EMBED_DIM = 128          # == EMBED_DIM -> project_in_dim is None
EMBED_DIM = 128
NUM_HEADS = 4
HEAD_DIM = EMBED_DIM // NUM_HEADS
FFN_DIM = 256
NUM_LAYERS = 2
OUTPUT_DIM = 64                # cfg.output_dim > 0 -> project_out_dim
O_PAD = 128                    # lane-dense padded output width (>= OUTPUT_DIM)
PADDING_IDX = 1
MAX_SOURCE_POSITIONS = 64
EMBED_SCALE = math.sqrt(EMBED_DIM)   # cfg.no_scale_embedding = False
LN_EPS = 1e-5
NEG_INF = -1e30                # stand-in for masked_fill(-inf); exp() underflows to 0

# TODO(synk): nn.Dropout / LayerDropModuleList / quant_noise are disabled
# (p=0 / inference), so they are identities and not emitted as kernels.


# ---------------- shared math helpers (jnp; usable in- and out-of-kernel) ----
def _layer_norm(x, g, b):
    mu = jnp.mean(x, axis=-1, keepdims=True)
    xc = x - mu
    var = jnp.mean(xc * xc, axis=-1, keepdims=True)
    return xc * jax.lax.rsqrt(var + LN_EPS) * g + b


# ---------------- fused Pallas kernel (no grid: whole forward, one invocation) --
def fused_encoder_kernel(
        tok_ref,      # (B*T, E)   scaled-later token embeddings
        pos_ref,      # (B*T, E)   learned positional embeddings (gathered in wrapper)
        keep_ref,     # (B*T, 1)   1.0 at valid positions, 0.0 at pads
        bias_ref,     # (B, T)     additive key-padding bias (0 or NEG_INF)
        shared_ref,   # (4, E)     rows: emb_ln_g, emb_ln_b, final_ln_g, final_ln_b
        wqkv_ref,     # (L, E, 3E) q-scaling folded in
        bqkv_ref,     # (L, 1, 3E)
        wo_ref,       # (L, E, E)
        w1_ref,       # (L, E, F)
        b1_ref,       # (L, 1, F)
        w2_ref,       # (L, F, E)
        small_ref,    # (L, 8, E)  rows: ln1g, ln1b, bo, ln2g, ln2b, b2, pad, pad
        wout_ref,     # (E, O_PAD) zero-padded project_out weight
        o_ref):       # (B*T, O_PAD)
    E, H, Dh, F = EMBED_DIM, NUM_HEADS, HEAD_DIM, FFN_DIM

    # ---- embedding stage: scale + pos + LN + zero padded positions ----
    x = EMBED_SCALE * tok_ref[...] + pos_ref[...]
    x = _layer_norm(x, shared_ref[0:1, :], shared_ref[1:2, :])
    x = x * keep_ref[...]                                        # (B*T, E)

    # hoisted, loop-invariant key-padding bias rows (one (1, T) row per batch elem)
    bias = bias_ref[...]                                         # (B, T)
    bias_rows = [bias[b:b + 1, :] for b in range(B)]

    def layer_body(l, x):
        wqkv = wqkv_ref[l]            # (E, 3E)
        bqkv = bqkv_ref[l]            # (1, 3E)
        wo = wo_ref[l]                # (E, E)
        w1 = w1_ref[l]                # (E, F)
        b1 = b1_ref[l]                # (1, F)
        w2 = w2_ref[l]                # (F, E)
        sm = small_ref[l]             # (8, E)
        ln1g, ln1b = sm[0:1, :], sm[1:2, :]
        bo = sm[2:3, :]
        ln2g, ln2b = sm[3:4, :], sm[4:5, :]
        b2 = sm[5:6, :]

        # ---- self attention (normalize_before); 1/sqrt(Dh) folded into wq/bq ----
        xn = _layer_norm(x, ln1g, ln1b)
        # one lane-dense projection: (B*T,128) @ (128,384)
        qkv = jnp.dot(xn, wqkv, preferred_element_type=jnp.float32) + bqkv

        # tiny per-(batch, head) attention core: T=8, Dh=32 (2-D dots only)
        batch_rows = []
        for b in range(B):
            r0 = b * T
            head_cols = []
            for h in range(H):
                c = h * Dh
                qbh = qkv[r0:r0 + T, c:c + Dh]                       # (T, Dh)
                kbh = qkv[r0:r0 + T, E + c:E + c + Dh]               # (T, Dh)
                vbh = qkv[r0:r0 + T, 2 * E + c:2 * E + c + Dh]       # (T, Dh)
                s = jnp.dot(qbh, kbh.T,
                            preferred_element_type=jnp.float32)      # (T, T)
                s = s + bias_rows[b]                                 # mask padded keys
                m = jnp.max(s, axis=-1, keepdims=True)
                e = jnp.exp(s - m)
                p = e * pl.reciprocal(jnp.sum(e, axis=-1, keepdims=True),
                                      approx=True)
                head_cols.append(jnp.dot(p, vbh,
                                         preferred_element_type=jnp.float32))
            batch_rows.append(jnp.concatenate(head_cols, axis=-1))   # (T, E)
        a = jnp.concatenate(batch_rows, axis=0)                      # (B*T, E) lane-dense

        # fused output projection: (B*T,128) @ (128,128), no cross-head VPU sum
        x = x + jnp.dot(a, wo, preferred_element_type=jnp.float32) + bo

        # ---- feed forward (normalize_before) ----
        xn2 = _layer_norm(x, ln2g, ln2b)
        h1 = jnp.maximum(
            jnp.dot(xn2, w1, preferred_element_type=jnp.float32) + b1, 0.0)
        x = x + jnp.dot(h1, w2, preferred_element_type=jnp.float32) + b2
        return x

    x = jax.lax.fori_loop(0, NUM_LAYERS, layer_body, x, unroll=True)

    # ---- final layer_norm + project_out_dim (lane-dense, zero-padded to 128) ----
    xf = _layer_norm(x, shared_ref[2:3, :], shared_ref[3:4, :])
    o_ref[...] = jnp.dot(xf, wout_ref[...], preferred_element_type=jnp.float32)


# ---------------- cost hint for XLA's scheduler ----------------
def _cost_estimate():
    BT = B * T
    per_layer_flops = (
        2 * BT * EMBED_DIM * 3 * EMBED_DIM             # fused QKV projection
        + 2 * B * NUM_HEADS * T * T * HEAD_DIM * 2     # scores + attn @ V
        + 2 * BT * EMBED_DIM * EMBED_DIM               # attn output projection
        + 2 * BT * EMBED_DIM * FFN_DIM * 2)            # FFN
    flops = NUM_LAYERS * per_layer_flops + 2 * BT * EMBED_DIM * O_PAD
    transcendentals = NUM_LAYERS * B * NUM_HEADS * (T * T + T) + 4 * BT
    weight_bytes = 4 * (NUM_LAYERS * (EMBED_DIM * 3 * EMBED_DIM + 3 * EMBED_DIM
                                      + EMBED_DIM * EMBED_DIM
                                      + 2 * EMBED_DIM * FFN_DIM + FFN_DIM
                                      + 8 * EMBED_DIM)
                        + 4 * EMBED_DIM + EMBED_DIM * O_PAD)
    act_bytes = 4 * (BT * (2 * EMBED_DIM + 1 + O_PAD) + B * T)
    return pl.CostEstimate(flops=flops, transcendentals=transcendentals,
                           bytes_accessed=weight_bytes + act_bytes)


# ---------------- pallas_call wrapper (single invocation, everything in VMEM) ----
def encoder_core(tok, pos, keep, bias, pk):
    vmem = pltpu.MemorySpace.VMEM
    inputs = (tok, pos, keep, bias,
              pk["shared_ln"], pk["wqkv"], pk["bqkv"], pk["wo"],
              pk["w1"], pk["b1"], pk["w2"], pk["small"], pk["w_out_pad"])
    return pl.pallas_call(
        fused_encoder_kernel,
        out_shape=jax.ShapeDtypeStruct((B * T, O_PAD), jnp.float32),
        in_specs=[pl.BlockSpec(memory_space=vmem) for _ in inputs],
        out_specs=pl.BlockSpec(memory_space=vmem),
        cost_estimate=_cost_estimate(),
    )(*inputs)


# ---------------- parameters (deterministic synthetic init) ----------------
def init_model(key):
    keys = jax.random.split(key, 8 + NUM_LAYERS)

    def w(k, shape, fan_in):
        return jax.random.normal(k, shape, jnp.float32) / math.sqrt(fan_in)

    params = {}
    # fairseq LearnedPositionalEmbedding: num_embeddings = max_pos + pad_idx + 1,
    # padding_idx row zeroed.
    pos_table = w(keys[0], (MAX_SOURCE_POSITIONS + PADDING_IDX + 1, EMBED_DIM),
                  EMBED_DIM)
    params["pos_table"] = pos_table.at[PADDING_IDX].set(0.0)
    params["emb_ln_g"] = jnp.ones((1, EMBED_DIM), jnp.float32)
    params["emb_ln_b"] = jnp.zeros((1, EMBED_DIM), jnp.float32)
    params["final_ln_g"] = jnp.ones((1, EMBED_DIM), jnp.float32)
    params["final_ln_b"] = jnp.zeros((1, EMBED_DIM), jnp.float32)
    params["w_out"] = w(keys[1], (EMBED_DIM, OUTPUT_DIM), EMBED_DIM)

    layers = []
    for li in range(NUM_LAYERS):
        lk = jax.random.split(keys[8 + li], 6)
        layers.append(dict(
            wq=w(lk[0], (EMBED_DIM, EMBED_DIM), EMBED_DIM),
            bq=jnp.zeros((1, EMBED_DIM), jnp.float32),
            wk=w(lk[1], (EMBED_DIM, EMBED_DIM), EMBED_DIM),
            bk=jnp.zeros((1, EMBED_DIM), jnp.float32),
            wv=w(lk[2], (EMBED_DIM, EMBED_DIM), EMBED_DIM),
            bv=jnp.zeros((1, EMBED_DIM), jnp.float32),
            wo=w(lk[3], (EMBED_DIM, EMBED_DIM), EMBED_DIM),
            bo=jnp.zeros((1, EMBED_DIM), jnp.float32),
            ln1g=jnp.ones((1, EMBED_DIM), jnp.float32),
            ln1b=jnp.zeros((1, EMBED_DIM), jnp.float32),
            w1=w(lk[4], (EMBED_DIM, FFN_DIM), EMBED_DIM),
            b1=jnp.zeros((1, FFN_DIM), jnp.float32),
            w2=w(lk[5], (FFN_DIM, EMBED_DIM), FFN_DIM),
            b2=jnp.zeros((1, EMBED_DIM), jnp.float32),
            ln2g=jnp.ones((1, EMBED_DIM), jnp.float32),
            ln2b=jnp.zeros((1, EMBED_DIM), jnp.float32),
        ))
    params["layers"] = layers
    return params


def pack_params(params):
    """One-time repack of module params into the kernel layout (pure JAX glue).

    wqkv:   (L, E, 3E)  columns [q | k | v], per-head order h*Dh+d inside each
                        E block; 1/sqrt(Dh) folded into the q block.
    bqkv:   (L, 1, 3E)  same layout / scaling.
    wo:     (L, E, E)   rows indexed by the same h*Dh+d order.
    small:  (L, 8, E)   rows: ln1g, ln1b, bo, ln2g, ln2b, b2, pad, pad.
    shared: (4, E)      rows: emb_ln_g, emb_ln_b, final_ln_g, final_ln_b.
    w_out_pad: (E, O_PAD) project_out weight zero-padded to 128 lanes.
    """
    assert OUTPUT_DIM <= O_PAD
    E = EMBED_DIM
    scaling = HEAD_DIM ** -0.5

    def stack(name):
        return jnp.stack([lp[name] for lp in params["layers"]])

    wqkv = jnp.stack([
        jnp.concatenate([lp["wq"] * scaling, lp["wk"], lp["wv"]], axis=-1)
        for lp in params["layers"]])                               # (L, E, 3E)
    bqkv = jnp.stack([
        jnp.concatenate([lp["bq"] * scaling, lp["bk"], lp["bv"]], axis=-1)
        for lp in params["layers"]])                               # (L, 1, 3E)

    small = jnp.stack([
        jnp.concatenate([lp["ln1g"], lp["ln1b"], lp["bo"],
                         lp["ln2g"], lp["ln2b"], lp["b2"],
                         jnp.zeros((2, E), jnp.float32)], axis=0)
        for lp in params["layers"]])                               # (L, 8, E)

    shared_ln = jnp.concatenate(
        [params["emb_ln_g"], params["emb_ln_b"],
         params["final_ln_g"], params["final_ln_b"]], axis=0)      # (4, E)

    w_out_pad = jnp.zeros((E, O_PAD), jnp.float32).at[:, :OUTPUT_DIM].set(
        params["w_out"])

    return dict(
        pos_table=params["pos_table"],
        shared_ln=shared_ln,
        wqkv=wqkv, bqkv=bqkv, wo=stack("wo"),
        w1=stack("w1"), b1=stack("b1"), w2=stack("w2"),
        small=small,
        w_out_pad=w_out_pad,
    )


# ---------------- full encoder forward (Pallas, jit-safe) ----------------
@jax.jit
def encoder_forward_pallas(token_embeddings, encoder_mask, pk):
    mask_i = encoder_mask.astype(jnp.int32)
    mask_f = mask_i.astype(jnp.float32)
    pad_f = 1.0 - mask_f                                           # (B, T), 1 at pads

    # learned positional embedding lookup (glue; gather is not the hot path)
    positions = jnp.cumsum(mask_i, axis=1) * mask_i + PADDING_IDX
    pos_emb = pk["pos_table"][positions]                           # (B, T, E)

    # fold batch into the block: activation is (B*T, E)
    tok = token_embeddings.reshape(B * T, EMBED_DIM)
    pos = pos_emb.reshape(B * T, EMBED_DIM)
    keep = mask_f.reshape(B * T, 1)
    bias = pad_f * NEG_INF                                         # (B, T)

    out_flat = encoder_core(tok, pos, keep, bias, pk)              # (B*T, O_PAD)
    out = out_flat[:, :OUTPUT_DIM].reshape(B, T, OUTPUT_DIM)

    return {
        "encoder_out": out,                                        # (B, T, OUTPUT_DIM)
        "encoder_padding_mask": pad_f.astype(jnp.uint8),           # (B, T) uint8
        "encoder_embedding": EMBED_SCALE * token_embeddings,       # (B, T, E)
        "encoder_states": [],
        "fc_results": [],
        "mask": encoder_mask,
    }


# ---------------- pure-JAX reference (for verification) ----------------
def reference_forward(token_embeddings, encoder_mask, params):
    mask_i = encoder_mask.astype(jnp.int32)
    pad_f = (1 - mask_i).astype(jnp.float32)

    x = EMBED_SCALE * token_embeddings
    positions = jnp.cumsum(mask_i, axis=1) * mask_i + PADDING_IDX
    x = x + params["pos_table"][positions]
    x = _layer_norm(x, params["emb_ln_g"], params["emb_ln_b"])
    x = x * (1.0 - pad_f)[..., None]

    bias = (pad_f * NEG_INF)[:, None, None, :]                     # (B,1,1,Tk)
    scaling = HEAD_DIM ** -0.5
    for lp in params["layers"]:
        xn = _layer_norm(x, lp["ln1g"], lp["ln1b"])
        q = (xn @ lp["wq"] + lp["bq"]) * scaling
        k = xn @ lp["wk"] + lp["bk"]
        v = xn @ lp["wv"] + lp["bv"]
        qh = q.reshape(B, T, NUM_HEADS, HEAD_DIM)
        kh = k.reshape(B, T, NUM_HEADS, HEAD_DIM)
        vh = v.reshape(B, T, NUM_HEADS, HEAD_DIM)
        s = jnp.einsum("bthd,bshd->bhts", qh, kh) + bias
        p = jax.nn.softmax(s, axis=-1)
        a = jnp.einsum("bhts,bshd->bthd", p, vh).reshape(B, T, EMBED_DIM)
        x = x + (a @ lp["wo"] + lp["bo"])
        xn2 = _layer_norm(x, lp["ln2g"], lp["ln2b"])
        x = x + (jnp.maximum(xn2 @ lp["w1"] + lp["b1"], 0.0) @ lp["w2"] + lp["b2"])

    return _layer_norm(x, params["final_ln_g"], params["final_ln_b"]) @ params["w_out"]


# ---------------- main ----------------
if __name__ == "__main__":
    key = jax.random.PRNGKey(0)
    pkey, xkey = jax.random.split(key)
    params = init_model(pkey)
    packed = pack_params(params)

    token_embeddings = jax.random.normal(xkey, (B, T, INPUT_EMBED_DIM),
                                         jnp.float32)
    # batch 0 fully valid; batch 1 has 3 padded positions at the end
    encoder_mask = jnp.array([[1] * T,
                              [1] * (T - 3) + [0] * 3], dtype=jnp.bool_)

    out = encoder_forward_pallas(token_embeddings, encoder_mask, packed)
    enc = jax.block_until_ready(out["encoder_out"])

    ref = reference_forward(token_embeddings, encoder_mask, params)
    assert enc.shape == (B, T, OUTPUT_DIM)
    err = float(jnp.max(jnp.abs(enc - ref)))
    # All MXU/VPU math is f32; the only approximate op is the EUP softmax
    # reciprocal (pl.reciprocal(approx=True)), so the error sits well below 5e-3.
    assert err < 5e-3, f"kernel/reference mismatch: max abs err {err}"
    print("KERNEL_OK")
</pallas_src>

<mosaic_0001>
module attributes {stable_mosaic.version = 11 : i64} {
  func.func @fused_encoder_kernel(%arg0: memref<16x128xf32, #tpu.memory_space<vmem>>, %arg1: memref<16x128xf32, #tpu.memory_space<vmem>>, %arg2: memref<16x1xf32, #tpu.memory_space<vmem>>, %arg3: memref<2x8xf32, #tpu.memory_space<vmem>>, %arg4: memref<4x128xf32, #tpu.memory_space<vmem>>, %arg5: memref<2x128x384xf32, #tpu.memory_space<vmem>>, %arg6: memref<2x1x384xf32, #tpu.memory_space<vmem>>, %arg7: memref<2x128x128xf32, #tpu.memory_space<vmem>>, %arg8: memref<2x128x256xf32, #tpu.memory_space<vmem>>, %arg9: memref<2x1x256xf32, #tpu.memory_space<vmem>>, %arg10: memref<2x256x128xf32, #tpu.memory_space<vmem>>, %arg11: memref<2x8x128xf32, #tpu.memory_space<vmem>>, %arg12: memref<128x128xf32, #tpu.memory_space<vmem>>, %arg13: memref<16x128xf32, #tpu.memory_space<vmem>>) attributes {dimension_semantics = [], scalar_prefetch = 0 : i64, scratch_operands = 0 : i64, tpu.core_type = #tpu.core_type<tc>} {
    %c0 = arith.constant 0 : index
    %c0_0 = arith.constant 0 : index
    %0 = vector.load %arg0[%c0, %c0_0] : memref<16x128xf32, #tpu.memory_space<vmem>>, vector<16x128xf32>
    %cst = arith.constant 11.3137083 : f32
    %1 = vector.broadcast %cst : f32 to vector<16x128xf32>
    %2 = arith.mulf %1, %0 : vector<16x128xf32>
    %c0_1 = arith.constant 0 : index
    %c0_2 = arith.constant 0 : index
    %3 = vector.load %arg1[%c0_1, %c0_2] : memref<16x128xf32, #tpu.memory_space<vmem>>, vector<16x128xf32>
    %4 = arith.addf %2, %3 : vector<16x128xf32>
    %c0_3 = arith.constant 0 : index
    %c0_4 = arith.constant 0 : index
    %5 = vector.load %arg4[%c0_3, %c0_4] : memref<4x128xf32, #tpu.memory_space<vmem>>, vector<1x128xf32>
    %c1 = arith.constant 1 : index
    %c0_5 = arith.constant 0 : index
    %6 = vector.load %arg4[%c1, %c0_5] : memref<4x128xf32, #tpu.memory_space<vmem>>, vector<1x128xf32>
    %cst_6 = arith.constant dense<0.000000e+00> : vector<16xf32>
    %7 = vector.multi_reduction <add>, %4, %cst_6 [1] : vector<16x128xf32> to vector<16xf32>
    %8 = vector.shape_cast %7 : vector<16xf32> to vector<16x1xf32>
    %cst_7 = arith.constant 1.280000e+02 : f32
    %9 = vector.broadcast %cst_7 : f32 to vector<16x1xf32>
    %10 = arith.divf %8, %9 : vector<16x1xf32>
    %11 = vector.broadcast %10 : vector<16x1xf32> to vector<16x128xf32>
    %12 = arith.subf %4, %11 : vector<16x128xf32>
    %13 = arith.mulf %12, %12 : vector<16x128xf32>
    %cst_8 = arith.constant dense<0.000000e+00> : vector<16xf32>
    %14 = vector.multi_reduction <add>, %13, %cst_8 [1] : vector<16x128xf32> to vector<16xf32>
    %15 = vector.shape_cast %14 : vector<16xf32> to vector<16x1xf32>
    %cst_9 = arith.constant 1.280000e+02 : f32
    %16 = vector.broadcast %cst_9 : f32 to vector<16x1xf32>
    %17 = arith.divf %15, %16 : vector<16x1xf32>
    %cst_10 = arith.constant 9.99999974E-6 : f32
    %18 = vector.broadcast %cst_10 : f32 to vector<16x1xf32>
    %19 = arith.addf %17, %18 : vector<16x1xf32>
    %20 = math.rsqrt %19 : vector<16x1xf32>
    %21 = vector.broadcast %20 : vector<16x1xf32> to vector<16x128xf32>
    %22 = arith.mulf %12, %21 : vector<16x128xf32>
    %23 = vector.broadcast %5 : vector<1x128xf32> to vector<16x128xf32>
    %24 = arith.mulf %22, %23 : vector<16x128xf32>
    %25 = vector.broadcast %6 : vector<1x128xf32> to vector<16x128xf32>
    %26 = arith.addf %24, %25 : vector<16x128xf32>
    %c0_11 = arith.constant 0 : index
    %c0_12 = arith.constant 0 : index
    %27 = vector.load %arg2[%c0_11, %c0_12] : memref<16x1xf32, #tpu.memory_space<vmem>>, vector<16x1xf32>
    %28 = vector.broadcast %27 : vector<16x1xf32> to vector<16x128xf32>
    %29 = arith.mulf %26, %28 : vector<16x128xf32>
    %c0_13 = arith.constant 0 : index
    %c0_14 = arith.constant 0 : index
    %30 = vector.load %arg3[%c0_13, %c0_14] : memref<2x8xf32, #tpu.memory_space<vmem>>, vector<2x8xf32>
    %31 = vector.extract_strided_slice %30 {offsets = [0, 0], sizes = [1, 8], strides = [1, 1]} : vector<2x8xf32> to vector<1x8xf32>
    %32 = vector.extract_strided_slice %30 {offsets = [1, 0], sizes = [1, 8], strides = [1, 1]} : vector<2x8xf32> to vector<1x8xf32>
    %c0_i32 = arith.constant 0 : i32
    %33 = arith.index_cast %c0_i32 : i32 to index
    %c0_15 = arith.constant 0 : index
    %c0_16 = arith.constant 0 : index
    %34 = vector.load %arg5[%33, %c0_15, %c0_16] : memref<2x128x384xf32, #tpu.memory_space<vmem>>, vector<1x128x384xf32>
    %35 = vector.shape_cast %34 : vector<1x128x384xf32> to vector<128x384xf32>
    %36 = arith.index_cast %c0_i32 : i32 to index
    %c0_17 = arith.constant 0 : index
    %c0_18 = arith.constant 0 : index
    %37 = vector.load %arg6[%36, %c0_17, %c0_18] : memref<2x1x384xf32, #tpu.memory_space<vmem>>, vector<1x1x384xf32>
    %38 = vector.shape_cast %37 : vector<1x1x384xf32> to vector<1x384xf32>
    %39 = arith.index_cast %c0_i32 : i32 to index
    %c0_19 = arith.constant 0 : index
    %c0_20 = arith.constant 0 : index
    %40 = vector.load %arg7[%39, %c0_19, %c0_20] : memref<2x128x128xf32, #tpu.memory_space<vmem>>, vector<1x128x128xf32>
    %41 = vector.shape_cast %40 : vector<1x128x128xf32> to vector<128x128xf32>
    %42 = arith.index_cast %c0_i32 : i32 to index
    %c0_21 = arith.constant 0 : index
    %c0_22 = arith.constant 0 : index
    %43 = vector.load %arg8[%42, %c0_21, %c0_22] : memref<2x128x256xf32, #tpu.memory_space<vmem>>, vector<1x128x256xf32>
    %44 = vector.shape_cast %43 : vector<1x128x256xf32> to vector<128x256xf32>
    %45 = arith.index_cast %c0_i32 : i32 to index
    %c0_23 = arith.constant 0 : index
    %c0_24 = arith.constant 0 : index
    %46 = vector.load %arg9[%45, %c0_23, %c0_24] : memref<2x1x256xf32, #tpu.memory_space<vmem>>, vector<1x1x256xf32>
    %47 = vector.shape_cast %46 : vector<1x1x256xf32> to vector<1x256xf32>
    %48 = arith.index_cast %c0_i32 : i32 to index
    %c0_25 = arith.constant 0 : index
    %c0_26 = arith.constant 0 : index
    %49 = vector.load %arg10[%48, %c0_25, %c0_26] : memref<2x256x128xf32, #tpu.memory_space<vmem>>, vector<1x256x128xf32>
    %50 = vector.shape_cast %49 : vector<1x256x128xf32> to vector<256x128xf32>
    %51 = arith.index_cast %c0_i32 : i32 to index
    %c0_27 = arith.constant 0 : index
    %c0_28 = arith.constant 0 : index
    %52 = vector.load %arg11[%51, %c0_27, %c0_28] : memref<2x8x128xf32, #tpu.memory_space<vmem>>, vector<1x8x128xf32>
    %53 = vector.shape_cast %52 : vector<1x8x128xf32> to vector<8x128xf32>
    %54 = vector.extract_strided_slice %53 {offsets = [0, 0], sizes = [1, 128], strides = [1, 1]} : vector<8x128xf32> to vector<1x128xf32>
    %55 = vector.extract_strided_slice %53 {offsets = [1, 0], sizes = [1, 128], strides = [1, 1]} : vector<8x128xf32> to vector<1x128xf32>
    %56 = vector.extract_strided_slice %53 {offsets = [2, 0], sizes = [1, 128], strides = [1, 1]} : vector<8x128xf32> to vector<1x128xf32>
    %57 = vector.extract_strided_slice %53 {offsets = [3, 0], sizes = [1, 128], strides = [1, 1]} : vector<8x128xf32> to vector<1x128xf32>
    %58 = vector.extract_strided_slice %53 {offsets = [4, 0], sizes = [1, 128], strides = [1, 1]} : vector<8x128xf32> to vector<1x128xf32>
    %59 = vector.extract_strided_slice %53 {offsets = [5, 0], sizes = [1, 128], strides = [1, 1]} : vector<8x128xf32> to vector<1x128xf32>
    %cst_29 = arith.constant dense<0.000000e+00> : vector<16xf32>
    %60 = vector.multi_reduction <add>, %29, %cst_29 [1] : vector<16x128xf32> to vector<16xf32>
    %61 = vector.shape_cast %60 : vector<16xf32> to vector<16x1xf32>
    %cst_30 = arith.constant 1.280000e+02 : f32
    %62 = vector.broadcast %cst_30 : f32 to vector<16x1xf32>
    %63 = arith.divf %61, %62 : vector<16x1xf32>
    %64 = vector.broadcast %63 : vector<16x1xf32> to vector<16x128xf32>
    %65 = arith.subf %29, %64 : vector<16x128xf32>
    %66 = arith.mulf %65, %65 : vector<16x128xf32>
    %cst_31 = arith.constant dense<0.000000e+00> : vector<16xf32>
    %67 = vector.multi_reduction <add>, %66, %cst_31 [1] : vector<16x128xf32> to vector<16xf32>
    %68 = vector.shape_cast %67 : vector<16xf32> to vector<16x1xf32>
    %cst_32 = arith.constant 1.280000e+02 : f32
    %69 = vector.broadcast %cst_32 : f32 to vector<16x1xf32>
    %70 = arith.divf %68, %69 : vector<16x1xf32>
    %cst_33 = arith.constant 9.99999974E-6 : f32
    %71 = vector.broadcast %cst_33 : f32 to vector<16x1xf32>
    %72 = arith.addf %70, %71 : vector<16x1xf32>
    %73 = math.rsqrt %72 : vector<16x1xf32>
    %74 = vector.broadcast %73 : vector<16x1xf32> to vector<16x128xf32>
    %75 = arith.mulf %65, %74 : vector<16x128xf32>
    %76 = vector.broadcast %54 : vector<1x128xf32> to vector<16x128xf32>
    %77 = arith.mulf %75, %76 : vector<16x128xf32>
    %78 = vector.broadcast %55 : vector<1x128xf32> to vector<16x128xf32>
    %79 = arith.addf %77, %78 : vector<16x128xf32>
    %cst_34 = arith.constant dense<0.000000e+00> : vector<16x384xf32>
    %80 = tpu.matmul %79, %35, %cst_34 {dimension_numbers = #tpu.dot_dimension_numbers<[1], [0], [0], [1], [0, 0, 1, 1], [], []>} : vector<16x128xf32>, vector<128x384xf32>, vector<16x384xf32> -> vector<16x384xf32>
    %81 = vector.broadcast %38 : vector<1x384xf32> to vector<16x384xf32>
    %82 = arith.addf %80, %81 : vector<16x384xf32>
    %83 = vector.extract_strided_slice %82 {offsets = [0, 0], sizes = [8, 32], strides = [1, 1]} : vector<16x384xf32> to vector<8x32xf32>
    %84 = vector.extract_strided_slice %82 {offsets = [0, 128], sizes = [8, 32], strides = [1, 1]} : vector<16x384xf32> to vector<8x32xf32>
    %85 = vector.extract_strided_slice %82 {offsets = [0, 256], sizes = [8, 32], strides = [1, 1]} : vector<16x384xf32> to vector<8x32xf32>
    %86 = tpu.transpose %84, [1, 0] : vector<8x32xf32> -> vector<32x8xf32>
    %cst_35 = arith.constant dense<0.000000e+00> : vector<8x8xf32>
    %87 = tpu.matmul %83, %86, %cst_35 {dimension_numbers = #tpu.dot_dimension_numbers<[1], [0], [0], [1], [0, 0, 1, 1], [], []>} : vector<8x32xf32>, vector<32x8xf32>, vector<8x8xf32> -> vector<8x8xf32>
    %88 = vector.broadcast %31 : vector<1x8xf32> to vector<8x8xf32>
    %89 = arith.addf %87, %88 : vector<8x8xf32>
    %cst_36 = arith.constant dense<0xFF800000> : vector<8xf32>
    %90 = vector.multi_reduction <maximumf>, %89, %cst_36 [1] : vector<8x8xf32> to vector<8xf32>
    %91 = vector.shape_cast %90 : vector<8xf32> to vector<8x1xf32>
    %92 = vector.broadcast %91 : vector<8x1xf32> to vector<8x8xf32>
    %93 = arith.subf %89, %92 : vector<8x8xf32>
    %94 = math.exp %93 : vector<8x8xf32>
    %cst_37 = arith.constant dense<0.000000e+00> : vector<8xf32>
    %95 = vector.multi_reduction <add>, %94, %cst_37 [1] : vector<8x8xf32> to vector<8xf32>
    %96 = vector.shape_cast %95 : vector<8xf32> to vector<8x1xf32>
    %97 = tpu.reciprocal %96 {approx = true} : vector<8x1xf32> -> vector<8x1xf32>
    %98 = vector.broadcast %97 : vector<8x1xf32> to vector<8x8xf32>
    %99 = arith.mulf %94, %98 : vector<8x8xf32>
    %cst_38 = arith.constant dense<0.000000e+00> : vector<8x32xf32>
    %100 = tpu.matmul %99, %85, %cst_38 {dimension_numbers = #tpu.dot_dimension_numbers<[1], [0], [0], [1], [0, 0, 1, 1], [], []>} : vector<8x8xf32>, vector<8x32xf32>, vector<8x32xf32> -> vector<8x32xf32>
    %101 = vector.extract_strided_slice %82 {offsets = [0, 32], sizes = [8, 32], strides = [1, 1]} : vector<16x384xf32> to vector<8x32xf32>
    %102 = vector.extract_strided_slice %82 {offsets = [0, 160], sizes = [8, 32], strides = [1, 1]} : vector<16x384xf32> to vector<8x32xf32>
    %103 = vector.extract_strided_slice %82 {offsets = [0, 288], sizes = [8, 32], strides = [1, 1]} : vector<16x384xf32> to vector<8x32xf32>
    %104 = tpu.transpose %102, [1, 0] : vector<8x32xf32> -> vector<32x8xf32>
    %cst_39 = arith.constant dense<0.000000e+00> : vector<8x8xf32>
    %105 = tpu.matmul %101, %104, %cst_39 {dimension_numbers = #tpu.dot_dimension_numbers<[1], [0], [0], [1], [0, 0, 1, 1], [], []>} : vector<8x32xf32>, vector<32x8xf32>, vector<8x8xf32> -> vector<8x8xf32>
    %106 = vector.broadcast %31 : vector<1x8xf32> to vector<8x8xf32>
    %107 = arith.addf %105, %106 : vector<8x8xf32>
    %cst_40 = arith.constant dense<0xFF800000> : vector<8xf32>
    %108 = vector.multi_reduction <maximumf>, %107, %cst_40 [1] : vector<8x8xf32> to vector<8xf32>
    %109 = vector.shape_cast %108 : vector<8xf32> to vector<8x1xf32>
    %110 = vector.broadcast %109 : vector<8x1xf32> to vector<8x8xf32>
    %111 = arith.subf %107, %110 : vector<8x8xf32>
    %112 = math.exp %111 : vector<8x8xf32>
    %cst_41 = arith.constant dense<0.000000e+00> : vector<8xf32>
    %113 = vector.multi_reduction <add>, %112, %cst_41 [1] : vector<8x8xf32> to vector<8xf32>
    %114 = vector.shape_cast %113 : vector<8xf32> to vector<8x1xf32>
    %115 = tpu.reciprocal %114 {approx = true} : vector<8x1xf32> -> vector<8x1xf32>
    %116 = vector.broadcast %115 : vector<8x1xf32> to vector<8x8xf32>
    %117 = arith.mulf %112, %116 : vector<8x8xf32>
    %cst_42 = arith.constant dense<0.000000e+00> : vector<8x32xf32>
    %118 = tpu.matmul %117, %103, %cst_42 {dimension_numbers = #tpu.dot_dimension_numbers<[1], [0], [0], [1], [0, 0, 1, 1], [], []>} : vector<8x8xf32>, vector<8x32xf32>, vector<8x32xf32> -> vector<8x32xf32>
    %119 = vector.extract_strided_slice %82 {offsets = [0, 64], sizes = [8, 32], strides = [1, 1]} : vector<16x384xf32> to vector<8x32xf32>
    %120 = vector.extract_strided_slice %82 {offsets = [0, 192], sizes = [8, 32], strides = [1, 1]} : vector<16x384xf32> to vector<8x32xf32>
    %121 = vector.extract_strided_slice %82 {offsets = [0, 320], sizes = [8, 32], strides = [1, 1]} : vector<16x384xf32> to vector<8x32xf32>
    %122 = tpu.transpose %120, [1, 0] : vector<8x32xf32> -> vector<32x8xf32>
    %cst_43 = arith.constant dense<0.000000e+00> : vector<8x8xf32>
    %123 = tpu.matmul %119, %122, %cst_43 {dimension_numbers = #tpu.dot_dimension_numbers<[1], [0], [0], [1], [0, 0, 1, 1], [], []>} : vector<8x32xf32>, vector<32x8xf32>, vector<8x8xf32> -> vector<8x8xf32>
    %124 = vector.broadcast %31 : vector<1x8xf32> to vector<8x8xf32>
    %125 = arith.addf %123, %124 : vector<8x8xf32>
    %cst_44 = arith.constant dense<0xFF800000> : vector<8xf32>
    %126 = vector.multi_reduction <maximumf>, %125, %cst_44 [1] : vector<8x8xf32> to vector<8xf32>
    %127 = vector.shape_cast %126 : vector<8xf32> to vector<8x1xf32>
    %128 = vector.broadcast %127 : vector<8x1xf32> to vector<8x8xf32>
    %129 = arith.subf %125, %128 : vector<8x8xf32>
    %130 = math.exp %129 : vector<8x8xf32>
    %cst_45 = arith.constant dense<0.000000e+00> : vector<8xf32>
    %131 = vector.multi_reduction <add>, %130, %cst_45 [1] : vector<8x8xf32> to vector<8xf32>
    %132 = vector.shape_cast %131 : vector<8xf32> to vector<8x1xf32>
    %133 = tpu.reciprocal %132 {approx = true} : vector<8x1xf32> -> vector<8x1xf32>
    %134 = vector.broadcast %133 : vector<8x1xf32> to vector<8x8xf32>
    %135 = arith.mulf %130, %134 : vector<8x8xf32>
    %cst_46 = arith.constant dense<0.000000e+00> : vector<8x32xf32>
    %136 = tpu.matmul %135, %121, %cst_46 {dimension_numbers = #tpu.dot_dimension_numbers<[1], [0], [0], [1], [0, 0, 1, 1], [], []>} : vector<8x8xf32>, vector<8x32xf32>, vector<8x32xf32> -> vector<8x32xf32>
    %137 = vector.extract_strided_slice %82 {offsets = [0, 96], sizes = [8, 32], strides = [1, 1]} : vector<16x384xf32> to vector<8x32xf32>
    %138 = vector.extract_strided_slice %82 {offsets = [0, 224], sizes = [8, 32], strides = [1, 1]} : vector<16x384xf32> to vector<8x32xf32>
    %139 = vector.extract_strided_slice %82 {offsets = [0, 352], sizes = [8, 32], strides = [1, 1]} : vector<16x384xf32> to vector<8x32xf32>
    %140 = tpu.transpose %138, [1, 0] : vector<8x32xf32> -> vector<32x8xf32>
    %cst_47 = arith.constant dense<0.000000e+00> : vector<8x8xf32>
    %141 = tpu.matmul %137, %140, %cst_47 {dimension_numbers = #tpu.dot_dimension_numbers<[1], [0], [0], [1], [0, 0, 1, 1], [], []>} : vector<8x32xf32>, vector<32x8xf32>, vector<8x8xf32> -> vector<8x8xf32>
    %142 = vector.broadcast %31 : vector<1x8xf32> to vector<8x8xf32>
    %143 = arith.addf %141, %142 : vector<8x8xf32>
    %cst_48 = arith.constant dense<0xFF800000> : vector<8xf32>
    %144 = vector.multi_reduction <maximumf>, %143, %cst_48 [1] : vector<8x8xf32> to vector<8xf32>
    %145 = vector.shape_cast %144 : vector<8xf32> to vector<8x1xf32>
    %146 = vector.broadcast %145 : vector<8x1xf32> to vector<8x8xf32>
    %147 = arith.subf %143, %146 : vector<8x8xf32>
    %148 = math.exp %147 : vector<8x8xf32>
    %cst_49 = arith.constant dense<0.000000e+00> : vector<8xf32>
    %149 = vector.multi_reduction <add>, %148, %cst_49 [1] : vector<8x8xf32> to vector<8xf32>
    %150 = vector.shape_cast %149 : vector<8xf32> to vector<8x1xf32>
    %151 = tpu.reciprocal %150 {approx = true} : vector<8x1xf32> -> vector<8x1xf32>
    %152 = vector.broadcast %151 : vector<8x1xf32> to vector<8x8xf32>
    %153 = arith.mulf %148, %152 : vector<8x8xf32>
    %cst_50 = arith.constant dense<0.000000e+00> : vector<8x32xf32>
    %154 = tpu.matmul %153, %139, %cst_50 {dimension_numbers = #tpu.dot_dimension_numbers<[1], [0], [0], [1], [0, 0, 1, 1], [], []>} : vector<8x8xf32>, vector<8x32xf32>, vector<8x32xf32> -> vector<8x32xf32>
    %155 = tpu.concatenate %100, %118, %136, %154 in 1 : vector<8x32xf32>, vector<8x32xf32>, vector<8x32xf32>, vector<8x32xf32> -> vector<8x128xf32>
    %156 = vector.extract_strided_slice %82 {offsets = [8, 0], sizes = [8, 32], strides = [1, 1]} : vector<16x384xf32> to vector<8x32xf32>
    %157 = vector.extract_strided_slice %82 {offsets = [8, 128], sizes = [8, 32], strides = [1, 1]} : vector<16x384xf32> to vector<8x32xf32>
    %158 = vector.extract_strided_slice %82 {offsets = [8, 256], sizes = [8, 32], strides = [1, 1]} : vector<16x384xf32> to vector<8x32xf32>
    %159 = tpu.transpose %157, [1, 0] : vector<8x32xf32> -> vector<32x8xf32>
    %cst_51 = arith.constant dense<0.000000e+00> : vector<8x8xf32>
    %160 = tpu.matmul %156, %159, %cst_51 {dimension_numbers = #tpu.dot_dimension_numbers<[1], [0], [0], [1], [0, 0, 1, 1], [], []>} : vector<8x32xf32>, vector<32x8xf32>, vector<8x8xf32> -> vector<8x8xf32>
    %161 = vector.broadcast %32 : vector<1x8xf32> to vector<8x8xf32>
    %162 = arith.addf %160, %161 : vector<8x8xf32>
    %cst_52 = arith.constant dense<0xFF800000> : vector<8xf32>
    %163 = vector.multi_reduction <maximumf>, %162, %cst_52 [1] : vector<8x8xf32> to vector<8xf32>
    %164 = vector.shape_cast %163 : vector<8xf32> to vector<8x1xf32>
    %165 = vector.broadcast %164 : vector<8x1xf32> to vector<8x8xf32>
    %166 = arith.subf %162, %165 : vector<8x8xf32>
    %167 = math.exp %166 : vector<8x8xf32>
    %cst_53 = arith.constant dense<0.000000e+00> : vector<8xf32>
    %168 = vector.multi_reduction <add>, %167, %cst_53 [1] : vector<8x8xf32> to vector<8xf32>
    %169 = vector.shape_cast %168 : vector<8xf32> to vector<8x1xf32>
    %170 = tpu.reciprocal %169 {approx = true} : vector<8x1xf32> -> vector<8x1xf32>
    %171 = vector.broadcast %170 : vector<8x1xf32> to vector<8x8xf32>
    %172 = arith.mulf %167, %171 : vector<8x8xf32>
    %cst_54 = arith.constant dense<0.000000e+00> : vector<8x32xf32>
    %173 = tpu.matmul %172, %158, %cst_54 {dimension_numbers = #tpu.dot_dimension_numbers<[1], [0], [0], [1], [0, 0, 1, 1], [], []>} : vector<8x8xf32>, vector<8x32xf32>, vector<8x32xf32> -> vector<8x32xf32>
    %174 = vector.extract_strided_slice %82 {offsets = [8, 32], sizes = [8, 32], strides = [1, 1]} : vector<16x384xf32> to vector<8x32xf32>
    %175 = vector.extract_strided_slice %82 {offsets = [8, 160], sizes = [8, 32], strides = [1, 1]} : vector<16x384xf32> to vector<8x32xf32>
    %176 = vector.extract_strided_slice %82 {offsets = [8, 288], sizes = [8, 32], strides = [1, 1]} : vector<16x384xf32> to vector<8x32xf32>
    %177 = tpu.transpose %175, [1, 0] : vector<8x32xf32> -> vector<32x8xf32>
    %cst_55 = arith.constant dense<0.000000e+00> : vector<8x8xf32>
    %178 = tpu.matmul %174, %177, %cst_55 {dimension_numbers = #tpu.dot_dimension_numbers<[1], [0], [0], [1], [0, 0, 1, 1], [], []>} : vector<8x32xf32>, vector<32x8xf32>, vector<8x8xf32> -> vector<8x8xf32>
    %179 = vector.broadcast %32 : vector<1x8xf32> to vector<8x8xf32>
    %180 = arith.addf %178, %179 : vector<8x8xf32>
    %cst_56 = arith.constant dense<0xFF800000> : vector<8xf32>
    %181 = vector.multi_reduction <maximumf>, %180, %cst_56 [1] : vector<8x8xf32> to vector<8xf32>
    %182 = vector.shape_cast %181 : vector<8xf32> to vector<8x1xf32>
    %183 = vector.broadcast %182 : vector<8x1xf32> to vector<8x8xf32>
    %184 = arith.subf %180, %183 : vector<8x8xf32>
    %185 = math.exp %184 : vector<8x8xf32>
    %cst_57 = arith.constant dense<0.000000e+00> : vector<8xf32>
    %186 = vector.multi_reduction <add>, %185, %cst_57 [1] : vector<8x8xf32> to vector<8xf32>
    %187 = vector.shape_cast %186 : vector<8xf32> to vector<8x1xf32>
    %188 = tpu.reciprocal %187 {approx = true} : vector<8x1xf32> -> vector<8x1xf32>
    %189 = vector.broadcast %188 : vector<8x1xf32> to vector<8x8xf32>
    %190 = arith.mulf %185, %189 : vector<8x8xf32>
    %cst_58 = arith.constant dense<0.000000e+00> : vector<8x32xf32>
    %191 = tpu.matmul %190, %176, %cst_58 {dimension_numbers = #tpu.dot_dimension_numbers<[1], [0], [0], [1], [0, 0, 1, 1], [], []>} : vector<8x8xf32>, vector<8x32xf32>, vector<8x32xf32> -> vector<8x32xf32>
    %192 = vector.extract_strided_slice %82 {offsets = [8, 64], sizes = [8, 32], strides = [1, 1]} : vector<16x384xf32> to vector<8x32xf32>
    %193 = vector.extract_strided_slice %82 {offsets = [8, 192], sizes = [8, 32], strides = [1, 1]} : vector<16x384xf32> to vector<8x32xf32>
    %194 = vector.extract_strided_slice %82 {offsets = [8, 320], sizes = [8, 32], strides = [1, 1]} : vector<16x384xf32> to vector<8x32xf32>
    %195 = tpu.transpose %193, [1, 0] : vector<8x32xf32> -> vector<32x8xf32>
    %cst_59 = arith.constant dense<0.000000e+00> : vector<8x8xf32>
    %196 = tpu.matmul %192, %195, %cst_59 {dimension_numbers = #tpu.dot_dimension_numbers<[1], [0], [0], [1], [0, 0, 1, 1], [], []>} : vector<8x32xf32>, vector<32x8xf32>, vector<8x8xf32> -> vector<8x8xf32>
    %197 = vector.broadcast %32 : vector<1x8xf32> to vector<8x8xf32>
    %198 = arith.addf %196, %197 : vector<8x8xf32>
    %cst_60 = arith.constant dense<0xFF800000> : vector<8xf32>
    %199 = vector.multi_reduction <maximumf>, %198, %cst_60 [1] : vector<8x8xf32> to vector<8xf32>
    %200 = vector.shape_cast %199 : vector<8xf32> to vector<8x1xf32>
    %201 = vector.broadcast %200 : vector<8x1xf32> to vector<8x8xf32>
    %202 = arith.subf %198, %201 : vector<8x8xf32>
    %203 = math.exp %202 : vector<8x8xf32>
    %cst_61 = arith.constant dense<0.000000e+00> : vector<8xf32>
    %204 = vector.multi_reduction <add>, %203, %cst_61 [1] : vector<8x8xf32> to vector<8xf32>
    %205 = vector.shape_cast %204 : vector<8xf32> to vector<8x1xf32>
    %206 = tpu.reciprocal %205 {approx = true} : vector<8x1xf32> -> vector<8x1xf32>
    %207 = vector.broadcast %206 : vector<8x1xf32> to vector<8x8xf32>
    %208 = arith.mulf %203, %207 : vector<8x8xf32>
    %cst_62 = arith.constant dense<0.000000e+00> : vector<8x32xf32>
    %209 = tpu.matmul %208, %194, %cst_62 {dimension_numbers = #tpu.dot_dimension_numbers<[1], [0], [0], [1], [0, 0, 1, 1], [], []>} : vector<8x8xf32>, vector<8x32xf32>, vector<8x32xf32> -> vector<8x32xf32>
    %210 = vector.extract_strided_slice %82 {offsets = [8, 96], sizes = [8, 32], strides = [1, 1]} : vector<16x384xf32> to vector<8x32xf32>
    %211 = vector.extract_strided_slice %82 {offsets = [8, 224], sizes = [8, 32], strides = [1, 1]} : vector<16x384xf32> to vector<8x32xf32>
    %212 = vector.extract_strided_slice %82 {offsets = [8, 352], sizes = [8, 32], strides = [1, 1]} : vector<16x384xf32> to vector<8x32xf32>
    %213 = tpu.transpose %211, [1, 0] : vector<8x32xf32> -> vector<32x8xf32>
    %cst_63 = arith.constant dense<0.000000e+00> : vector<8x8xf32>
    %214 = tpu.matmul %210, %213, %cst_63 {dimension_numbers = #tpu.dot_dimension_numbers<[1], [0], [0], [1], [0, 0, 1, 1], [], []>} : vector<8x32xf32>, vector<32x8xf32>, vector<8x8xf32> -> vector<8x8xf32>
    %215 = vector.broadcast %32 : vector<1x8xf32> to vector<8x8xf32>
    %216 = arith.addf %214, %215 : vector<8x8xf32>
    %cst_64 = arith.constant dense<0xFF800000> : vector<8xf32>
    %217 = vector.multi_reduction <maximumf>, %216, %cst_64 [1] : vector<8x8xf32> to vector<8xf32>
    %218 = vector.shape_cast %217 : vector<8xf32> to vector<8x1xf32>
    %219 = vector.broadcast %218 : vector<8x1xf32> to vector<8x8xf32>
    %220 = arith.subf %216, %219 : vector<8x8xf32>
    %221 = math.exp %220 : vector<8x8xf32>
    %cst_65 = arith.constant dense<0.000000e+00> : vector<8xf32>
    %222 = vector.multi_reduction <add>, %221, %cst_65 [1] : vector<8x8xf32> to vector<8xf32>
    %223 = vector.shape_cast %222 : vector<8xf32> to vector<8x1xf32>
    %224 = tpu.reciprocal %223 {approx = true} : vector<8x1xf32> -> vector<8x1xf32>
    %225 = vector.broadcast %224 : vector<8x1xf32> to vector<8x8xf32>
    %226 = arith.mulf %221, %225 : vector<8x8xf32>
    %cst_66 = arith.constant dense<0.000000e+00> : vector<8x32xf32>
    %227 = tpu.matmul %226, %212, %cst_66 {dimension_numbers = #tpu.dot_dimension_numbers<[1], [0], [0], [1], [0, 0, 1, 1], [], []>} : vector<8x8xf32>, vector<8x32xf32>, vector<8x32xf32> -> vector<8x32xf32>
    %228 = tpu.concatenate %173, %191, %209, %227 in 1 : vector<8x32xf32>, vector<8x32xf32>, vector<8x32xf32>, vector<8x32xf32> -> vector<8x128xf32>
    %229 = tpu.concatenate %155, %228 in 0 : vector<8x128xf32>, vector<8x128xf32> -> vector<16x128xf32>
    %cst_67 = arith.constant dense<0.000000e+00> : vector<16x128xf32>
    %230 = tpu.matmul %229, %41, %cst_67 {dimension_numbers = #tpu.dot_dimension_numbers<[1], [0], [0], [1], [0, 0, 1, 1], [], []>} : vector<16x128xf32>, vector<128x128xf32>, vector<16x128xf32> -> vector<16x128xf32>
    %231 = arith.addf %29, %230 : vector<16x128xf32>
    %232 = vector.broadcast %56 : vector<1x128xf32> to vector<16x128xf32>
    %233 = arith.addf %231, %232 : vector<16x128xf32>
    %cst_68 = arith.constant dense<0.000000e+00> : vector<16xf32>
    %234 = vector.multi_reduction <add>, %233, %cst_68 [1] : vector<16x128xf32> to vector<16xf32>
    %235 = vector.shape_cast %234 : vector<16xf32> to vector<16x1xf32>
    %cst_69 = arith.constant 1.280000e+02 : f32
    %236 = vector.broadcast %cst_69 : f32 to vector<16x1xf32>
    %237 = arith.divf %235, %236 : vector<16x1xf32>
    %238 = vector.broadcast %237 : vector<16x1xf32> to vector<16x128xf32>
    %239 = arith.subf %233, %238 : vector<16x128xf32>
    %240 = arith.mulf %239, %239 : vector<16x128xf32>
    %cst_70 = arith.constant dense<0.000000e+00> : vector<16xf32>
    %241 = vector.multi_reduction <add>, %240, %cst_70 [1] : vector<16x128xf32> to vector<16xf32>
    %242 = vector.shape_cast %241 : vector<16xf32> to vector<16x1xf32>
    %cst_71 = arith.constant 1.280000e+02 : f32
    %243 = vector.broadcast %cst_71 : f32 to vector<16x1xf32>
    %244 = arith.divf %242, %243 : vector<16x1xf32>
    %cst_72 = arith.constant 9.99999974E-6 : f32
    %245 = vector.broadcast %cst_72 : f32 to vector<16x1xf32>
    %246 = arith.addf %244, %245 : vector<16x1xf32>
    %247 = math.rsqrt %246 : vector<16x1xf32>
    %248 = vector.broadcast %247 : vector<16x1xf32> to vector<16x128xf32>
    %249 = arith.mulf %239, %248 : vector<16x128xf32>
    %250 = vector.broadcast %57 : vector<1x128xf32> to vector<16x128xf32>
    %251 = arith.mulf %249, %250 : vector<16x128xf32>
    %252 = vector.broadcast %58 : vector<1x128xf32> to vector<16x128xf32>
    %253 = arith.addf %251, %252 : vector<16x128xf32>
    %cst_73 = arith.constant dense<0.000000e+00> : vector<16x256xf32>
    %254 = tpu.matmul %253, %44, %cst_73 {dimension_numbers = #tpu.dot_dimension_numbers<[1], [0], [0], [1], [0, 0, 1, 1], [], []>} : vector<16x128xf32>, vector<128x256xf32>, vector<16x256xf32> -> vector<16x256xf32>
    %255 = vector.broadcast %47 : vector<1x256xf32> to vector<16x256xf32>
    %256 = arith.addf %254, %255 : vector<16x256xf32>
    %cst_74 = arith.constant 0.000000e+00 : f32
    %257 = vector.broadcast %cst_74 : f32 to vector<16x256xf32>
    %258 = arith.maximumf %256, %257 : vector<16x256xf32>
    %cst_75 = arith.constant dense<0.000000e+00> : vector<16x128xf32>
    %259 = tpu.matmul %258, %50, %cst_75 {dimension_numbers = #tpu.dot_dimension_numbers<[1], [0], [0], [1], [0, 0, 1, 1], [], []>} : vector<16x256xf32>, vector<256x128xf32>, vector<16x128xf32> -> vector<16x128xf32>
    %260 = arith.addf %233, %259 : vector<16x128xf32>
    %261 = vector.broadcast %59 : vector<1x128xf32> to vector<16x128xf32>
    %262 = arith.addf %260, %261 : vector<16x128xf32>
    %c1_i32 = arith.constant 1 : i32
    %263 = arith.index_cast %c1_i32 : i32 to index
    %c0_76 = arith.constant 0 : index
    %c0_77 = arith.constant 0 : index
    %264 = vector.load %arg5[%263, %c0_76, %c0_77] : memref<2x128x384xf32, #tpu.memory_space<vmem>>, vector<1x128x384xf32>
    %265 = vector.shape_cast %264 : vector<1x128x384xf32> to vector<128x384xf32>
    %266 = arith.index_cast %c1_i32 : i32 to index
    %c0_78 = arith.constant 0 : index
    %c0_79 = arith.constant 0 : index
    %267 = vector.load %arg6[%266, %c0_78, %c0_79] : memref<2x1x384xf32, #tpu.memory_space<vmem>>, vector<1x1x384xf32>
    %268 = vector.shape_cast %267 : vector<1x1x384xf32> to vector<1x384xf32>
    %269 = arith.index_cast %c1_i32 : i32 to index
    %c0_80 = arith.constant 0 : index
    %c0_81 = arith.constant 0 : index
    %270 = vector.load %arg7[%269, %c0_80, %c0_81] : memref<2x128x128xf32, #tpu.memory_space<vmem>>, vector<1x128x128xf32>
    %271 = vector.shape_cast %270 : vector<1x128x128xf32> to vector<128x128xf32>
    %272 = arith.index_cast %c1_i32 : i32 to index
    %c0_82 = arith.constant 0 : index
    %c0_83 = arith.constant 0 : index
    %273 = vector.load %arg8[%272, %c0_82, %c0_83] : memref<2x128x256xf32, #tpu.memory_space<vmem>>, vector<1x128x256xf32>
    %274 = vector.shape_cast %273 : vector<1x128x256xf32> to vector<128x256xf32>
    %275 = arith.index_cast %c1_i32 : i32 to index
    %c0_84 = arith.constant 0 : index
    %c0_85 = arith.constant 0 : index
    %276 = vector.load %arg9[%275, %c0_84, %c0_85] : memref<2x1x256xf32, #tpu.memory_space<vmem>>, vector<1x1x256xf32>
    %277 = vector.shape_cast %276 : vector<1x1x256xf32> to vector<1x256xf32>
    %278 = arith.index_cast %c1_i32 : i32 to index
    %c0_86 = arith.constant 0 : index
    %c0_87 = arith.constant 0 : index
    %279 = vector.load %arg10[%278, %c0_86, %c0_87] : memref<2x256x128xf32, #tpu.memory_space<vmem>>, vector<1x256x128xf32>
    %280 = vector.shape_cast %279 : vector<1x256x128xf32> to vector<256x128xf32>
    %281 = arith.index_cast %c1_i32 : i32 to index
    %c0_88 = arith.constant 0 : index
    %c0_89 = arith.constant 0 : index
    %282 = vector.load %arg11[%281, %c0_88, %c0_89] : memref<2x8x128xf32, #tpu.memory_space<vmem>>, vector<1x8x128xf32>
    %283 = vector.shape_cast %282 : vector<1x8x128xf32> to vector<8x128xf32>
    %284 = vector.extract_strided_slice %283 {offsets = [0, 0], sizes = [1, 128], strides = [1, 1]} : vector<8x128xf32> to vector<1x128xf32>
    %285 = vector.extract_strided_slice %283 {offsets = [1, 0], sizes = [1, 128], strides = [1, 1]} : vector<8x128xf32> to vector<1x128xf32>
    %286 = vector.extract_strided_slice %283 {offsets = [2, 0], sizes = [1, 128], strides = [1, 1]} : vector<8x128xf32> to vector<1x128xf32>
    %287 = vector.extract_strided_slice %283 {offsets = [3, 0], sizes = [1, 128], strides = [1, 1]} : vector<8x128xf32> to vector<1x128xf32>
    %288 = vector.extract_strided_slice %283 {offsets = [4, 0], sizes = [1, 128], strides = [1, 1]} : vector<8x128xf32> to vector<1x128xf32>
    %289 = vector.extract_strided_slice %283 {offsets = [5, 0], sizes = [1, 128], strides = [1, 1]} : vector<8x128xf32> to vector<1x128xf32>
    %cst_90 = arith.constant dense<0.000000e+00> : vector<16xf32>
    %290 = vector.multi_reduction <add>, %262, %cst_90 [1] : vector<16x128xf32> to vector<16xf32>
    %291 = vector.shape_cast %290 : vector<16xf32> to vector<16x1xf32>
    %cst_91 = arith.constant 1.280000e+02 : f32
    %292 = vector.broadcast %cst_91 : f32 to vector<16x1xf32>
    %293 = arith.divf %291, %292 : vector<16x1xf32>
    %294 = vector.broadcast %293 : vector<16x1xf32> to vector<16x128xf32>
    %295 = arith.subf %262, %294 : vector<16x128xf32>
    %296 = arith.mulf %295, %295 : vector<16x128xf32>
    %cst_92 = arith.constant dense<0.000000e+00> : vector<16xf32>
    %297 = vector.multi_reduction <add>, %296, %cst_92 [1] : vector<16x128xf32> to vector<16xf32>
    %298 = vector.shape_cast %297 : vector<16xf32> to vector<16x1xf32>
    %cst_93 = arith.constant 1.280000e+02 : f32
    %299 = vector.broadcast %cst_93 : f32 to vector<16x1xf32>
    %300 = arith.divf %298, %299 : vector<16x1xf32>
    %cst_94 = arith.constant 9.99999974E-6 : f32
    %301 = vector.broadcast %cst_94 : f32 to vector<16x1xf32>
    %302 = arith.addf %300, %301 : vector<16x1xf32>
    %303 = math.rsqrt %302 : vector<16x1xf32>
    %304 = vector.broadcast %303 : vector<16x1xf32> to vector<16x128xf32>
    %305 = arith.mulf %295, %304 : vector<16x128xf32>
    %306 = vector.broadcast %284 : vector<1x128xf32> to vector<16x128xf32>
    %307 = arith.mulf %305, %306 : vector<16x128xf32>
    %308 = vector.broadcast %285 : vector<1x128xf32> to vector<16x128xf32>
    %309 = arith.addf %307, %308 : vector<16x128xf32>
    %cst_95 = arith.constant dense<0.000000e+00> : vector<16x384xf32>
    %310 = tpu.matmul %309, %265, %cst_95 {dimension_numbers = #tpu.dot_dimension_numbers<[1], [0], [0], [1], [0, 0, 1, 1], [], []>} : vector<16x128xf32>, vector<128x384xf32>, vector<16x384xf32> -> vector<16x384xf32>
    %311 = vector.broadcast %268 : vector<1x384xf32> to vector<16x384xf32>
    %312 = arith.addf %310, %311 : vector<16x384xf32>
    %313 = vector.extract_strided_slice %312 {offsets = [0, 0], sizes = [8, 32], strides = [1, 1]} : vector<16x384xf32> to vector<8x32xf32>
    %314 = vector.extract_strided_slice %312 {offsets = [0, 128], sizes = [8, 32], strides = [1, 1]} : vector<16x384xf32> to vector<8x32xf32>
    %315 = vector.extract_strided_slice %312 {offsets = [0, 256], sizes = [8, 32], strides = [1, 1]} : vector<16x384xf32> to vector<8x32xf32>
    %316 = tpu.transpose %314, [1, 0] : vector<8x32xf32> -> vector<32x8xf32>
    %cst_96 = arith.constant dense<0.000000e+00> : vector<8x8xf32>
    %317 = tpu.matmul %313, %316, %cst_96 {dimension_numbers = #tpu.dot_dimension_numbers<[1], [0], [0], [1], [0, 0, 1, 1], [], []>} : vector<8x32xf32>, vector<32x8xf32>, vector<8x8xf32> -> vector<8x8xf32>
    %318 = vector.broadcast %31 : vector<1x8xf32> to vector<8x8xf32>
    %319 = arith.addf %317, %318 : vector<8x8xf32>
    %cst_97 = arith.constant dense<0xFF800000> : vector<8xf32>
    %320 = vector.multi_reduction <maximumf>, %319, %cst_97 [1] : vector<8x8xf32> to vector<8xf32>
    %321 = vector.shape_cast %320 : vector<8xf32> to vector<8x1xf32>
    %322 = vector.broadcast %321 : vector<8x1xf32> to vector<8x8xf32>
    %323 = arith.subf %319, %322 : vector<8x8xf32>
    %324 = math.exp %323 : vector<8x8xf32>
    %cst_98 = arith.constant dense<0.000000e+00> : vector<8xf32>
    %325 = vector.multi_reduction <add>, %324, %cst_98 [1] : vector<8x8xf32> to vector<8xf32>
    %326 = vector.shape_cast %325 : vector<8xf32> to vector<8x1xf32>
    %327 = tpu.reciprocal %326 {approx = true} : vector<8x1xf32> -> vector<8x1xf32>
    %328 = vector.broadcast %327 : vector<8x1xf32> to vector<8x8xf32>
    %329 = arith.mulf %324, %328 : vector<8x8xf32>
    %cst_99 = arith.constant dense<0.000000e+00> : vector<8x32xf32>
    %330 = tpu.matmul %329, %315, %cst_99 {dimension_numbers = #tpu.dot_dimension_numbers<[1], [0], [0], [1], [0, 0, 1, 1], [], []>} : vector<8x8xf32>, vector<8x32xf32>, vector<8x32xf32> -> vector<8x32xf32>
    %331 = vector.extract_strided_slice %312 {offsets = [0, 32], sizes = [8, 32], strides = [1, 1]} : vector<16x384xf32> to vector<8x32xf32>
    %332 = vector.extract_strided_slice %312 {offsets = [0, 160], sizes = [8, 32], strides = [1, 1]} : vector<16x384xf32> to vector<8x32xf32>
    %333 = vector.extract_strided_slice %312 {offsets = [0, 288], sizes = [8, 32], strides = [1, 1]} : vector<16x384xf32> to vector<8x32xf32>
    %334 = tpu.transpose %332, [1, 0] : vector<8x32xf32> -> vector<32x8xf32>
    %cst_100 = arith.constant dense<0.000000e+00> : vector<8x8xf32>
    %335 = tpu.matmul %331, %334, %cst_100 {dimension_numbers = #tpu.dot_dimension_numbers<[1], [0], [0], [1], [0, 0, 1, 1], [], []>} : vector<8x32xf32>, vector<32x8xf32>, vector<8x8xf32> -> vector<8x8xf32>
    %336 = vector.broadcast %31 : vector<1x8xf32> to vector<8x8xf32>
    %337 = arith.addf %335, %336 : vector<8x8xf32>
    %cst_101 = arith.constant dense<0xFF800000> : vector<8xf32>
    %338 = vector.multi_reduction <maximumf>, %337, %cst_101 [1] : vector<8x8xf32> to vector<8xf32>
    %339 = vector.shape_cast %338 : vector<8xf32> to vector<8x1xf32>
    %340 = vector.broadcast %339 : vector<8x1xf32> to vector<8x8xf32>
    %341 = arith.subf %337, %340 : vector<8x8xf32>
    %342 = math.exp %341 : vector<8x8xf32>
    %cst_102 = arith.constant dense<0.000000e+00> : vector<8xf32>
    %343 = vector.multi_reduction <add>, %342, %cst_102 [1] : vector<8x8xf32> to vector<8xf32>
    %344 = vector.shape_cast %343 : vector<8xf32> to vector<8x1xf32>
    %345 = tpu.reciprocal %344 {approx = true} : vector<8x1xf32> -> vector<8x1xf32>
    %346 = vector.broadcast %345 : vector<8x1xf32> to vector<8x8xf32>
    %347 = arith.mulf %342, %346 : vector<8x8xf32>
    %cst_103 = arith.constant dense<0.000000e+00> : vector<8x32xf32>
    %348 = tpu.matmul %347, %333, %cst_103 {dimension_numbers = #tpu.dot_dimension_numbers<[1], [0], [0], [1], [0, 0, 1, 1], [], []>} : vector<8x8xf32>, vector<8x32xf32>, vector<8x32xf32> -> vector<8x32xf32>
    %349 = vector.extract_strided_slice %312 {offsets = [0, 64], sizes = [8, 32], strides = [1, 1]} : vector<16x384xf32> to vector<8x32xf32>
    %350 = vector.extract_strided_slice %312 {offsets = [0, 192], sizes = [8, 32], strides = [1, 1]} : vector<16x384xf32> to vector<8x32xf32>
    %351 = vector.extract_strided_slice %312 {offsets = [0, 320], sizes = [8, 32], strides = [1, 1]} : vector<16x384xf32> to vector<8x32xf32>
    %352 = tpu.transpose %350, [1, 0] : vector<8x32xf32> -> vector<32x8xf32>
    %cst_104 = arith.constant dense<0.000000e+00> : vector<8x8xf32>
    %353 = tpu.matmul %349, %352, %cst_104 {dimension_numbers = #tpu.dot_dimension_numbers<[1], [0], [0], [1], [0, 0, 1, 1], [], []>} : vector<8x32xf32>, vector<32x8xf32>, vector<8x8xf32> -> vector<8x8xf32>
    %354 = vector.broadcast %31 : vector<1x8xf32> to vector<8x8xf32>
    %355 = arith.addf %353, %354 : vector<8x8xf32>
    %cst_105 = arith.constant dense<0xFF800000> : vector<8xf32>
    %356 = vector.multi_reduction <maximumf>, %355, %cst_105 [1] : vector<8x8xf32> to vector<8xf32>
    %357 = vector.shape_cast %356 : vector<8xf32> to vector<8x1xf32>
    %358 = vector.broadcast %357 : vector<8x1xf32> to vector<8x8xf32>
    %359 = arith.subf %355, %358 : vector<8x8xf32>
    %360 = math.exp %359 : vector<8x8xf32>
    %cst_106 = arith.constant dense<0.000000e+00> : vector<8xf32>
    %361 = vector.multi_reduction <add>, %360, %cst_106 [1] : vector<8x8xf32> to vector<8xf32>
    %362 = vector.shape_cast %361 : vector<8xf32> to vector<8x1xf32>
    %363 = tpu.reciprocal %362 {approx = true} : vector<8x1xf32> -> vector<8x1xf32>
    %364 = vector.broadcast %363 : vector<8x1xf32> to vector<8x8xf32>
    %365 = arith.mulf %360, %364 : vector<8x8xf32>
    %cst_107 = arith.constant dense<0.000000e+00> : vector<8x32xf32>
    %366 = tpu.matmul %365, %351, %cst_107 {dimension_numbers = #tpu.dot_dimension_numbers<[1], [0], [0], [1], [0, 0, 1, 1], [], []>} : vector<8x8xf32>, vector<8x32xf32>, vector<8x32xf32> -> vector<8x32xf32>
    %367 = vector.extract_strided_slice %312 {offsets = [0, 96], sizes = [8, 32], strides = [1, 1]} : vector<16x384xf32> to vector<8x32xf32>
    %368 = vector.extract_strided_slice %312 {offsets = [0, 224], sizes = [8, 32], strides = [1, 1]} : vector<16x384xf32> to vector<8x32xf32>
    %369 = vector.extract_strided_slice %312 {offsets = [0, 352], sizes = [8, 32], strides = [1, 1]} : vector<16x384xf32> to vector<8x32xf32>
    %370 = tpu.transpose %368, [1, 0] : vector<8x32xf32> -> vector<32x8xf32>
    %cst_108 = arith.constant dense<0.000000e+00> : vector<8x8xf32>
    %371 = tpu.matmul %367, %370, %cst_108 {dimension_numbers = #tpu.dot_dimension_numbers<[1], [0], [0], [1], [0, 0, 1, 1], [], []>} : vector<8x32xf32>, vector<32x8xf32>, vector<8x8xf32> -> vector<8x8xf32>
    %372 = vector.broadcast %31 : vector<1x8xf32> to vector<8x8xf32>
    %373 = arith.addf %371, %372 : vector<8x8xf32>
    %cst_109 = arith.constant dense<0xFF800000> : vector<8xf32>
    %374 = vector.multi_reduction <maximumf>, %373, %cst_109 [1] : vector<8x8xf32> to vector<8xf32>
    %375 = vector.shape_cast %374 : vector<8xf32> to vector<8x1xf32>
    %376 = vector.broadcast %375 : vector<8x1xf32> to vector<8x8xf32>
    %377 = arith.subf %373, %376 : vector<8x8xf32>
    %378 = math.exp %377 : vector<8x8xf32>
    %cst_110 = arith.constant dense<0.000000e+00> : vector<8xf32>
    %379 = vector.multi_reduction <add>, %378, %cst_110 [1] : vector<8x8xf32> to vector<8xf32>
    %380 = vector.shape_cast %379 : vector<8xf32> to vector<8x1xf32>
    %381 = tpu.reciprocal %380 {approx = true} : vector<8x1xf32> -> vector<8x1xf32>
    %382 = vector.broadcast %381 : vector<8x1xf32> to vector<8x8xf32>
    %383 = arith.mulf %378, %382 : vector<8x8xf32>
    %cst_111 = arith.constant dense<0.000000e+00> : vector<8x32xf32>
    %384 = tpu.matmul %383, %369, %cst_111 {dimension_numbers = #tpu.dot_dimension_numbers<[1], [0], [0], [1], [0, 0, 1, 1], [], []>} : vector<8x8xf32>, vector<8x32xf32>, vector<8x32xf32> -> vector<8x32xf32>
    %385 = tpu.concatenate %330, %348, %366, %384 in 1 : vector<8x32xf32>, vector<8x32xf32>, vector<8x32xf32>, vector<8x32xf32> -> vector<8x128xf32>
    %386 = vector.extract_strided_slice %312 {offsets = [8, 0], sizes = [8, 32], strides = [1, 1]} : vector<16x384xf32> to vector<8x32xf32>
    %387 = vector.extract_strided_slice %312 {offsets = [8, 128], sizes = [8, 32], strides = [1, 1]} : vector<16x384xf32> to vector<8x32xf32>
    %388 = vector.extract_strided_slice %312 {offsets = [8, 256], sizes = [8, 32], strides = [1, 1]} : vector<16x384xf32> to vector<8x32xf32>
    %389 = tpu.transpose %387, [1, 0] : vector<8x32xf32> -> vector<32x8xf32>
    %cst_112 = arith.constant dense<0.000000e+00> : vector<8x8xf32>
    %390 = tpu.matmul %386, %389, %cst_112 {dimension_numbers = #tpu.dot_dimension_numbers<[1], [0], [0], [1], [0, 0, 1, 1], [], []>} : vector<8x32xf32>, vector<32x8xf32>, vector<8x8xf32> -> vector<8x8xf32>
    %391 = vector.broadcast %32 : vector<1x8xf32> to vector<8x8xf32>
    %392 = arith.addf %390, %391 : vector<8x8xf32>
    %cst_113 = arith.constant dense<0xFF800000> : vector<8xf32>
    %393 = vector.multi_reduction <maximumf>, %392, %cst_113 [1] : vector<8x8xf32> to vector<8xf32>
    %394 = vector.shape_cast %393 : vector<8xf32> to vector<8x1xf32>
    %395 = vector.broadcast %394 : vector<8x1xf32> to vector<8x8xf32>
    %396 = arith.subf %392, %395 : vector<8x8xf32>
    %397 = math.exp %396 : vector<8x8xf32>
    %cst_114 = arith.constant dense<0.000000e+00> : vector<8xf32>
    %398 = vector.multi_reduction <add>, %397, %cst_114 [1] : vector<8x8xf32> to vector<8xf32>
    %399 = vector.shape_cast %398 : vector<8xf32> to vector<8x1xf32>
    %400 = tpu.reciprocal %399 {approx = true} : vector<8x1xf32> -> vector<8x1xf32>
    %401 = vector.broadcast %400 : vector<8x1xf32> to vector<8x8xf32>
    %402 = arith.mulf %397, %401 : vector<8x8xf32>
    %cst_115 = arith.constant dense<0.000000e+00> : vector<8x32xf32>
    %403 = tpu.matmul %402, %388, %cst_115 {dimension_numbers = #tpu.dot_dimension_numbers<[1], [0], [0], [1], [0, 0, 1, 1], [], []>} : vector<8x8xf32>, vector<8x32xf32>, vector<8x32xf32> -> vector<8x32xf32>
    %404 = vector.extract_strided_slice %312 {offsets = [8, 32], sizes = [8, 32], strides = [1, 1]} : vector<16x384xf32> to vector<8x32xf32>
    %405 = vector.extract_strided_slice %312 {offsets = [8, 160], sizes = [8, 32], strides = [1, 1]} : vector<16x384xf32> to vector<8x32xf32>
    %406 = vector.extract_strided_slice %312 {offsets = [8, 288], sizes = [8, 32], strides = [1, 1]} : vector<16x384xf32> to vector<8x32xf32>
    %407 = tpu.transpose %405, [1, 0] : vector<8x32xf32> -> vector<32x8xf32>
    %cst_116 = arith.constant dense<0.000000e+00> : vector<8x8xf32>
    %408 = tpu.matmul %404, %407, %cst_116 {dimension_numbers = #tpu.dot_dimension_numbers<[1], [0], [0], [1], [0, 0, 1, 1], [], []>} : vector<8x32xf32>, vector<32x8xf32>, vector<8x8xf32> -> vector<8x8xf32>
    %409 = vector.broadcast %32 : vector<1x8xf32> to vector<8x8xf32>
    %410 = arith.addf %408, %409 : vector<8x8xf32>
    %cst_117 = arith.constant dense<0xFF800000> : vector<8xf32>
    %411 = vector.multi_reduction <maximumf>, %410, %cst_117 [1] : vector<8x8xf32> to vector<8xf32>
    %412 = vector.shape_cast %411 : vector<8xf32> to vector<8x1xf32>
    %413 = vector.broadcast %412 : vector<8x1xf32> to vector<8x8xf32>
    %414 = arith.subf %410, %413 : vector<8x8xf32>
    %415 = math.exp %414 : vector<8x8xf32>
    %cst_118 = arith.constant dense<0.000000e+00> : vector<8xf32>
    %416 = vector.multi_reduction <add>, %415, %cst_118 [1] : vector<8x8xf32> to vector<8xf32>
    %417 = vector.shape_cast %416 : vector<8xf32> to vector<8x1xf32>
    %418 = tpu.reciprocal %417 {approx = true} : vector<8x1xf32> -> vector<8x1xf32>
    %419 = vector.broadcast %418 : vector<8x1xf32> to vector<8x8xf32>
    %420 = arith.mulf %415, %419 : vector<8x8xf32>
    %cst_119 = arith.constant dense<0.000000e+00> : vector<8x32xf32>
    %421 = tpu.matmul %420, %406, %cst_119 {dimension_numbers = #tpu.dot_dimension_numbers<[1], [0], [0], [1], [0, 0, 1, 1], [], []>} : vector<8x8xf32>, vector<8x32xf32>, vector<8x32xf32> -> vector<8x32xf32>
    %422 = vector.extract_strided_slice %312 {offsets = [8, 64], sizes = [8, 32], strides = [1, 1]} : vector<16x384xf32> to vector<8x32xf32>
    %423 = vector.extract_strided_slice %312 {offsets = [8, 192], sizes = [8, 32], strides = [1, 1]} : vector<16x384xf32> to vector<8x32xf32>
    %424 = vector.extract_strided_slice %312 {offsets = [8, 320], sizes = [8, 32], strides = [1, 1]} : vector<16x384xf32> to vector<8x32xf32>
    %425 = tpu.transpose %423, [1, 0] : vector<8x32xf32> -> vector<32x8xf32>
    %cst_120 = arith.constant dense<0.000000e+00> : vector<8x8xf32>
    %426 = tpu.matmul %422, %425, %cst_120 {dimension_numbers = #tpu.dot_dimension_numbers<[1], [0], [0], [1], [0, 0, 1, 1], [], []>} : vector<8x32xf32>, vector<32x8xf32>, vector<8x8xf32> -> vector<8x8xf32>
    %427 = vector.broadcast %32 : vector<1x8xf32> to vector<8x8xf32>
    %428 = arith.addf %426, %427 : vector<8x8xf32>
    %cst_121 = arith.constant dense<0xFF800000> : vector<8xf32>
    %429 = vector.multi_reduction <maximumf>, %428, %cst_121 [1] : vector<8x8xf32> to vector<8xf32>
    %430 = vector.shape_cast %429 : vector<8xf32> to vector<8x1xf32>
    %431 = vector.broadcast %430 : vector<8x1xf32> to vector<8x8xf32>
    %432 = arith.subf %428, %431 : vector<8x8xf32>
    %433 = math.exp %432 : vector<8x8xf32>
    %cst_122 = arith.constant dense<0.000000e+00> : vector<8xf32>
    %434 = vector.multi_reduction <add>, %433, %cst_122 [1] : vector<8x8xf32> to vector<8xf32>
    %435 = vector.shape_cast %434 : vector<8xf32> to vector<8x1xf32>
    %436 = tpu.reciprocal %435 {approx = true} : vector<8x1xf32> -> vector<8x1xf32>
    %437 = vector.broadcast %436 : vector<8x1xf32> to vector<8x8xf32>
    %438 = arith.mulf %433, %437 : vector<8x8xf32>
    %cst_123 = arith.constant dense<0.000000e+00> : vector<8x32xf32>
    %439 = tpu.matmul %438, %424, %cst_123 {dimension_numbers = #tpu.dot_dimension_numbers<[1], [0], [0], [1], [0, 0, 1, 1], [], []>} : vector<8x8xf32>, vector<8x32xf32>, vector<8x32xf32> -> vector<8x32xf32>
    %440 = vector.extract_strided_slice %312 {offsets = [8, 96], sizes = [8, 32], strides = [1, 1]} : vector<16x384xf32> to vector<8x32xf32>
    %441 = vector.extract_strided_slice %312 {offsets = [8, 224], sizes = [8, 32], strides = [1, 1]} : vector<16x384xf32> to vector<8x32xf32>
    %442 = vector.extract_strided_slice %312 {offsets = [8, 352], sizes = [8, 32], strides = [1, 1]} : vector<16x384xf32> to vector<8x32xf32>
    %443 = tpu.transpose %441, [1, 0] : vector<8x32xf32> -> vector<32x8xf32>
    %cst_124 = arith.constant dense<0.000000e+00> : vector<8x8xf32>
    %444 = tpu.matmul %440, %443, %cst_124 {dimension_numbers = #tpu.dot_dimension_numbers<[1], [0], [0], [1], [0, 0, 1, 1], [], []>} : vector<8x32xf32>, vector<32x8xf32>, vector<8x8xf32> -> vector<8x8xf32>
    %445 = vector.broadcast %32 : vector<1x8xf32> to vector<8x8xf32>
    %446 = arith.addf %444, %445 : vector<8x8xf32>
    %cst_125 = arith.constant dense<0xFF800000> : vector<8xf32>
    %447 = vector.multi_reduction <maximumf>, %446, %cst_125 [1] : vector<8x8xf32> to vector<8xf32>
    %448 = vector.shape_cast %447 : vector<8xf32> to vector<8x1xf32>
    %449 = vector.broadcast %448 : vector<8x1xf32> to vector<8x8xf32>
    %450 = arith.subf %446, %449 : vector<8x8xf32>
    %451 = math.exp %450 : vector<8x8xf32>
    %cst_126 = arith.constant dense<0.000000e+00> : vector<8xf32>
    %452 = vector.multi_reduction <add>, %451, %cst_126 [1] : vector<8x8xf32> to vector<8xf32>
    %453 = vector.shape_cast %452 : vector<8xf32> to vector<8x1xf32>
    %454 = tpu.reciprocal %453 {approx = true} : vector<8x1xf32> -> vector<8x1xf32>
    %455 = vector.broadcast %454 : vector<8x1xf32> to vector<8x8xf32>
    %456 = arith.mulf %451, %455 : vector<8x8xf32>
    %cst_127 = arith.constant dense<0.000000e+00> : vector<8x32xf32>
    %457 = tpu.matmul %456, %442, %cst_127 {dimension_numbers = #tpu.dot_dimension_numbers<[1], [0], [0], [1], [0, 0, 1, 1], [], []>} : vector<8x8xf32>, vector<8x32xf32>, vector<8x32xf32> -> vector<8x32xf32>
    %458 = tpu.concatenate %403, %421, %439, %457 in 1 : vector<8x32xf32>, vector<8x32xf32>, vector<8x32xf32>, vector<8x32xf32> -> vector<8x128xf32>
    %459 = tpu.concatenate %385, %458 in 0 : vector<8x128xf32>, vector<8x128xf32> -> vector<16x128xf32>
    %cst_128 = arith.constant dense<0.000000e+00> : vector<16x128xf32>
    %460 = tpu.matmul %459, %271, %cst_128 {dimension_numbers = #tpu.dot_dimension_numbers<[1], [0], [0], [1], [0, 0, 1, 1], [], []>} : vector<16x128xf32>, vector<128x128xf32>, vector<16x128xf32> -> vector<16x128xf32>
    %461 = arith.addf %262, %460 : vector<16x128xf32>
    %462 = vector.broadcast %286 : vector<1x128xf32> to vector<16x128xf32>
    %463 = arith.addf %461, %462 : vector<16x128xf32>
    %cst_129 = arith.constant dense<0.000000e+00> : vector<16xf32>
    %464 = vector.multi_reduction <add>, %463, %cst_129 [1] : vector<16x128xf32> to vector<16xf32>
    %465 = vector.shape_cast %464 : vector<16xf32> to vector<16x1xf32>
    %cst_130 = arith.constant 1.280000e+02 : f32
    %466 = vector.broadcast %cst_130 : f32 to vector<16x1xf32>
    %467 = arith.divf %465, %466 : vector<16x1xf32>
    %468 = vector.broadcast %467 : vector<16x1xf32> to vector<16x128xf32>
    %469 = arith.subf %463, %468 : vector<16x128xf32>
    %470 = arith.mulf %469, %469 : vector<16x128xf32>
    %cst_131 = arith.constant dense<0.000000e+00> : vector<16xf32>
    %471 = vector.multi_reduction <add>, %470, %cst_131 [1] : vector<16x128xf32> to vector<16xf32>
    %472 = vector.shape_cast %471 : vector<16xf32> to vector<16x1xf32>
    %cst_132 = arith.constant 1.280000e+02 : f32
    %473 = vector.broadcast %cst_132 : f32 to vector<16x1xf32>
    %474 = arith.divf %472, %473 : vector<16x1xf32>
    %cst_133 = arith.constant 9.99999974E-6 : f32
    %475 = vector.broadcast %cst_133 : f32 to vector<16x1xf32>
    %476 = arith.addf %474, %475 : vector<16x1xf32>
    %477 = math.rsqrt %476 : vector<16x1xf32>
    %478 = vector.broadcast %477 : vector<16x1xf32> to vector<16x128xf32>
    %479 = arith.mulf %469, %478 : vector<16x128xf32>
    %480 = vector.broadcast %287 : vector<1x128xf32> to vector<16x128xf32>
    %481 = arith.mulf %479, %480 : vector<16x128xf32>
    %482 = vector.broadcast %288 : vector<1x128xf32> to vector<16x128xf32>
    %483 = arith.addf %481, %482 : vector<16x128xf32>
    %cst_134 = arith.constant dense<0.000000e+00> : vector<16x256xf32>
    %484 = tpu.matmul %483, %274, %cst_134 {dimension_numbers = #tpu.dot_dimension_numbers<[1], [0], [0], [1], [0, 0, 1, 1], [], []>} : vector<16x128xf32>, vector<128x256xf32>, vector<16x256xf32> -> vector<16x256xf32>
    %485 = vector.broadcast %277 : vector<1x256xf32> to vector<16x256xf32>
    %486 = arith.addf %484, %485 : vector<16x256xf32>
    %cst_135 = arith.constant 0.000000e+00 : f32
    %487 = vector.broadcast %cst_135 : f32 to vector<16x256xf32>
    %488 = arith.maximumf %486, %487 : vector<16x256xf32>
    %cst_136 = arith.constant dense<0.000000e+00> : vector<16x128xf32>
    %489 = tpu.matmul %488, %280, %cst_136 {dimension_numbers = #tpu.dot_dimension_numbers<[1], [0], [0], [1], [0, 0, 1, 1], [], []>} : vector<16x256xf32>, vector<256x128xf32>, vector<16x128xf32> -> vector<16x128xf32>
    %490 = arith.addf %463, %489 : vector<16x128xf32>
    %491 = vector.broadcast %289 : vector<1x128xf32> to vector<16x128xf32>
    %492 = arith.addf %490, %491 : vector<16x128xf32>
    %c2_i32 = arith.constant 2 : i32
    %c2 = arith.constant 2 : index
    %c0_137 = arith.constant 0 : index
    %493 = vector.load %arg4[%c2, %c0_137] : memref<4x128xf32, #tpu.memory_space<vmem>>, vector<1x128xf32>
    %c3 = arith.constant 3 : index
    %c0_138 = arith.constant 0 : index
    %494 = vector.load %arg4[%c3, %c0_138] : memref<4x128xf32, #tpu.memory_space<vmem>>, vector<1x128xf32>
    %cst_139 = arith.constant dense<0.000000e+00> : vector<16xf32>
    %495 = vector.multi_reduction <add>, %492, %cst_139 [1] : vector<16x128xf32> to vector<16xf32>
    %496 = vector.shape_cast %495 : vector<16xf32> to vector<16x1xf32>
    %cst_140 = arith.constant 1.280000e+02 : f32
    %497 = vector.broadcast %cst_140 : f32 to vector<16x1xf32>
    %498 = arith.divf %496, %497 : vector<16x1xf32>
    %499 = vector.broadcast %498 : vector<16x1xf32> to vector<16x128xf32>
    %500 = arith.subf %492, %499 : vector<16x128xf32>
    %501 = arith.mulf %500, %500 : vector<16x128xf32>
    %cst_141 = arith.constant dense<0.000000e+00> : vector<16xf32>
    %502 = vector.multi_reduction <add>, %501, %cst_141 [1] : vector<16x128xf32> to vector<16xf32>
    %503 = vector.shape_cast %502 : vector<16xf32> to vector<16x1xf32>
    %cst_142 = arith.constant 1.280000e+02 : f32
    %504 = vector.broadcast %cst_142 : f32 to vector<16x1xf32>
    %505 = arith.divf %503, %504 : vector<16x1xf32>
    %cst_143 = arith.constant 9.99999974E-6 : f32
    %506 = vector.broadcast %cst_143 : f32 to vector<16x1xf32>
    %507 = arith.addf %505, %506 : vector<16x1xf32>
    %508 = math.rsqrt %507 : vector<16x1xf32>
    %509 = vector.broadcast %508 : vector<16x1xf32> to vector<16x128xf32>
    %510 = arith.mulf %500, %509 : vector<16x128xf32>
    %511 = vector.broadcast %493 : vector<1x128xf32> to vector<16x128xf32>
    %512 = arith.mulf %510, %511 : vector<16x128xf32>
    %513 = vector.broadcast %494 : vector<1x128xf32> to vector<16x128xf32>
    %514 = arith.addf %512, %513 : vector<16x128xf32>
    %c0_144 = arith.constant 0 : index
    %c0_145 = arith.constant 0 : index
    %515 = vector.load %arg12[%c0_144, %c0_145] : memref<128x128xf32, #tpu.memory_space<vmem>>, vector<128x128xf32>
    %cst_146 = arith.constant dense<0.000000e+00> : vector<16x128xf32>
    %516 = tpu.matmul %514, %515, %cst_146 {dimension_numbers = #tpu.dot_dimension_numbers<[1], [0], [0], [1], [0, 0, 1, 1], [], []>} : vector<16x128xf32>, vector<128x128xf32>, vector<16x128xf32> -> vector<16x128xf32>
    %c0_147 = arith.constant 0 : index
    %c0_148 = arith.constant 0 : index
    %517 = vector.load %arg13[%c0_147, %c0_148] : memref<16x128xf32, #tpu.memory_space<vmem>>, vector<16x128xf32>
    tpu.vector_store %arg13[%c0_147, %c0_148], %516 {strides = array<i32>} : memref<16x128xf32, #tpu.memory_space<vmem>>, vector<16x128xf32>,
    return
  }
}

</mosaic_0001>

<llo_original>
// kernel: encoder_forward_pallas.1
$region0: #{encoder_forward_pallas.1}
  #allocation0 [shape = 'u32[]', space=smem, size = 0x4, offset = 0x4, fixed_abs, tag = 'smem constant byte address 0x4 - core index']
  #allocation1 [shape = 'u32[144,128]{1,0:T(1,128)}', space=vmem, size = 0x12000, scoped, tag = 'internal scratch']
  %s0 = inlined_call_operand.vmem [shape: f32[16,128], index: 0, kind: input, shape index: {}]
  %s1 = inlined_call_operand.vmem [shape: f32[16,128], index: 1, kind: input, shape index: {}]
  %s2 = inlined_call_operand.vmem [shape: f32[16,1], index: 2, kind: input, shape index: {}]
  %s3 = inlined_call_operand.vmem [shape: f32[2,8], index: 3, kind: input, shape index: {}]
  %s4 = inlined_call_operand.vmem [shape: f32[4,128], index: 4, kind: input, shape index: {}]
  %s5 = inlined_call_operand.hbm [shape: f32[2,128,384], index: 5, kind: input, shape index: {}]
  %s6 = inlined_call_operand.vmem [shape: f32[2,1,384], index: 6, kind: input, shape index: {}]
  %s7 = inlined_call_operand.hbm [shape: f32[2,128,128], index: 7, kind: input, shape index: {}]
  %s8 = inlined_call_operand.hbm [shape: f32[2,128,256], index: 8, kind: input, shape index: {}]
  %s9 = inlined_call_operand.vmem [shape: f32[2,1,256], index: 9, kind: input, shape index: {}]
  %s10 = inlined_call_operand.hbm [shape: f32[2,256,128], index: 10, kind: input, shape index: {}]
  %s11 = inlined_call_operand.vmem [shape: f32[2,8,128], index: 11, kind: input, shape index: {}]
  %s12 = inlined_call_operand.vmem [shape: f32[128,128], index: 12, kind: input, shape index: {}]
  %s13 = inlined_call_operand.vmem [shape: f32[16,128], index: 13, kind: output, shape index: {}]
  %s14 = sld [smem:[#allocation0]]
  $region78: #{encoder_forward_pallas.1} parent=0
    _
  %s16 = ssub.s32 1, %s14
  %s17 = scalar_select 0, %s16, %s14
  $region1: #{encoder_forward_pallas.1} parent=0
    #allocation2 [shape = 'u8[393216]{0}', space=vmem, size = 0x60000, scoped, tag = 'input window, operand 5, single buffered']
    #allocation3 [shape = 's32[1]{0}', space=sflag, size = 0x4, scoped, tag = 'scoped memory for encoder_forward_pallas.1']
    #allocation4 [shape = 'u8[131072]{0}', space=vmem, size = 0x20000, scoped, tag = 'input window, operand 7, single buffered']
    #allocation5 [shape = 's32[1]{0}', space=sflag, size = 0x4, scoped, tag = 'scoped memory for encoder_forward_pallas.1']
    #allocation6 [shape = 'u8[262144]{0}', space=vmem, size = 0x40000, scoped, tag = 'input window, operand 8, single buffered']
    #allocation7 [shape = 'u8[262144]{0}', space=vmem, size = 0x40000, scoped, tag = 'input window, operand 10, single buffered']
    #allocation8 [shape = 's32[1]{0}', space=sflag, size = 0x4, scoped, tag = 'scoped memory for encoder_forward_pallas.1']
    %18 = vsyncpa [#allocation3], 0
    %19 = vsyncpa [#allocation5], 0
    %20 = vsyncpa [#allocation8], 0
    // Predicated region
    $region2: #{encoder_forward_pallas.1} parent=1 // pred_check
      _
    $region3: #{encoder_forward_pallas.1} parent=1 // pred_check_branch
      %22 = sbr.rel (0) target = $region5
    $region4: #{encoder_forward_pallas.1} parent=1 // pred_region
      _
    $region5: #{encoder_forward_pallas.1} parent=1 // pred_fallthru
      _
    // Predicated region
    $region6: #{encoder_forward_pallas.1} parent=1 // pred_check
      _
    $region7: #{encoder_forward_pallas.1} parent=1 // pred_check_branch
      %24 = sbr.rel (0) target = $region9
    $region8: #{encoder_forward_pallas.1} parent=1 // pred_region
      _
    $region9: #{encoder_forward_pallas.1} parent=1 // pred_fallthru
      _
    // Predicated region
    $region10: #{encoder_forward_pallas.1} parent=1 // pred_check
      _
    $region11: #{encoder_forward_pallas.1} parent=1 // pred_check_branch
      %26 = sbr.rel (0) target = $region13
    $region12: #{encoder_forward_pallas.1} parent=1 // pred_region
      _
    $region13: #{encoder_forward_pallas.1} parent=1 // pred_fallthru
      _
    // Predicated region
    $region14: #{encoder_forward_pallas.1} parent=1 // pred_check
      _
    $region15: #{encoder_forward_pallas.1} parent=1 // pred_check_branch
      %28 = sbr.rel (0) target = $region17
    $region16: #{encoder_forward_pallas.1} parent=1 // pred_region
      _
    $region17: #{encoder_forward_pallas.1} parent=1 // pred_fallthru
      _
    // Predicated region
    $region18: #{encoder_forward_pallas.1} parent=1 // pred_check
      _
    $region19: #{encoder_forward_pallas.1} parent=1 // pred_check_branch
      %30 = sbr.rel (0) target = $region21
    $region20: #{encoder_forward_pallas.1} parent=1 // pred_region
      _
    $region21: #{encoder_forward_pallas.1} parent=1 // pred_fallthru
      _
    // Predicated region
    $region22: #{encoder_forward_pallas.1} parent=1 // pred_check
      _
    $region23: #{encoder_forward_pallas.1} parent=1 // pred_check_branch
      %32 = sbr.rel (0) target = $region25
    $region24: #{encoder_forward_pallas.1} parent=1 // pred_region
      %s34 = ssub.s32 12288, 12288
      %35 = vsyncadd [#allocation3], %s34
      %s36 = sshll.u32 [#allocation2], 4
      %s37 = int_to_ptr.vmem [resolvable:$true] %s36
      %42 = dma.hbm_to_vmem [thread:$0]  %s5, 12288, %s37, [#allocation3], 384, 384, 24
    $region25: #{encoder_forward_pallas.1} parent=1 // pred_fallthru
      _
    // Predicated region
    $region26: #{encoder_forward_pallas.1} parent=1 // pred_check
      _
    $region27: #{encoder_forward_pallas.1} parent=1 // pred_check_branch
      %44 = sbr.rel (0) target = $region29
    $region28: #{encoder_forward_pallas.1} parent=1 // pred_region
      _
    $region29: #{encoder_forward_pallas.1} parent=1 // pred_fallthru
      _
    // Predicated region
    $region30: #{encoder_forward_pallas.1} parent=1 // pred_check
      _
    $region31: #{encoder_forward_pallas.1} parent=1 // pred_check_branch
      %46 = sbr.rel (0) target = $region33
    $region32: #{encoder_forward_pallas.1} parent=1 // pred_region
      %s48 = ssub.s32 4096, 4096
      %49 = vsyncadd [#allocation5], %s48
      %s50 = sshll.u32 [#allocation4], 4
      %s51 = int_to_ptr.vmem [resolvable:$true] %s50
      %56 = dma.hbm_to_vmem [thread:$0]  %s7, 4096, %s51, [#allocation5], 128, 128, 8
    $region33: #{encoder_forward_pallas.1} parent=1 // pred_fallthru
      _
    // Predicated region
    $region34: #{encoder_forward_pallas.1} parent=1 // pred_check
      _
    $region35: #{encoder_forward_pallas.1} parent=1 // pred_check_branch
      %58 = sbr.rel (0) target = $region37
    $region36: #{encoder_forward_pallas.1} parent=1 // pred_region
      %s60 = ssub.s32 8192, 8192
      %61 = vsyncadd [#allocation5], %s60
      %s62 = sshll.u32 [#allocation6], 4
      %s63 = int_to_ptr.vmem [resolvable:$true] %s62
      %68 = dma.hbm_to_vmem [thread:$0]  %s8, 8192, %s63, [#allocation5], 256, 256, 16
    $region37: #{encoder_forward_pallas.1} parent=1 // pred_fallthru
      _
    // Predicated region
    $region38: #{encoder_forward_pallas.1} parent=1 // pred_check
      _
    $region39: #{encoder_forward_pallas.1} parent=1 // pred_check_branch
      %70 = sbr.rel (0) target = $region41
    $region40: #{encoder_forward_pallas.1} parent=1 // pred_region
      _
    $region41: #{encoder_forward_pallas.1} parent=1 // pred_fallthru
      _
    // Predicated region
    $region42: #{encoder_forward_pallas.1} parent=1 // pred_check
      _
    $region43: #{encoder_forward_pallas.1} parent=1 // pred_check_branch
      %72 = sbr.rel (0) target = $region45
    $region44: #{encoder_forward_pallas.1} parent=1 // pred_region
      %s74 = ssub.s32 8192, 8192
      %75 = vsyncadd [#allocation8], %s74
      %s76 = sshll.u32 [#allocation7], 4
      %s77 = int_to_ptr.vmem [resolvable:$true] %s76
      %82 = dma.hbm_to_vmem [thread:$0]  %s10, 8192, %s77, [#allocation8], 128, 128, 8
    $region45: #{encoder_forward_pallas.1} parent=1 // pred_fallthru
      _
    // Predicated region
    $region46: #{encoder_forward_pallas.1} parent=1 // pred_check
      _
    $region47: #{encoder_forward_pallas.1} parent=1 // pred_check_branch
      %84 = sbr.rel (0) target = $region49
    $region48: #{encoder_forward_pallas.1} parent=1 // pred_region
      _
    $region49: #{encoder_forward_pallas.1} parent=1 // pred_fallthru
      _
    // Predicated region
    $region50: #{encoder_forward_pallas.1} parent=1 // pred_check
      _
    $region51: #{encoder_forward_pallas.1} parent=1 // pred_check_branch
      %86 = sbr.rel (0) target = $region53
    $region52: #{encoder_forward_pallas.1} parent=1 // pred_region
      _
    $region53: #{encoder_forward_pallas.1} parent=1 // pred_fallthru
      _
    // Predicated region
    $region54: #{encoder_forward_pallas.1} parent=1 // pred_check
      _
    $region55: #{encoder_forward_pallas.1} parent=1 // pred_check_branch
      %88 = sbr.rel (0) target = $region57
    $region56: #{encoder_forward_pallas.1} parent=1 // pred_region
      %89 = dma.done [#allocation3], 12288
    $region57: #{encoder_forward_pallas.1} parent=1 // pred_fallthru
      _
    // Predicated region
    $region58: #{encoder_forward_pallas.1} parent=1 // pred_check
      _
    $region59: #{encoder_forward_pallas.1} parent=1 // pred_check_branch
      %91 = sbr.rel (0) target = $region61
    $region60: #{encoder_forward_pallas.1} parent=1 // pred_region
      %92 = dma.done [#allocation5], 4096
    $region61: #{encoder_forward_pallas.1} parent=1 // pred_fallthru
      _
    // Predicated region
    $region62: #{encoder_forward_pallas.1} parent=1 // pred_check
      _
    $region63: #{encoder_forward_pallas.1} parent=1 // pred_check_branch
      %94 = sbr.rel (0) target = $region65
    $region64: #{encoder_forward_pallas.1} parent=1 // pred_region
      %95 = dma.done [#allocation5], 8192
    $region65: #{encoder_forward_pallas.1} parent=1 // pred_fallthru
      _
    // Predicated region
    $region66: #{encoder_forward_pallas.1} parent=1 // pred_check
      _
    $region67: #{encoder_forward_pallas.1} parent=1 // pred_check_branch
      %97 = sbr.rel (0) target = $region69
    $region68: #{encoder_forward_pallas.1} parent=1 // pred_region
      %98 = dma.done [#allocation8], 8192
    $region69: #{encoder_forward_pallas.1} parent=1 // pred_fallthru
      _
    %v99 = vld [vmem:[%s0] sm:$0xff]
    %v100 = vld [vmem:[%s0 + $0x8] sm:$0xff]
    %v101 = vmul.f32 %v99, 11.313708
    %v102 = vmul.f32 %v100, 11.313708
    %v103 = vld [vmem:[%s1] sm:$0xff]
    %v104 = vld [vmem:[%s1 + $0x8] sm:$0xff]
    %v105 = vadd.f32 %v101, %v103
    %v106 = vadd.f32 %v102, %v104
    %v107 = vld [vmem:[%s4] sm:$0x1]
    %v108 = vld [vmem:[%s4 + $0x1] sm:$0x1]
    %109 = vadd.xlane.f32.xlu0 %v105
    %v110 = vpop.xlane.xlu0 %109
    %111 = vadd.xlane.f32.xlu0 %v106
    %v112 = vpop.xlane.xlu0 %111
    %v113 = vrcp.pop 128.0
    %v114 = vmul.f32 %v110, %v113
    %v115 = vmul.f32 %v112, %v113
    %v116 = vsub.f32 %v105, %v114
    %v117 = vsub.f32 %v106, %v115
    %v118 = vmul.f32 %v116, %v116
    %v119 = vmul.f32 %v117, %v117
    %120 = vadd.xlane.f32.xlu0 %v118
    %v121 = vpop.xlane.xlu0 %120
    %122 = vadd.xlane.f32.xlu0 %v119
    %v123 = vpop.xlane.xlu0 %122
    %v124 = vmul.f32 %v121, %v113
    %v125 = vmul.f32 %v123, %v113
    %v126 = vadd.f32 %v124, 1e-05
    %v127 = vadd.f32 %v125, 1e-05
    %v128 = vrsqrt.pop %v126
    %v129 = vrsqrt.pop %v127
    %v130 = vmul.f32 %v116, %v128
    %v131 = vmul.f32 %v117, %v129
    %v132 = vlaneseq
    %v133 = vshrl.u32 %v132, 7
    %v134 = vsub.s32 0, %v133
    %v135 = vrot.slane %v107, %v134
    %v136 = vmul.f32 %v130, %v135
    %v137 = vmul.f32 %v131, %v135
    %v138 = vlaneseq
    %v139 = vshrl.u32 %v138, 7
    %v140 = vsub.s32 0, %v139
    %v141 = vrot.slane %v108, %v140
    %v142 = vadd.f32 %v136, %v141
    %v143 = vadd.f32 %v137, %v141
    %v144 = vld [vmem:[%s2] sm:$0xff]
    %v145 = vld [vmem:[%s2 + $0x8] sm:$0xff]
    %147 = vset.pattern.permute.xlu0 0
    %148 = vperm.xlu0 %147, %v144
    %v149 = vpop.permute.xlu0 %148
    %152 = vset.pattern.permute.xlu0 0
    %153 = vperm.xlu0 %152, %v145
    %v154 = vpop.permute.xlu0 %153
    %v156 = vmul.f32 %v142, %v149
    %v157 = vmul.f32 %v143, %v154
    %v158 = vld [vmem:[%s3] sm:$0x3]
    %v159 = vld [vmem:[#allocation2] sm:$0xff]
    %v160 = vld [vmem:[#allocation2 + $0x8] sm:$0xff]
    %v161 = vld [vmem:[#allocation2 + $0x10] sm:$0xff]
    %v162 = vld [vmem:[#allocation2 + $0x18] sm:$0xff]
    %v163 = vld [vmem:[#allocation2 + $0x20] sm:$0xff]
    %v164 = vld [vmem:[#allocation2 + $0x28] sm:$0xff]
    %v165 = vld [vmem:[#allocation2 + $0x30] sm:$0xff]
    %v166 = vld [vmem:[#allocation2 + $0x38] sm:$0xff]
    %v167 = vld [vmem:[#allocation2 + $0x40] sm:$0xff]
    %v168 = vld [vmem:[#allocation2 + $0x48] sm:$0xff]
    %v169 = vld [vmem:[#allocation2 + $0x50] sm:$0xff]
    %v170 = vld [vmem:[#allocation2 + $0x58] sm:$0xff]
    %v171 = vld [vmem:[#allocation2 + $0x60] sm:$0xff]
    %v172 = vld [vmem:[#allocation2 + $0x68] sm:$0xff]
    %v173 = vld [vmem:[#allocation2 + $0x70] sm:$0xff]
    %v174 = vld [vmem:[#allocation2 + $0x78] sm:$0xff]
    %v175 = vld [vmem:[#allocation2 + $0x80] sm:$0xff]
    %v176 = vld [vmem:[#allocation2 + $0x88] sm:$0xff]
    %v177 = vld [vmem:[#allocation2 + $0x90] sm:$0xff]
    %v178 = vld [vmem:[#allocation2 + $0x98] sm:$0xff]
    %v179 = vld [vmem:[#allocation2 + $0xa0] sm:$0xff]
    %v180 = vld [vmem:[#allocation2 + $0xa8] sm:$0xff]
    %v181 = vld [vmem:[#allocation2 + $0xb0] sm:$0xff]
    %v182 = vld [vmem:[#allocation2 + $0xb8] sm:$0xff]
    %v183 = vld [vmem:[#allocation2 + $0xc0] sm:$0xff]
    %v184 = vld [vmem:[#allocation2 + $0xc8] sm:$0xff]
    %v185 = vld [vmem:[#allocation2 + $0xd0] sm:$0xff]
    %v186 = vld [vmem:[#allocation2 + $0xd8] sm:$0xff]
    %v187 = vld [vmem:[#allocation2 + $0xe0] sm:$0xff]
    %v188 = vld [vmem:[#allocation2 + $0xe8] sm:$0xff]
    %v189 = vld [vmem:[#allocation2 + $0xf0] sm:$0xff]
    %v190 = vld [vmem:[#allocation2 + $0xf8] sm:$0xff]
    %v191 = vld [vmem:[#allocation2 + $0x100] sm:$0xff]
    %v192 = vld [vmem:[#allocation2 + $0x108] sm:$0xff]
    %v193 = vld [vmem:[#allocation2 + $0x110] sm:$0xff]
    %v194 = vld [vmem:[#allocation2 + $0x118] sm:$0xff]
    %v195 = vld [vmem:[#allocation2 + $0x120] sm:$0xff]
    %v196 = vld [vmem:[#allocation2 + $0x128] sm:$0xff]
    %v197 = vld [vmem:[#allocation2 + $0x130] sm:$0xff]
    %v198 = vld [vmem:[#allocation2 + $0x138] sm:$0xff]
    %v199 = vld [vmem:[#allocation2 + $0x140] sm:$0xff]
    %v200 = vld [vmem:[#allocation2 + $0x148] sm:$0xff]
    %v201 = vld [vmem:[#allocation2 + $0x150] sm:$0xff]
    %v202 = vld [vmem:[#allocation2 + $0x158] sm:$0xff]
    %v203 = vld [vmem:[#allocation2 + $0x160] sm:$0xff]
    %v204 = vld [vmem:[#allocation2 + $0x168] sm:$0xff]
    %v205 = vld [vmem:[#allocation2 + $0x170] sm:$0xff]
    %v206 = vld [vmem:[#allocation2 + $0x178] sm:$0xff]
    %v207 = vld [vmem:[%s6] sm:$0x7]
    %v208 = vld [vmem:[#allocation4] sm:$0xff]
    %v209 = vld [vmem:[#allocation4 + $0x8] sm:$0xff]
    %v210 = vld [vmem:[#allocation4 + $0x10] sm:$0xff]
    %v211 = vld [vmem:[#allocation4 + $0x18] sm:$0xff]
    %v212 = vld [vmem:[#allocation4 + $0x20] sm:$0xff]
    %v213 = vld [vmem:[#allocation4 + $0x28] sm:$0xff]
    %v214 = vld [vmem:[#allocation4 + $0x30] sm:$0xff]
    %v215 = vld [vmem:[#allocation4 + $0x38] sm:$0xff]
    %v216 = vld [vmem:[#allocation4 + $0x40] sm:$0xff]
    %v217 = vld [vmem:[#allocation4 + $0x48] sm:$0xff]
    %v218 = vld [vmem:[#allocation4 + $0x50] sm:$0xff]
    %v219 = vld [vmem:[#allocation4 + $0x58] sm:$0xff]
    %v220 = vld [vmem:[#allocation4 + $0x60] sm:$0xff]
    %v221 = vld [vmem:[#allocation4 + $0x68] sm:$0xff]
    %v222 = vld [vmem:[#allocation4 + $0x70] sm:$0xff]
    %v223 = vld [vmem:[#allocation4 + $0x78] sm:$0xff]
    %v224 = vld [vmem:[#allocation6] sm:$0xff]
    %v225 = vld [vmem:[#allocation6 + $0x8] sm:$0xff]
    %v226 = vld [vmem:[#allocation6 + $0x10] sm:$0xff]
    %v227 = vld [vmem:[#allocation6 + $0x18] sm:$0xff]
    %v228 = vld [vmem:[#allocation6 + $0x20] sm:$0xff]
    %v229 = vld [vmem:[#allocation6 + $0x28] sm:$0xff]
    %v230 = vld [vmem:[#allocation6 + $0x30] sm:$0xff]
    %v231 = vld [vmem:[#allocation6 + $0x38] sm:$0xff]
    %v232 = vld [vmem:[#allocation6 + $0x40] sm:$0xff]
    %v233 = vld [vmem:[#allocation6 + $0x48] sm:$0xff]
    %v234 = vld [vmem:[#allocation6 + $0x50] sm:$0xff]
    %v235 = vld [vmem:[#allocation6 + $0x58] sm:$0xff]
    %v236 = vld [vmem:[#allocation6 + $0x60] sm:$0xff]
    %v237 = vld [vmem:[#allocation6 + $0x68] sm:$0xff]
    %v238 = vld [vmem:[#allocation6 + $0x70] sm:$0xff]
    %v239 = vld [vmem:[#allocation6 + $0x78] sm:$0xff]
    %v240 = vld [vmem:[#allocation6 + $0x80] sm:$0xff]
    %v241 = vld [vmem:[#allocation6 + $0x88] sm:$0xff]
    %v242 = vld [vmem:[#allocation6 + $0x90] sm:$0xff]
    %v243 = vld [vmem:[#allocation6 + $0x98] sm:$0xff]
    %v244 = vld [vmem:[#allocation6 + $0xa0] sm:$0xff]
    %v245 = vld [vmem:[#allocation6 + $0xa8] sm:$0xff]
    %v246 = vld [vmem:[#allocation6 + $0xb0] sm:$0xff]
    %v247 = vld [vmem:[#allocation6 + $0xb8] sm:$0xff]
    %v248 = vld [vmem:[#allocation6 + $0xc0] sm:$0xff]
    %v249 = vld [vmem:[#allocation6 + $0xc8] sm:$0xff]
    %v250 = vld [vmem:[#allocation6 + $0xd0] sm:$0xff]
    %v251 = vld [vmem:[#allocation6 + $0xd8] sm:$0xff]
    %v252 = vld [vmem:[#allocation6 + $0xe0] sm:$0xff]
    %v253 = vld [vmem:[#allocation6 + $0xe8] sm:$0xff]
    %v254 = vld [vmem:[#allocation6 + $0xf0] sm:$0xff]
    %v255 = vld [vmem:[#allocation6 + $0xf8] sm:$0xff]
    %v256 = vld [vmem:[%s9] sm:$0x3]
    %v257 = vld [vmem:[#allocation7] sm:$0xff]
    %v258 = vld [vmem:[#allocation7 + $0x8] sm:$0xff]
    %v259 = vld [vmem:[#allocation7 + $0x10] sm:$0xff]
    %v260 = vld [vmem:[#allocation7 + $0x18] sm:$0xff]
    %v261 = vld [vmem:[#allocation7 + $0x20] sm:$0xff]
    %v262 = vld [vmem:[#allocation7 + $0x28] sm:$0xff]
    %v263 = vld [vmem:[#allocation7 + $0x30] sm:$0xff]
    %v264 = vld [vmem:[#allocation7 + $0x38] sm:$0xff]
    %v265 = vld [vmem:[#allocation7 + $0x40] sm:$0xff]
    %v266 = vld [vmem:[#allocation7 + $0x48] sm:$0xff]
    %v267 = vld [vmem:[#allocation7 + $0x50] sm:$0xff]
    %v268 = vld [vmem:[#allocation7 + $0x58] sm:$0xff]
    %v269 = vld [vmem:[#allocation7 + $0x60] sm:$0xff]
    %v270 = vld [vmem:[#allocation7 + $0x68] sm:$0xff]
    %v271 = vld [vmem:[#allocation7 + $0x70] sm:$0xff]
    %v272 = vld [vmem:[#allocation7 + $0x78] sm:$0xff]
    %v273 = vld [vmem:[#allocation7 + $0x80] sm:$0xff]
    %v274 = vld [vmem:[#allocation7 + $0x88] sm:$0xff]
    %v275 = vld [vmem:[#allocation7 + $0x90] sm:$0xff]
    %v276 = vld [vmem:[#allocation7 + $0x98] sm:$0xff]
    %v277 = vld [vmem:[#allocation7 + $0xa0] sm:$0xff]
    %v278 = vld [vmem:[#allocation7 + $0xa8] sm:$0xff]
    %v279 = vld [vmem:[#allocation7 + $0xb0] sm:$0xff]
    %v280 = vld [vmem:[#allocation7 + $0xb8] sm:$0xff]
    %v281 = vld [vmem:[#allocation7 + $0xc0] sm:$0xff]
    %v282 = vld [vmem:[#allocation7 + $0xc8] sm:$0xff]
    %v283 = vld [vmem:[#allocation7 + $0xd0] sm:$0xff]
    %v284 = vld [vmem:[#allocation7 + $0xd8] sm:$0xff]
    %v285 = vld [vmem:[#allocation7 + $0xe0] sm:$0xff]
    %v286 = vld [vmem:[#allocation7 + $0xe8] sm:$0xff]
    %v287 = vld [vmem:[#allocation7 + $0xf0] sm:$0xff]
    %v288 = vld [vmem:[#allocation7 + $0xf8] sm:$0xff]
    %v289 = vld [vmem:[%s11] sm:$0xff]
    %290 = vadd.xlane.f32.xlu0 %v156
    %v291 = vpop.xlane.xlu0 %290
    %292 = vadd.xlane.f32.xlu0 %v157
    %v293 = vpop.xlane.xlu0 %292
    %v294 = vmul.f32 %v291, %v113
    %v295 = vmul.f32 %v293, %v113
    %v296 = vsub.f32 %v156, %v294
    %v297 = vsub.f32 %v157, %v295
    %v298 = vmul.f32 %v296, %v296
    %v299 = vmul.f32 %v297, %v297
    %300 = vadd.xlane.f32.xlu0 %v298
    %v301 = vpop.xlane.xlu0 %300
    %302 = vadd.xlane.f32.xlu0 %v299
    %v303 = vpop.xlane.xlu0 %302
    %v304 = vmul.f32 %v301, %v113
    %v305 = vmul.f32 %v303, %v113
    %v306 = vadd.f32 %v304, 1e-05
    %v307 = vadd.f32 %v305, 1e-05
    %v308 = vrsqrt.pop %v306
    %v309 = vrsqrt.pop %v307
    %v310 = vmul.f32 %v296, %v308
    %v311 = vmul.f32 %v297, %v309
    %v312 = vlaneseq
    %v313 = vshrl.u32 %v312, 7
    %v314 = vsub.s32 0, %v313
    %v315 = vrot.slane %v289, %v314
    %v316 = vmul.f32 %v310, %v315
    %v317 = vmul.f32 %v311, %v315
    %v318 = vlaneseq
    %v319 = vshrl.u32 %v318, 7
    %v320 = vsub.s32 1, %v319
    %v321 = vrot.slane %v289, %v320
    %v322 = vadd.f32 %v316, %v321
    %v323 = vadd.f32 %v317, %v321
    %v325 = vlaneseq
    %v326 = vshrl.u32 %v325, 7
    %v327 = vsub.s32 0, %v326
    %v328 = vrot.slane %v207, %v327
    %v329 = vlaneseq
    %v330 = vshrl.u32 %v329, 7
    %v331 = vsub.s32 1, %v330
    %v332 = vrot.slane %v207, %v331
    %v333 = vlaneseq
    %v334 = vshrl.u32 %v333, 7
    %v335 = vsub.s32 2, %v334
    %v336 = vrot.slane %v207, %v335
    %340 = vmatprep.subr.mxu0 %v160
    %341 = vmatpush1.msra.mxu0 %v159
    %342 = vmatprep.subr.mxu0 %v163
    %343 = vmatpush1.msra.mxu0 %v162
    %344 = vmatprep.subr.mxu0 %v166
    %345 = vmatpush1.msra.mxu0 %v165
    %346 = vmatprep.subr.mxu0 %v169
    %347 = vmatpush1.msra.mxu0 %v168
    %348 = vmatprep.subr.mxu0 %v172
    %349 = vmatpush1.msra.mxu0 %v171
    %350 = vmatprep.subr.mxu0 %v175
    %351 = vmatpush1.msra.mxu0 %v174
    %352 = vmatprep.subr.mxu0 %v178
    %353 = vmatpush1.msra.mxu0 %v177
    %354 = vmatprep.subr.mxu0 %v181
    %355 = vmatpush1.msra.mxu0 %v180
    %356 = vmatprep.subr.mxu0 %v184
    %357 = vmatpush1.msra.mxu0 %v183
    %358 = vmatprep.subr.mxu0 %v187
    %359 = vmatpush1.msra.mxu0 %v186
    %360 = vmatprep.subr.mxu0 %v190
    %361 = vmatpush1.msra.mxu0 %v189
    %362 = vmatprep.subr.mxu0 %v193
    %363 = vmatpush1.msra.mxu0 %v192
    %364 = vmatprep.subr.mxu0 %v196
    %365 = vmatpush1.msra.mxu0 %v195
    %366 = vmatprep.subr.mxu0 %v199
    %367 = vmatpush1.msra.mxu0 %v198
    %368 = vmatprep.subr.mxu0 %v202
    %369 = vmatpush1.msra.mxu0 %v201
    %370 = vmatprep.subr.mxu0 %v205
    %371 = vmatpush1.msra.mxu0 %v204
    %372 = vmatprep.subr.mxu0 0.0
    %373 = vmatpush1.msra.mxu0 0.0
    %374 = vmatprep.subr.mxu0 0.0
    %375 = vmatpush1.msra.mxu0 0.0
    %376 = vmatprep.subr.mxu0 0.0
    %377 = vmatpush1.msra.mxu0 0.0
    %378 = vmatprep.subr.mxu0 0.0
    %379 = vmatpush1.msra.mxu0 0.0
    %380 = vmatprep.subr.mxu0 0.0
    %381 = vmatpush1.msra.mxu0 0.0
    %382 = vmatprep.subr.mxu0 0.0
    %383 = vmatpush1.msra.mxu0 0.0
    %384 = vmatprep.subr.mxu0 0.0
    %385 = vmatpush1.msra.mxu0 0.0
    %386 = vmatprep.subr.mxu0 0.0
    %387 = vmatpush1.msra.mxu0 0.0
    %388 = vmatprep.subr.mxu0 0.0
    %389 = vmatpush1.msra.mxu0 0.0
    %390 = vmatprep.subr.mxu0 0.0
    %391 = vmatpush1.msra.mxu0 0.0
    %392 = vmatprep.subr.mxu0 0.0
    %393 = vmatpush1.msra.mxu0 0.0
    %394 = vmatprep.subr.mxu0 0.0
    %395 = vmatpush1.msra.mxu0 0.0
    %396 = vmatprep.subr.mxu0 0.0
    %397 = vmatpush1.msra.mxu0 0.0
    %398 = vmatprep.subr.mxu0 0.0
    %399 = vmatpush1.msra.mxu0 0.0
    %400 = vmatprep.subr.mxu0 0.0
    %401 = vmatpush1.msra.mxu0 0.0
    %402 = vmatprep.subr.mxu0 0.0
    %403 = vmatpush1.msra.mxu0 0.0
    %404 = vmatprep.mubr.f32.mxu0 0.0
    %405 = vmatmul.mubr.f32.gmra.mrb[0].mxu0 %v322
    %v406 = vpop.f32.mrb[0].mxu0
    %v407 = vadd.f32 %v328, %v406
    %v408 = vpop.f32.mrb[0].mxu0
    %v409 = vadd.f32 %v332, %v408
    %410 = vmatprep.mubr.f32.mxu0 0.0
    %411 = vmatmul.mubr.f32.gmra.mrb[0].mxu0 %v323
    %v412 = vpop.f32.mrb[0].mxu0
    %v413 = vadd.f32 %v328, %v412
    %v414 = vpop.f32.mrb[0].mxu0
    %v415 = vadd.f32 %v332, %v414
    %416 = vdwg.mxu0
    %417 = vmatprep.subr.mxu0 0.0
    %418 = vmatpush1.msra.mxu0 %v161
    %419 = vmatprep.subr.mxu0 0.0
    %420 = vmatpush1.msra.mxu0 %v164
    %421 = vmatprep.subr.mxu0 0.0
    %422 = vmatpush1.msra.mxu0 %v167
    %423 = vmatprep.subr.mxu0 0.0
    %424 = vmatpush1.msra.mxu0 %v170
    %425 = vmatprep.subr.mxu0 0.0
    %426 = vmatpush1.msra.mxu0 %v173
    %427 = vmatprep.subr.mxu0 0.0
    %428 = vmatpush1.msra.mxu0 %v176
    %429 = vmatprep.subr.mxu0 0.0
    %430 = vmatpush1.msra.mxu0 %v179
    %431 = vmatprep.subr.mxu0 0.0
    %432 = vmatpush1.msra.mxu0 %v182
    %433 = vmatprep.subr.mxu0 0.0
    %434 = vmatpush1.msra.mxu0 %v185
    %435 = vmatprep.subr.mxu0 0.0
    %436 = vmatpush1.msra.mxu0 %v188
    %437 = vmatprep.subr.mxu0 0.0
    %438 = vmatpush1.msra.mxu0 %v191
    %439 = vmatprep.subr.mxu0 0.0
    %440 = vmatpush1.msra.mxu0 %v194
    %441 = vmatprep.subr.mxu0 0.0
    %442 = vmatpush1.msra.mxu0 %v197
    %443 = vmatprep.subr.mxu0 0.0
    %444 = vmatpush1.msra.mxu0 %v200
    %445 = vmatprep.subr.mxu0 0.0
    %446 = vmatpush1.msra.mxu0 %v203
    %447 = vmatprep.subr.mxu0 0.0
    %448 = vmatpush1.msra.mxu0 %v206
    %449 = vmatprep.subr.mxu0 0.0
    %450 = vmatpush1.msra.mxu0 0.0
    %451 = vmatprep.subr.mxu0 0.0
    %452 = vmatpush1.msra.mxu0 0.0
    %453 = vmatprep.subr.mxu0 0.0
    %454 = vmatpush1.msra.mxu0 0.0
    %455 = vmatprep.subr.mxu0 0.0
    %456 = vmatpush1.msra.mxu0 0.0
    %457 = vmatprep.subr.mxu0 0.0
    %458 = vmatpush1.msra.mxu0 0.0
    %459 = vmatprep.subr.mxu0 0.0
    %460 = vmatpush1.msra.mxu0 0.0
    %461 = vmatprep.subr.mxu0 0.0
    %462 = vmatpush1.msra.mxu0 0.0
    %463 = vmatprep.subr.mxu0 0.0
    %464 = vmatpush1.msra.mxu0 0.0
    %465 = vmatprep.subr.mxu0 0.0
    %466 = vmatpush1.msra.mxu0 0.0
    %467 = vmatprep.subr.mxu0 0.0
    %468 = vmatpush1.msra.mxu0 0.0
    %469 = vmatprep.subr.mxu0 0.0
    %470 = vmatpush1.msra.mxu0 0.0
    %471 = vmatprep.subr.mxu0 0.0
    %472 = vmatpush1.msra.mxu0 0.0
    %473 = vmatprep.subr.mxu0 0.0
    %474 = vmatpush1.msra.mxu0 0.0
    %475 = vmatprep.subr.mxu0 0.0
    %476 = vmatpush1.msra.mxu0 0.0
    %477 = vmatprep.subr.mxu0 0.0
    %478 = vmatpush1.msra.mxu0 0.0
    %479 = vmatprep.subr.mxu0 0.0
    %480 = vmatpush1.msra.mxu0 0.0
    %481 = vmatprep.mubr.f32.mxu0 0.0
    %482 = vmatmul.mubr.f32.gmra.mrb[0].mxu0 %v322
    %v483 = vpop.f32.mrb[0].mxu0
    %v484 = vadd.f32 %v336, %v483
    %v485 = vpop.f32.mrb[0].mxu0
    %486 = vmatprep.mubr.f32.mxu0 0.0
    %487 = vmatmul.mubr.f32.gmra.mrb[0].mxu0 %v323
    %v488 = vpop.f32.mrb[0].mxu0
    %v489 = vadd.f32 %v336, %v488
    %v490 = vpop.f32.mrb[0].mxu0
    %491 = vdwg.mxu0
    %v492 = vlaneseq
    %v493 = vshrl.u32 %v492, 7
    %v494 = vsub.s32 0, %v493
    %v495 = vrot.slane %v158, %v494
    %vm496 = vcmask 261120
    %v498 = vsel %vm496, %v407, 0
    %v501 = vsel %vm496, %v409, 0
    %503 = vmatprep.subr.mxu0 0.0
    %504 = vmatpush1.xpose.msra.mxu0 %v501
    %505 = vmatprep.subr.mxu0 0.0
    %506 = vmatpush1.xpose.msra.mxu0 0.0
    %507 = vmatprep.subr.mxu0 0.0
    %508 = vmatpush1.xpose.msra.mxu0 0.0
    %509 = vmatprep.subr.mxu0 0.0
    %510 = vmatpush1.xpose.msra.mxu0 0.0
    %511 = vmatprep.subr.mxu0 0.0
    %512 = vmatpush1.xpose.msra.mxu0 0.0
    %513 = vmatprep.subr.mxu0 0.0
    %514 = vmatpush1.xpose.msra.mxu0 0.0
    %515 = vmatprep.subr.mxu0 0.0
    %516 = vmatpush1.xpose.msra.mxu0 0.0
    %517 = vmatprep.subr.mxu0 0.0
    %518 = vmatpush1.xpose.msra.mxu0 0.0
    %519 = vmatprep.subr.mxu0 0.0
    %520 = vmatpush1.xpose.msra.mxu0 0.0
    %521 = vmatprep.subr.mxu0 0.0
    %522 = vmatpush1.xpose.msra.mxu0 0.0
    %523 = vmatprep.subr.mxu0 0.0
    %524 = vmatpush1.xpose.msra.mxu0 0.0
    %525 = vmatprep.subr.mxu0 0.0
    %526 = vmatpush1.xpose.msra.mxu0 0.0
    %527 = vmatprep.subr.mxu0 0.0
    %528 = vmatpush1.xpose.msra.mxu0 0.0
    %529 = vmatprep.subr.mxu0 0.0
    %530 = vmatpush1.xpose.msra.mxu0 0.0
    %531 = vmatprep.subr.mxu0 0.0
    %532 = vmatpush1.xpose.msra.mxu0 0.0
    %533 = vmatprep.subr.mxu0 0.0
    %534 = vmatpush1.xpose.msra.mxu0 0.0
    %535 = vmatprep.subr.mxu0 0.0
    %536 = vmatpush1.xpose.msra.mxu0 0.0
    %537 = vmatprep.subr.mxu0 0.0
    %538 = vmatpush1.xpose.msra.mxu0 0.0
    %539 = vmatprep.subr.mxu0 0.0
    %540 = vmatpush1.xpose.msra.mxu0 0.0
    %541 = vmatprep.subr.mxu0 0.0
    %542 = vmatpush1.xpose.msra.mxu0 0.0
    %543 = vmatprep.subr.mxu0 0.0
    %544 = vmatpush1.xpose.msra.mxu0 0.0
    %545 = vmatprep.subr.mxu0 0.0
    %546 = vmatpush1.xpose.msra.mxu0 0.0
    %547 = vmatprep.subr.mxu0 0.0
    %548 = vmatpush1.xpose.msra.mxu0 0.0
    %549 = vmatprep.subr.mxu0 0.0
    %550 = vmatpush1.xpose.msra.mxu0 0.0
    %551 = vmatprep.subr.mxu0 0.0
    %552 = vmatpush1.xpose.msra.mxu0 0.0
    %553 = vmatprep.subr.mxu0 0.0
    %554 = vmatpush1.xpose.msra.mxu0 0.0
    %555 = vmatprep.subr.mxu0 0.0
    %556 = vmatpush1.xpose.msra.mxu0 0.0
    %557 = vmatprep.subr.mxu0 0.0
    %558 = vmatpush1.xpose.msra.mxu0 0.0
    %559 = vmatprep.subr.mxu0 0.0
    %560 = vmatpush1.xpose.msra.mxu0 0.0
    %561 = vmatprep.subr.mxu0 0.0
    %562 = vmatpush1.xpose.msra.mxu0 0.0
    %563 = vmatprep.subr.mxu0 0.0
    %564 = vmatpush1.xpose.msra.mxu0 0.0
    %565 = vmatprep.subr.mxu0 0.0
    %566 = vmatpush1.xpose.msra.mxu0 0.0
    %567 = vmatprep.mubr.f32.mxu0 0.0
    %568 = vmatmul.mubr.f32.gmra.mrb[0].mxu0 %v498
    %v569 = vpop.f32.mrb[0].mxu0
    %v570 = vadd.f32 %v495, %v569
    %v571 = vpop.f32.mrb[0].mxu0
    %572 = vdwg.mxu0
    %vm573 = vcmask 64512
    %v574 = vsel %vm573, %v570, -inf
    %575 = vmax.xlane.f32.xlu0 %v574
    %v576 = vpop.xlane.xlu0 %575
    %v577 = vsub.f32 %v570, %v576
    %v578 = vmul.f32 %v577, 1.442695
    %v579 = vpow.pop %v578
    %v580 = vsel %vm573, %v579, 0.0
    %581 = vadd.xlane.f32.xlu0 %v580
    %v582 = vpop.xlane.xlu0 %581
    %v583 = vrcp.pop %v582
    %v584 = vmul.f32 %v579, %v583
    %v586 = vsel %vm573, %v584, 0
    %588 = vmatprep.subr.mxu0 0.0
    %589 = vmatpush1.msra.mxu0 %v484
    %590 = vmatprep.subr.mxu0 0.0
    %591 = vmatpush1.msra.mxu0 0.0
    %592 = vmatprep.subr.mxu0 0.0
    %593 = vmatpush1.msra.mxu0 0.0
    %594 = vmatprep.subr.mxu0 0.0
    %595 = vmatpush1.msra.mxu0 0.0
    %596 = vmatprep.subr.mxu0 0.0
    %597 = vmatpush1.msra.mxu0 0.0
    %598 = vmatprep.subr.mxu0 0.0
    %599 = vmatpush1.msra.mxu0 0.0
    %600 = vmatprep.subr.mxu0 0.0
    %601 = vmatpush1.msra.mxu0 0.0
    %602 = vmatprep.subr.mxu0 0.0
    %603 = vmatpush1.msra.mxu0 0.0
    %604 = vmatprep.subr.mxu0 0.0
    %605 = vmatpush1.msra.mxu0 0.0
    %606 = vmatprep.subr.mxu0 0.0
    %607 = vmatpush1.msra.mxu0 0.0
    %608 = vmatprep.subr.mxu0 0.0
    %609 = vmatpush1.msra.mxu0 0.0
    %610 = vmatprep.subr.mxu0 0.0
    %611 = vmatpush1.msra.mxu0 0.0
    %612 = vmatprep.subr.mxu0 0.0
    %613 = vmatpush1.msra.mxu0 0.0
    %614 = vmatprep.subr.mxu0 0.0
    %615 = vmatpush1.msra.mxu0 0.0
    %616 = vmatprep.subr.mxu0 0.0
    %617 = vmatpush1.msra.mxu0 0.0
    %618 = vmatprep.subr.mxu0 0.0
    %619 = vmatpush1.msra.mxu0 0.0
    %620 = vmatprep.subr.mxu0 0.0
    %621 = vmatpush1.msra.mxu0 0.0
    %622 = vmatprep.subr.mxu0 0.0
    %623 = vmatpush1.msra.mxu0 0.0
    %624 = vmatprep.subr.mxu0 0.0
    %625 = vmatpush1.msra.mxu0 0.0
    %626 = vmatprep.subr.mxu0 0.0
    %627 = vmatpush1.msra.mxu0 0.0
    %628 = vmatprep.subr.mxu0 0.0
    %629 = vmatpush1.msra.mxu0 0.0
    %630 = vmatprep.subr.mxu0 0.0
    %631 = vmatpush1.msra.mxu0 0.0
    %632 = vmatprep.subr.mxu0 0.0
    %633 = vmatpush1.msra.mxu0 0.0
    %634 = vmatprep.subr.mxu0 0.0
    %635 = vmatpush1.msra.mxu0 0.0
    %636 = vmatprep.subr.mxu0 0.0
    %637 = vmatpush1.msra.mxu0 0.0
    %638 = vmatprep.subr.mxu0 0.0
    %639 = vmatpush1.msra.mxu0 0.0
    %640 = vmatprep.subr.mxu0 0.0
    %641 = vmatpush1.msra.mxu0 0.0
    %642 = vmatprep.subr.mxu0 0.0
    %643 = vmatpush1.msra.mxu0 0.0
    %644 = vmatprep.subr.mxu0 0.0
    %645 = vmatpush1.msra.mxu0 0.0
    %646 = vmatprep.subr.mxu0 0.0
    %647 = vmatpush1.msra.mxu0 0.0
    %648 = vmatprep.subr.mxu0 0.0
    %649 = vmatpush1.msra.mxu0 0.0
    %650 = vmatprep.subr.mxu0 0.0
    %651 = vmatpush1.msra.mxu0 0.0
    %652 = vmatprep.mubr.f32.mxu0 0.0
    %653 = vmatmul.mubr.f32.gmra.mrb[0].mxu0 %v586
    %v654 = vpop.f32.mrb[0].mxu0
    %v655 = vadd.f32 0.0, %v654
    %v656 = vpop.f32.mrb[0].mxu0
    %657 = vdwg.mxu0
    %658 = vrot.lane.b32.xlu0 %v407, 96
    %v659 = vpop.permute.xlu0 %658
    %660 = vrot.lane.b32.xlu0 %v409, 96
    %v661 = vpop.permute.xlu0 %660
    %v662 = vsel %vm496, %v659, 0
    %v664 = vsel %vm496, %v661, 0
    %666 = vmatprep.subr.mxu0 0.0
    %667 = vmatpush1.xpose.msra.mxu0 %v664
    %668 = vmatprep.subr.mxu0 0.0
    %669 = vmatpush1.xpose.msra.mxu0 0.0
    %670 = vmatprep.subr.mxu0 0.0
    %671 = vmatpush1.xpose.msra.mxu0 0.0
    %672 = vmatprep.subr.mxu0 0.0
    %673 = vmatpush1.xpose.msra.mxu0 0.0
    %674 = vmatprep.subr.mxu0 0.0
    %675 = vmatpush1.xpose.msra.mxu0 0.0
    %676 = vmatprep.subr.mxu0 0.0
    %677 = vmatpush1.xpose.msra.mxu0 0.0
    %678 = vmatprep.subr.mxu0 0.0
    %679 = vmatpush1.xpose.msra.mxu0 0.0
    %680 = vmatprep.subr.mxu0 0.0
    %681 = vmatpush1.xpose.msra.mxu0 0.0
    %682 = vmatprep.subr.mxu0 0.0
    %683 = vmatpush1.xpose.msra.mxu0 0.0
    %684 = vmatprep.subr.mxu0 0.0
    %685 = vmatpush1.xpose.msra.mxu0 0.0
    %686 = vmatprep.subr.mxu0 0.0
    %687 = vmatpush1.xpose.msra.mxu0 0.0
    %688 = vmatprep.subr.mxu0 0.0
    %689 = vmatpush1.xpose.msra.mxu0 0.0
    %690 = vmatprep.subr.mxu0 0.0
    %691 = vmatpush1.xpose.msra.mxu0 0.0
    %692 = vmatprep.subr.mxu0 0.0
    %693 = vmatpush1.xpose.msra.mxu0 0.0
    %694 = vmatprep.subr.mxu0 0.0
    %695 = vmatpush1.xpose.msra.mxu0 0.0
    %696 = vmatprep.subr.mxu0 0.0
    %697 = vmatpush1.xpose.msra.mxu0 0.0
    %698 = vmatprep.subr.mxu0 0.0
    %699 = vmatpush1.xpose.msra.mxu0 0.0
    %700 = vmatprep.subr.mxu0 0.0
    %701 = vmatpush1.xpose.msra.mxu0 0.0
    %702 = vmatprep.subr.mxu0 0.0
    %703 = vmatpush1.xpose.msra.mxu0 0.0
    %704 = vmatprep.subr.mxu0 0.0
    %705 = vmatpush1.xpose.msra.mxu0 0.0
    %706 = vmatprep.subr.mxu0 0.0
    %707 = vmatpush1.xpose.msra.mxu0 0.0
    %708 = vmatprep.subr.mxu0 0.0
    %709 = vmatpush1.xpose.msra.mxu0 0.0
    %710 = vmatprep.subr.mxu0 0.0
    %711 = vmatpush1.xpose.msra.mxu0 0.0
    %712 = vmatprep.subr.mxu0 0.0
    %713 = vmatpush1.xpose.msra.mxu0 0.0
    %714 = vmatprep.subr.mxu0 0.0
    %715 = vmatpush1.xpose.msra.mxu0 0.0
    %716 = vmatprep.subr.mxu0 0.0
    %717 = vmatpush1.xpose.msra.mxu0 0.0
    %718 = vmatprep.subr.mxu0 0.0
    %719 = vmatpush1.xpose.msra.mxu0 0.0
    %720 = vmatprep.subr.mxu0 0.0
    %721 = vmatpush1.xpose.msra.mxu0 0.0
    %722 = vmatprep.subr.mxu0 0.0
    %723 = vmatpush1.xpose.msra.mxu0 0.0
    %724 = vmatprep.subr.mxu0 0.0
    %725 = vmatpush1.xpose.msra.mxu0 0.0
    %726 = vmatprep.subr.mxu0 0.0
    %727 = vmatpush1.xpose.msra.mxu0 0.0
    %728 = vmatprep.subr.mxu0 0.0
    %729 = vmatpush1.xpose.msra.mxu0 0.0
    %730 = vmatprep.mubr.f32.mxu0 0.0
    %731 = vmatmul.mubr.f32.gmra.mrb[0].mxu0 %v662
    %v732 = vpop.f32.mrb[0].mxu0
    %v733 = vadd.f32 %v495, %v732
    %v734 = vpop.f32.mrb[0].mxu0
    %735 = vdwg.mxu0
    %v736 = vsel %vm573, %v733, -inf
    %737 = vmax.xlane.f32.xlu0 %v736
    %v738 = vpop.xlane.xlu0 %737
    %v739 = vsub.f32 %v733, %v738
    %v740 = vmul.f32 %v739, 1.442695
    %v741 = vpow.pop %v740
    %v742 = vsel %vm573, %v741, 0.0
    %743 = vadd.xlane.f32.xlu0 %v742
    %v744 = vpop.xlane.xlu0 %743
    %v745 = vrcp.pop %v744
    %v746 = vmul.f32 %v741, %v745
    %748 = vrot.lane.b32.xlu0 %v484, 96
    %v749 = vpop.permute.xlu0 %748
    %v752 = vsel %vm573, %v746, 0
    %754 = vmatprep.subr.mxu0 0.0
    %755 = vmatpush1.msra.mxu0 %v749
    %756 = vmatprep.subr.mxu0 0.0
    %757 = vmatpush1.msra.mxu0 0.0
    %758 = vmatprep.subr.mxu0 0.0
    %759 = vmatpush1.msra.mxu0 0.0
    %760 = vmatprep.subr.mxu0 0.0
    %761 = vmatpush1.msra.mxu0 0.0
    %762 = vmatprep.subr.mxu0 0.0
    %763 = vmatpush1.msra.mxu0 0.0
    %764 = vmatprep.subr.mxu0 0.0
    %765 = vmatpush1.msra.mxu0 0.0
    %766 = vmatprep.subr.mxu0 0.0
    %767 = vmatpush1.msra.mxu0 0.0
    %768 = vmatprep.subr.mxu0 0.0
    %769 = vmatpush1.msra.mxu0 0.0
    %770 = vmatprep.subr.mxu0 0.0
    %771 = vmatpush1.msra.mxu0 0.0
    %772 = vmatprep.subr.mxu0 0.0
    %773 = vmatpush1.msra.mxu0 0.0
    %774 = vmatprep.subr.mxu0 0.0
    %775 = vmatpush1.msra.mxu0 0.0
    %776 = vmatprep.subr.mxu0 0.0
    %777 = vmatpush1.msra.mxu0 0.0
    %778 = vmatprep.subr.mxu0 0.0
    %779 = vmatpush1.msra.mxu0 0.0
    %780 = vmatprep.subr.mxu0 0.0
    %781 = vmatpush1.msra.mxu0 0.0
    %782 = vmatprep.subr.mxu0 0.0
    %783 = vmatpush1.msra.mxu0 0.0
    %784 = vmatprep.subr.mxu0 0.0
    %785 = vmatpush1.msra.mxu0 0.0
    %786 = vmatprep.subr.mxu0 0.0
    %787 = vmatpush1.msra.mxu0 0.0
    %788 = vmatprep.subr.mxu0 0.0
    %789 = vmatpush1.msra.mxu0 0.0
    %790 = vmatprep.subr.mxu0 0.0
    %791 = vmatpush1.msra.mxu0 0.0
    %792 = vmatprep.subr.mxu0 0.0
    %793 = vmatpush1.msra.mxu0 0.0
    %794 = vmatprep.subr.mxu0 0.0
    %795 = vmatpush1.msra.mxu0 0.0
    %796 = vmatprep.subr.mxu0 0.0
    %797 = vmatpush1.msra.mxu0 0.0
    %798 = vmatprep.subr.mxu0 0.0
    %799 = vmatpush1.msra.mxu0 0.0
    %800 = vmatprep.subr.mxu0 0.0
    %801 = vmatpush1.msra.mxu0 0.0
    %802 = vmatprep.subr.mxu0 0.0
    %803 = vmatpush1.msra.mxu0 0.0
    %804 = vmatprep.subr.mxu0 0.0
    %805 = vmatpush1.msra.mxu0 0.0
    %806 = vmatprep.subr.mxu0 0.0
    %807 = vmatpush1.msra.mxu0 0.0
    %808 = vmatprep.subr.mxu0 0.0
    %809 = vmatpush1.msra.mxu0 0.0
    %810 = vmatprep.subr.mxu0 0.0
    %811 = vmatpush1.msra.mxu0 0.0
    %812 = vmatprep.subr.mxu0 0.0
    %813 = vmatpush1.msra.mxu0 0.0
    %814 = vmatprep.subr.mxu0 0.0
    %815 = vmatpush1.msra.mxu0 0.0
    %816 = vmatprep.subr.mxu0 0.0
    %817 = vmatpush1.msra.mxu0 0.0
    %818 = vmatprep.mubr.f32.mxu0 0.0
    %819 = vmatmul.mubr.f32.gmra.mrb[0].mxu0 %v752
    %v820 = vpop.f32.mrb[0].mxu0
    %v821 = vadd.f32 0.0, %v820
    %v822 = vpop.f32.mrb[0].mxu0
    %823 = vdwg.mxu0
    %824 = vrot.lane.b32.xlu0 %v407, 64
    %v825 = vpop.permute.xlu0 %824
    %826 = vrot.lane.b32.xlu0 %v409, 64
    %v827 = vpop.permute.xlu0 %826
    %v828 = vsel %vm496, %v825, 0
    %v830 = vsel %vm496, %v827, 0
    %832 = vmatprep.subr.mxu0 0.0
    %833 = vmatpush1.xpose.msra.mxu0 %v830
    %834 = vmatprep.subr.mxu0 0.0
    %835 = vmatpush1.xpose.msra.mxu0 0.0
    %836 = vmatprep.subr.mxu0 0.0
    %837 = vmatpush1.xpose.msra.mxu0 0.0
    %838 = vmatprep.subr.mxu0 0.0
    %839 = vmatpush1.xpose.msra.mxu0 0.0
    %840 = vmatprep.subr.mxu0 0.0
    %841 = vmatpush1.xpose.msra.mxu0 0.0
    %842 = vmatprep.subr.mxu0 0.0
    %843 = vmatpush1.xpose.msra.mxu0 0.0
    %844 = vmatprep.subr.mxu0 0.0
    %845 = vmatpush1.xpose.msra.mxu0 0.0
    %846 = vmatprep.subr.mxu0 0.0
    %847 = vmatpush1.xpose.msra.mxu0 0.0
    %848 = vmatprep.subr.mxu0 0.0
    %849 = vmatpush1.xpose.msra.mxu0 0.0
    %850 = vmatprep.subr.mxu0 0.0
    %851 = vmatpush1.xpose.msra.mxu0 0.0
    %852 = vmatprep.subr.mxu0 0.0
    %853 = vmatpush1.xpose.msra.mxu0 0.0
    %854 = vmatprep.subr.mxu0 0.0
    %855 = vmatpush1.xpose.msra.mxu0 0.0
    %856 = vmatprep.subr.mxu0 0.0
    %857 = vmatpush1.xpose.msra.mxu0 0.0
    %858 = vmatprep.subr.mxu0 0.0
    %859 = vmatpush1.xpose.msra.mxu0 0.0
    %860 = vmatprep.subr.mxu0 0.0
    %861 = vmatpush1.xpose.msra.mxu0 0.0
    %862 = vmatprep.subr.mxu0 0.0
    %863 = vmatpush1.xpose.msra.mxu0 0.0
    %864 = vmatprep.subr.mxu0 0.0
    %865 = vmatpush1.xpose.msra.mxu0 0.0
    %866 = vmatprep.subr.mxu0 0.0
    %867 = vmatpush1.xpose.msra.mxu0 0.0
    %868 = vmatprep.subr.mxu0 0.0
    %869 = vmatpush1.xpose.msra.mxu0 0.0
    %870 = vmatprep.subr.mxu0 0.0
    %871 = vmatpush1.xpose.msra.mxu0 0.0
    %872 = vmatprep.subr.mxu0 0.0
    %873 = vmatpush1.xpose.msra.mxu0 0.0
    %874 = vmatprep.subr.mxu0 0.0
    %875 = vmatpush1.xpose.msra.mxu0 0.0
    %876 = vmatprep.subr.mxu0 0.0
    %877 = vmatpush1.xpose.msra.mxu0 0.0
    %878 = vmatprep.subr.mxu0 0.0
    %879 = vmatpush1.xpose.msra.mxu0 0.0
    %880 = vmatprep.subr.mxu0 0.0
    %881 = vmatpush1.xpose.msra.mxu0 0.0
    %882 = vmatprep.subr.mxu0 0.0
    %883 = vmatpush1.xpose.msra.mxu0 0.0
    %884 = vmatprep.subr.mxu0 0.0
    %885 = vmatpush1.xpose.msra.mxu0 0.0
    %886 = vmatprep.subr.mxu0 0.0
    %887 = vmatpush1.xpose.msra.mxu0 0.0
    %888 = vmatprep.subr.mxu0 0.0
    %889 = vmatpush1.xpose.msra.mxu0 0.0
    %890 = vmatprep.subr.mxu0 0.0
    %891 = vmatpush1.xpose.msra.mxu0 0.0
    %892 = vmatprep.subr.mxu0 0.0
    %893 = vmatpush1.xpose.msra.mxu0 0.0
    %894 = vmatprep.subr.mxu0 0.0
    %895 = vmatpush1.xpose.msra.mxu0 0.0
    %896 = vmatprep.mubr.f32.mxu0 0.0
    %897 = vmatmul.mubr.f32.gmra.mrb[0].mxu0 %v828
    %v898 = vpop.f32.mrb[0].mxu0
    %v899 = vadd.f32 %v495, %v898
    %v900 = vpop.f32.mrb[0].mxu0
    %901 = vdwg.mxu0
    %v902 = vsel %vm573, %v899, -inf
    %903 = vmax.xlane.f32.xlu0 %v902
    %v904 = vpop.xlane.xlu0 %903
    %v905 = vsub.f32 %v899, %v904
    %v906 = vmul.f32 %v905, 1.442695
    %v907 = vpow.pop %v906
    %v908 = vsel %vm573, %v907, 0.0
    %909 = vadd.xlane.f32.xlu0 %v908
    %v910 = vpop.xlane.xlu0 %909
    %v911 = vrcp.pop %v910
    %v912 = vmul.f32 %v907, %v911
    %913 = vrot.lane.b32.xlu0 %v484, 64
    %v914 = vpop.permute.xlu0 %913
    %v917 = vsel %vm573, %v912, 0
    %919 = vmatprep.subr.mxu0 0.0
    %920 = vmatpush1.msra.mxu0 %v914
    %921 = vmatprep.subr.mxu0 0.0
    %922 = vmatpush1.msra.mxu0 0.0
    %923 = vmatprep.subr.mxu0 0.0
    %924 = vmatpush1.msra.mxu0 0.0
    %925 = vmatprep.subr.mxu0 0.0
    %926 = vmatpush1.msra.mxu0 0.0
    %927 = vmatprep.subr.mxu0 0.0
    %928 = vmatpush1.msra.mxu0 0.0
    %929 = vmatprep.subr.mxu0 0.0
    %930 = vmatpush1.msra.mxu0 0.0
    %931 = vmatprep.subr.mxu0 0.0
    %932 = vmatpush1.msra.mxu0 0.0
    %933 = vmatprep.subr.mxu0 0.0
    %934 = vmatpush1.msra.mxu0 0.0
    %935 = vmatprep.subr.mxu0 0.0
    %936 = vmatpush1.msra.mxu0 0.0
    %937 = vmatprep.subr.mxu0 0.0
    %938 = vmatpush1.msra.mxu0 0.0
    %939 = vmatprep.subr.mxu0 0.0
    %940 = vmatpush1.msra.mxu0 0.0
    %941 = vmatprep.subr.mxu0 0.0
    %942 = vmatpush1.msra.mxu0 0.0
    %943 = vmatprep.subr.mxu0 0.0
    %944 = vmatpush1.msra.mxu0 0.0
    %945 = vmatprep.subr.mxu0 0.0
    %946 = vmatpush1.msra.mxu0 0.0
    %947 = vmatprep.subr.mxu0 0.0
    %948 = vmatpush1.msra.mxu0 0.0
    %949 = vmatprep.subr.mxu0 0.0
    %950 = vmatpush1.msra.mxu0 0.0
    %951 = vmatprep.subr.mxu0 0.0
    %952 = vmatpush1.msra.mxu0 0.0
    %953 = vmatprep.subr.mxu0 0.0
    %954 = vmatpush1.msra.mxu0 0.0
    %955 = vmatprep.subr.mxu0 0.0
    %956 = vmatpush1.msra.mxu0 0.0
    %957 = vmatprep.subr.mxu0 0.0
    %958 = vmatpush1.msra.mxu0 0.0
    %959 = vmatprep.subr.mxu0 0.0
    %960 = vmatpush1.msra.mxu0 0.0
    %961 = vmatprep.subr.mxu0 0.0
    %962 = vmatpush1.msra.mxu0 0.0
    %963 = vmatprep.subr.mxu0 0.0
    %964 = vmatpush1.msra.mxu0 0.0
    %965 = vmatprep.subr.mxu0 0.0
    %966 = vmatpush1.msra.mxu0 0.0
    %967 = vmatprep.subr.mxu0 0.0
    %968 = vmatpush1.msra.mxu0 0.0
    %969 = vmatprep.subr.mxu0 0.0
    %970 = vmatpush1.msra.mxu0 0.0
    %971 = vmatprep.subr.mxu0 0.0
    %972 = vmatpush1.msra.mxu0 0.0
    %973 = vmatprep.subr.mxu0 0.0
    %974 = vmatpush1.msra.mxu0 0.0
    %975 = vmatprep.subr.mxu0 0.0
    %976 = vmatpush1.msra.mxu0 0.0
    %977 = vmatprep.subr.mxu0 0.0
    %978 = vmatpush1.msra.mxu0 0.0
    %979 = vmatprep.subr.mxu0 0.0
    %980 = vmatpush1.msra.mxu0 0.0
    %981 = vmatprep.subr.mxu0 0.0
    %982 = vmatpush1.msra.mxu0 0.0
    %983 = vmatprep.mubr.f32.mxu0 0.0
    %984 = vmatmul.mubr.f32.gmra.mrb[0].mxu0 %v917
    %v985 = vpop.f32.mrb[0].mxu0
    %v986 = vadd.f32 0.0, %v985
    %v987 = vpop.f32.mrb[0].mxu0
    %988 = vdwg.mxu0
    %989 = vrot.lane.b32.xlu0 %v407, 32
    %v990 = vpop.permute.xlu0 %989
    %991 = vrot.lane.b32.xlu0 %v409, 32
    %v992 = vpop.permute.xlu0 %991
    %v993 = vsel %vm496, %v990, 0
    %v995 = vsel %vm496, %v992, 0
    %997 = vmatprep.subr.mxu0 0.0
    %998 = vmatpush1.xpose.msra.mxu0 %v995
    %999 = vmatprep.subr.mxu0 0.0
    %1000 = vmatpush1.xpose.msra.mxu0 0.0
    %1001 = vmatprep.subr.mxu0 0.0
    %1002 = vmatpush1.xpose.msra.mxu0 0.0
    %1003 = vmatprep.subr.mxu0 0.0
    %1004 = vmatpush1.xpose.msra.mxu0 0.0
    %1005 = vmatprep.subr.mxu0 0.0
    %1006 = vmatpush1.xpose.msra.mxu0 0.0
    %1007 = vmatprep.subr.mxu0 0.0
    %1008 = vmatpush1.xpose.msra.mxu0 0.0
    %1009 = vmatprep.subr.mxu0 0.0
    %1010 = vmatpush1.xpose.msra.mxu0 0.0
    %1011 = vmatprep.subr.mxu0 0.0
    %1012 = vmatpush1.xpose.msra.mxu0 0.0
    %1013 = vmatprep.subr.mxu0 0.0
    %1014 = vmatpush1.xpose.msra.mxu0 0.0
    %1015 = vmatprep.subr.mxu0 0.0
    %1016 = vmatpush1.xpose.msra.mxu0 0.0
    %1017 = vmatprep.subr.mxu0 0.0
    %1018 = vmatpush1.xpose.msra.mxu0 0.0
    %1019 = vmatprep.subr.mxu0 0.0
    %1020 = vmatpush1.xpose.msra.mxu0 0.0
    %1021 = vmatprep.subr.mxu0 0.0
    %1022 = vmatpush1.xpose.msra.mxu0 0.0
    %1023 = vmatprep.subr.mxu0 0.0
    %1024 = vmatpush1.xpose.msra.mxu0 0.0
    %1025 = vmatprep.subr.mxu0 0.0
    %1026 = vmatpush1.xpose.msra.mxu0 0.0
    %1027 = vmatprep.subr.mxu0 0.0
    %1028 = vmatpush1.xpose.msra.mxu0 0.0
    %1029 = vmatprep.subr.mxu0 0.0
    %1030 = vmatpush1.xpose.msra.mxu0 0.0
    %1031 = vmatprep.subr.mxu0 0.0
    %1032 = vmatpush1.xpose.msra.mxu0 0.0
    %1033 = vmatprep.subr.mxu0 0.0
    %1034 = vmatpush1.xpose.msra.mxu0 0.0
    %1035 = vmatprep.subr.mxu0 0.0
    %1036 = vmatpush1.xpose.msra.mxu0 0.0
    %1037 = vmatprep.subr.mxu0 0.0
    %1038 = vmatpush1.xpose.msra.mxu0 0.0
    %1039 = vmatprep.subr.mxu0 0.0
    %1040 = vmatpush1.xpose.msra.mxu0 0.0
    %1041 = vmatprep.subr.mxu0 0.0
    %1042 = vmatpush1.xpose.msra.mxu0 0.0
    %1043 = vmatprep.subr.mxu0 0.0
    %1044 = vmatpush1.xpose.msra.mxu0 0.0
    %1045 = vmatprep.subr.mxu0 0.0
    %1046 = vmatpush1.xpose.msra.mxu0 0.0
    %1047 = vmatprep.subr.mxu0 0.0
    %1048 = vmatpush1.xpose.msra.mxu0 0.0
    %1049 = vmatprep.subr.mxu0 0.0
    %1050 = vmatpush1.xpose.msra.mxu0 0.0
    %1051 = vmatprep.subr.mxu0 0.0
    %1052 = vmatpush1.xpose.msra.mxu0 0.0
    %1053 = vmatprep.subr.mxu0 0.0
    %1054 = vmatpush1.xpose.msra.mxu0 0.0
    %1055 = vmatprep.subr.mxu0 0.0
    %1056 = vmatpush1.xpose.msra.mxu0 0.0
    %1057 = vmatprep.subr.mxu0 0.0
    %1058 = vmatpush1.xpose.msra.mxu0 0.0
    %1059 = vmatprep.subr.mxu0 0.0
    %1060 = vmatpush1.xpose.msra.mxu0 0.0
    %1061 = vmatprep.mubr.f32.mxu0 0.0
    %1062 = vmatmul.mubr.f32.gmra.mrb[0].mxu0 %v993
    %v1063 = vpop.f32.mrb[0].mxu0
    %v1064 = vadd.f32 %v495, %v1063
    %v1065 = vpop.f32.mrb[0].mxu0
    %1066 = vdwg.mxu0
    %v1067 = vsel %vm573, %v1064, -inf
    %1068 = vmax.xlane.f32.xlu0 %v1067
    %v1069 = vpop.xlane.xlu0 %1068
    %v1070 = vsub.f32 %v1064, %v1069
    %v1071 = vmul.f32 %v1070, 1.442695
    %v1072 = vpow.pop %v1071
    %v1073 = vsel %vm573, %v1072, 0.0
    %1074 = vadd.xlane.f32.xlu0 %v1073
    %v1075 = vpop.xlane.xlu0 %1074
    %v1076 = vrcp.pop %v1075
    %v1077 = vmul.f32 %v1072, %v1076
    %1078 = vrot.lane.b32.xlu0 %v484, 32
    %v1079 = vpop.permute.xlu0 %1078
    %v1082 = vsel %vm573, %v1077, 0
    %1084 = vmatprep.subr.mxu0 0.0
    %1085 = vmatpush1.msra.mxu0 %v1079
    %1086 = vmatprep.subr.mxu0 0.0
    %1087 = vmatpush1.msra.mxu0 0.0
    %1088 = vmatprep.subr.mxu0 0.0
    %1089 = vmatpush1.msra.mxu0 0.0
    %1090 = vmatprep.subr.mxu0 0.0
    %1091 = vmatpush1.msra.mxu0 0.0
    %1092 = vmatprep.subr.mxu0 0.0
    %1093 = vmatpush1.msra.mxu0 0.0
    %1094 = vmatprep.subr.mxu0 0.0
    %1095 = vmatpush1.msra.mxu0 0.0
    %1096 = vmatprep.subr.mxu0 0.0
    %1097 = vmatpush1.msra.mxu0 0.0
    %1098 = vmatprep.subr.mxu0 0.0
    %1099 = vmatpush1.msra.mxu0 0.0
    %1100 = vmatprep.subr.mxu0 0.0
    %1101 = vmatpush1.msra.mxu0 0.0
    %1102 = vmatprep.subr.mxu0 0.0
    %1103 = vmatpush1.msra.mxu0 0.0
    %1104 = vmatprep.subr.mxu0 0.0
    %1105 = vmatpush1.msra.mxu0 0.0
    %1106 = vmatprep.subr.mxu0 0.0
    %1107 = vmatpush1.msra.mxu0 0.0
    %1108 = vmatprep.subr.mxu0 0.0
    %1109 = vmatpush1.msra.mxu0 0.0
    %1110 = vmatprep.subr.mxu0 0.0
    %1111 = vmatpush1.msra.mxu0 0.0
    %1112 = vmatprep.subr.mxu0 0.0
    %1113 = vmatpush1.msra.mxu0 0.0
    %1114 = vmatprep.subr.mxu0 0.0
    %1115 = vmatpush1.msra.mxu0 0.0
    %1116 = vmatprep.subr.mxu0 0.0
    %1117 = vmatpush1.msra.mxu0 0.0
    %1118 = vmatprep.subr.mxu0 0.0
    %1119 = vmatpush1.msra.mxu0 0.0
    %1120 = vmatprep.subr.mxu0 0.0
    %1121 = vmatpush1.msra.mxu0 0.0
    %1122 = vmatprep.subr.mxu0 0.0
    %1123 = vmatpush1.msra.mxu0 0.0
    %1124 = vmatprep.subr.mxu0 0.0
    %1125 = vmatpush1.msra.mxu0 0.0
    %1126 = vmatprep.subr.mxu0 0.0
    %1127 = vmatpush1.msra.mxu0 0.0
    %1128 = vmatprep.subr.mxu0 0.0
    %1129 = vmatpush1.msra.mxu0 0.0
    %1130 = vmatprep.subr.mxu0 0.0
    %1131 = vmatpush1.msra.mxu0 0.0
    %1132 = vmatprep.subr.mxu0 0.0
    %1133 = vmatpush1.msra.mxu0 0.0
    %1134 = vmatprep.subr.mxu0 0.0
    %1135 = vmatpush1.msra.mxu0 0.0
    %1136 = vmatprep.subr.mxu0 0.0
    %1137 = vmatpush1.msra.mxu0 0.0
    %1138 = vmatprep.subr.mxu0 0.0
    %1139 = vmatpush1.msra.mxu0 0.0
    %1140 = vmatprep.subr.mxu0 0.0
    %1141 = vmatpush1.msra.mxu0 0.0
    %1142 = vmatprep.subr.mxu0 0.0
    %1143 = vmatpush1.msra.mxu0 0.0
    %1144 = vmatprep.subr.mxu0 0.0
    %1145 = vmatpush1.msra.mxu0 0.0
    %1146 = vmatprep.subr.mxu0 0.0
    %1147 = vmatpush1.msra.mxu0 0.0
    %1148 = vmatprep.mubr.f32.mxu0 0.0
    %1149 = vmatmul.mubr.f32.gmra.mrb[0].mxu0 %v1082
    %v1150 = vpop.f32.mrb[0].mxu0
    %v1151 = vadd.f32 0.0, %v1150
    %v1152 = vpop.f32.mrb[0].mxu0
    %1153 = vdwg.mxu0
    %1155 = vrot.lane.b32.xlu0 %v821, 32
    %v1156 = vpop.permute.xlu0 %1155
    %1159 = vrot.lane.b32.xlu0 %v986, 64
    %v1160 = vpop.permute.xlu0 %1159
    %1163 = vrot.lane.b32.xlu0 %v1151, 96
    %v1164 = vpop.permute.xlu0 %1163
    %v1166 = vsel %vm496, %v655, %v1156
    %vm1167 = vcmask 523264
    %v1168 = vsel %vm1167, %v1166, %v1160
    %vm1169 = vcmask 785408
    %v1170 = vsel %vm1169, %v1168, %v1164
    %v1171 = vlaneseq
    %v1172 = vshrl.u32 %v1171, 7
    %v1173 = vsub.s32 1, %v1172
    %v1174 = vrot.slane %v158, %v1173
    %v1176 = vsel %vm496, %v413, 0
    %v1179 = vsel %vm496, %v415, 0
    %1181 = vmatprep.subr.mxu0 0.0
    %1182 = vmatpush1.xpose.msra.mxu0 %v1179
    %1183 = vmatprep.subr.mxu0 0.0
    %1184 = vmatpush1.xpose.msra.mxu0 0.0
    %1185 = vmatprep.subr.mxu0 0.0
    %1186 = vmatpush1.xpose.msra.mxu0 0.0
    %1187 = vmatprep.subr.mxu0 0.0
    %1188 = vmatpush1.xpose.msra.mxu0 0.0
    %1189 = vmatprep.subr.mxu0 0.0
    %1190 = vmatpush1.xpose.msra.mxu0 0.0
    %1191 = vmatprep.subr.mxu0 0.0
    %1192 = vmatpush1.xpose.msra.mxu0 0.0
    %1193 = vmatprep.subr.mxu0 0.0
    %1194 = vmatpush1.xpose.msra.mxu0 0.0
    %1195 = vmatprep.subr.mxu0 0.0
    %1196 = vmatpush1.xpose.msra.mxu0 0.0
    %1197 = vmatprep.subr.mxu0 0.0
    %1198 = vmatpush1.xpose.msra.mxu0 0.0
    %1199 = vmatprep.subr.mxu0 0.0
    %1200 = vmatpush1.xpose.msra.mxu0 0.0
    %1201 = vmatprep.subr.mxu0 0.0
    %1202 = vmatpush1.xpose.msra.mxu0 0.0
    %1203 = vmatprep.subr.mxu0 0.0
    %1204 = vmatpush1.xpose.msra.mxu0 0.0
    %1205 = vmatprep.subr.mxu0 0.0
    %1206 = vmatpush1.xpose.msra.mxu0 0.0
    %1207 = vmatprep.subr.mxu0 0.0
    %1208 = vmatpush1.xpose.msra.mxu0 0.0
    %1209 = vmatprep.subr.mxu0 0.0
    %1210 = vmatpush1.xpose.msra.mxu0 0.0
    %1211 = vmatprep.subr.mxu0 0.0
    %1212 = vmatpush1.xpose.msra.mxu0 0.0
    %1213 = vmatprep.subr.mxu0 0.0
    %1214 = vmatpush1.xpose.msra.mxu0 0.0
    %1215 = vmatprep.subr.mxu0 0.0
    %1216 = vmatpush1.xpose.msra.mxu0 0.0
    %1217 = vmatprep.subr.mxu0 0.0
    %1218 = vmatpush1.xpose.msra.mxu0 0.0
    %1219 = vmatprep.subr.mxu0 0.0
    %1220 = vmatpush1.xpose.msra.mxu0 0.0
    %1221 = vmatprep.subr.mxu0 0.0
    %1222 = vmatpush1.xpose.msra.mxu0 0.0
    %1223 = vmatprep.subr.mxu0 0.0
    %1224 = vmatpush1.xpose.msra.mxu0 0.0
    %1225 = vmatprep.subr.mxu0 0.0
    %1226 = vmatpush1.xpose.msra.mxu0 0.0
    %1227 = vmatprep.subr.mxu0 0.0
    %1228 = vmatpush1.xpose.msra.mxu0 0.0
    %1229 = vmatprep.subr.mxu0 0.0
    %1230 = vmatpush1.xpose.msra.mxu0 0.0
    %1231 = vmatprep.subr.mxu0 0.0
    %1232 = vmatpush1.xpose.msra.mxu0 0.0
    %1233 = vmatprep.subr.mxu0 0.0
    %1234 = vmatpush1.xpose.msra.mxu0 0.0
    %1235 = vmatprep.subr.mxu0 0.0
    %1236 = vmatpush1.xpose.msra.mxu0 0.0
    %1237 = vmatprep.subr.mxu0 0.0
    %1238 = vmatpush1.xpose.msra.mxu0 0.0
    %1239 = vmatprep.subr.mxu0 0.0
    %1240 = vmatpush1.xpose.msra.mxu0 0.0
    %1241 = vmatprep.subr.mxu0 0.0
    %1242 = vmatpush1.xpose.msra.mxu0 0.0
    %1243 = vmatprep.subr.mxu0 0.0
    %1244 = vmatpush1.xpose.msra.mxu0 0.0
    %1245 = vmatprep.mubr.f32.mxu0 0.0
    %1246 = vmatmul.mubr.f32.gmra.mrb[0].mxu0 %v1176
    %v1247 = vpop.f32.mrb[0].mxu0
    %v1248 = vadd.f32 %v1174, %v1247
    %v1249 = vpop.f32.mrb[0].mxu0
    %1250 = vdwg.mxu0
    %v1251 = vsel %vm573, %v1248, -inf
    %1252 = vmax.xlane.f32.xlu0 %v1251
    %v1253 = vpop.xlane.xlu0 %1252
    %v1254 = vsub.f32 %v1248, %v1253
    %v1255 = vmul.f32 %v1254, 1.442695
    %v1256 = vpow.pop %v1255
    %v1257 = vsel %vm573, %v1256, 0.0
    %1258 = vadd.xlane.f32.xlu0 %v1257
    %v1259 = vpop.xlane.xlu0 %1258
    %v1260 = vrcp.pop %v1259
    %v1261 = vmul.f32 %v1256, %v1260
    %v1263 = vsel %vm573, %v1261, 0
    %1265 = vmatprep.subr.mxu0 0.0
    %1266 = vmatpush1.msra.mxu0 %v489
    %1267 = vmatprep.subr.mxu0 0.0
    %1268 = vmatpush1.msra.mxu0 0.0
    %1269 = vmatprep.subr.mxu0 0.0
    %1270 = vmatpush1.msra.mxu0 0.0
    %1271 = vmatprep.subr.mxu0 0.0
    %1272 = vmatpush1.msra.mxu0 0.0
    %1273 = vmatprep.subr.mxu0 0.0
    %1274 = vmatpush1.msra.mxu0 0.0
    %1275 = vmatprep.subr.mxu0 0.0
    %1276 = vmatpush1.msra.mxu0 0.0
    %1277 = vmatprep.subr.mxu0 0.0
    %1278 = vmatpush1.msra.mxu0 0.0
    %1279 = vmatprep.subr.mxu0 0.0
    %1280 = vmatpush1.msra.mxu0 0.0
    %1281 = vmatprep.subr.mxu0 0.0
    %1282 = vmatpush1.msra.mxu0 0.0
    %1283 = vmatprep.subr.mxu0 0.0
    %1284 = vmatpush1.msra.mxu0 0.0
    %1285 = vmatprep.subr.mxu0 0.0
    %1286 = vmatpush1.msra.mxu0 0.0
    %1287 = vmatprep.subr.mxu0 0.0
    %1288 = vmatpush1.msra.mxu0 0.0
    %1289 = vmatprep.subr.mxu0 0.0
    %1290 = vmatpush1.msra.mxu0 0.0
    %1291 = vmatprep.subr.mxu0 0.0
    %1292 = vmatpush1.msra.mxu0 0.0
    %1293 = vmatprep.subr.mxu0 0.0
    %1294 = vmatpush1.msra.mxu0 0.0
    %1295 = vmatprep.subr.mxu0 0.0
    %1296 = vmatpush1.msra.mxu0 0.0
    %1297 = vmatprep.subr.mxu0 0.0
    %1298 = vmatpush1.msra.mxu0 0.0
    %1299 = vmatprep.subr.mxu0 0.0
    %1300 = vmatpush1.msra.mxu0 0.0
    %1301 = vmatprep.subr.mxu0 0.0
    %1302 = vmatpush1.msra.mxu0 0.0
    %1303 = vmatprep.subr.mxu0 0.0
    %1304 = vmatpush1.msra.mxu0 0.0
    %1305 = vmatprep.subr.mxu0 0.0
    %1306 = vmatpush1.msra.mxu0 0.0
    %1307 = vmatprep.subr.mxu0 0.0
    %1308 = vmatpush1.msra.mxu0 0.0
    %1309 = vmatprep.subr.mxu0 0.0
    %1310 = vmatpush1.msra.mxu0 0.0
    %1311 = vmatprep.subr.mxu0 0.0
    %1312 = vmatpush1.msra.mxu0 0.0
    %1313 = vmatprep.subr.mxu0 0.0
    %1314 = vmatpush1.msra.mxu0 0.0
    %1315 = vmatprep.subr.mxu0 0.0
    %1316 = vmatpush1.msra.mxu0 0.0
    %1317 = vmatprep.subr.mxu0 0.0
    %1318 = vmatpush1.msra.mxu0 0.0
    %1319 = vmatprep.subr.mxu0 0.0
    %1320 = vmatpush1.msra.mxu0 0.0
    %1321 = vmatprep.subr.mxu0 0.0
    %1322 = vmatpush1.msra.mxu0 0.0
    %1323 = vmatprep.subr.mxu0 0.0
    %1324 = vmatpush1.msra.mxu0 0.0
    %1325 = vmatprep.subr.mxu0 0.0
    %1326 = vmatpush1.msra.mxu0 0.0
    %1327 = vmatprep.subr.mxu0 0.0
    %1328 = vmatpush1.msra.mxu0 0.0
    %1329 = vmatprep.mubr.f32.mxu0 0.0
    %1330 = vmatmul.mubr.f32.gmra.mrb[0].mxu0 %v1263
    %v1331 = vpop.f32.mrb[0].mxu0
    %v1332 = vadd.f32 0.0, %v1331
    %v1333 = vpop.f32.mrb[0].mxu0
    %1334 = vdwg.mxu0
    %1335 = vrot.lane.b32.xlu0 %v413, 96
    %v1336 = vpop.permute.xlu0 %1335
    %1337 = vrot.lane.b32.xlu0 %v415, 96
    %v1338 = vpop.permute.xlu0 %1337
    %v1339 = vsel %vm496, %v1336, 0
    %v1341 = vsel %vm496, %v1338, 0
    %1343 = vmatprep.subr.mxu0 0.0
    %1344 = vmatpush1.xpose.msra.mxu0 %v1341
    %1345 = vmatprep.subr.mxu0 0.0
    %1346 = vmatpush1.xpose.msra.mxu0 0.0
    %1347 = vmatprep.subr.mxu0 0.0
    %1348 = vmatpush1.xpose.msra.mxu0 0.0
    %1349 = vmatprep.subr.mxu0 0.0
    %1350 = vmatpush1.xpose.msra.mxu0 0.0
    %1351 = vmatprep.subr.mxu0 0.0
    %1352 = vmatpush1.xpose.msra.mxu0 0.0
    %1353 = vmatprep.subr.mxu0 0.0
    %1354 = vmatpush1.xpose.msra.mxu0 0.0
    %1355 = vmatprep.subr.mxu0 0.0
    %1356 = vmatpush1.xpose.msra.mxu0 0.0
    %1357 = vmatprep.subr.mxu0 0.0
    %1358 = vmatpush1.xpose.msra.mxu0 0.0
    %1359 = vmatprep.subr.mxu0 0.0
    %1360 = vmatpush1.xpose.msra.mxu0 0.0
    %1361 = vmatprep.subr.mxu0 0.0
    %1362 = vmatpush1.xpose.msra.mxu0 0.0
    %1363 = vmatprep.subr.mxu0 0.0
    %1364 = vmatpush1.xpose.msra.mxu0 0.0
    %1365 = vmatprep.subr.mxu0 0.0
    %1366 = vmatpush1.xpose.msra.mxu0 0.0
    %1367 = vmatprep.subr.mxu0 0.0
    %1368 = vmatpush1.xpose.msra.mxu0 0.0
    %1369 = vmatprep.subr.mxu0 0.0
    %1370 = vmatpush1.xpose.msra.mxu0 0.0
    %1371 = vmatprep.subr.mxu0 0.0
    %1372 = vmatpush1.xpose.msra.mxu0 0.0
    %1373 = vmatprep.subr.mxu0 0.0
    %1374 = vmatpush1.xpose.msra.mxu0 0.0
    %1375 = vmatprep.subr.mxu0 0.0
    %1376 = vmatpush1.xpose.msra.mxu0 0.0
    %1377 = vmatprep.subr.mxu0 0.0
    %1378 = vmatpush1.xpose.msra.mxu0 0.0
    %1379 = vmatprep.subr.mxu0 0.0
    %1380 = vmatpush1.xpose.msra.mxu0 0.0
    %1381 = vmatprep.subr.mxu0 0.0
    %1382 = vmatpush1.xpose.msra.mxu0 0.0
    %1383 = vmatprep.subr.mxu0 0.0
    %1384 = vmatpush1.xpose.msra.mxu0 0.0
    %1385 = vmatprep.subr.mxu0 0.0
    %1386 = vmatpush1.xpose.msra.mxu0 0.0
    %1387 = vmatprep.subr.mxu0 0.0
    %1388 = vmatpush1.xpose.msra.mxu0 0.0
    %1389 = vmatprep.subr.mxu0 0.0
    %1390 = vmatpush1.xpose.msra.mxu0 0.0
    %1391 = vmatprep.subr.mxu0 0.0
    %1392 = vmatpush1.xpose.msra.mxu0 0.0
    %1393 = vmatprep.subr.mxu0 0.0
    %1394 = vmatpush1.xpose.msra.mxu0 0.0
    %1395 = vmatprep.subr.mxu0 0.0
    %1396 = vmatpush1.xpose.msra.mxu0 0.0
    %1397 = vmatprep.subr.mxu0 0.0
    %1398 = vmatpush1.xpose.msra.mxu0 0.0
    %1399 = vmatprep.subr.mxu0 0.0
    %1400 = vmatpush1.xpose.msra.mxu0 0.0
    %1401 = vmatprep.subr.mxu0 0.0
    %1402 = vmatpush1.xpose.msra.mxu0 0.0
    %1403 = vmatprep.subr.mxu0 0.0
    %1404 = vmatpush1.xpose.msra.mxu0 0.0
    %1405 = vmatprep.subr.mxu0 0.0
    %1406 = vmatpush1.xpose.msra.mxu0 0.0
    %1407 = vmatprep.mubr.f32.mxu0 0.0
    %1408 = vmatmul.mubr.f32.gmra.mrb[0].mxu0 %v1339
    %v1409 = vpop.f32.mrb[0].mxu0
    %v1410 = vadd.f32 %v1174, %v1409
    %v1411 = vpop.f32.mrb[0].mxu0
    %1412 = vdwg.mxu0
    %v1413 = vsel %vm573, %v1410, -inf
    %1414 = vmax.xlane.f32.xlu0 %v1413
    %v1415 = vpop.xlane.xlu0 %1414
    %v1416 = vsub.f32 %v1410, %v1415
    %v1417 = vmul.f32 %v1416, 1.442695
    %v1418 = vpow.pop %v1417
    %v1419 = vsel %vm573, %v1418, 0.0
    %1420 = vadd.xlane.f32.xlu0 %v1419
    %v1421 = vpop.xlane.xlu0 %1420
    %v1422 = vrcp.pop %v1421
    %v1423 = vmul.f32 %v1418, %v1422
    %1425 = vrot.lane.b32.xlu0 %v489, 96
    %v1426 = vpop.permute.xlu0 %1425
    %v1429 = vsel %vm573, %v1423, 0
    %1431 = vmatprep.subr.mxu0 0.0
    %1432 = vmatpush1.msra.mxu0 %v1426
    %1433 = vmatprep.subr.mxu0 0.0
    %1434 = vmatpush1.msra.mxu0 0.0
    %1435 = vmatprep.subr.mxu0 0.0
    %1436 = vmatpush1.msra.mxu0 0.0
    %1437 = vmatprep.subr.mxu0 0.0
    %1438 = vmatpush1.msra.mxu0 0.0
    %1439 = vmatprep.subr.mxu0 0.0
    %1440 = vmatpush1.msra.mxu0 0.0
    %1441 = vmatprep.subr.mxu0 0.0
    %1442 = vmatpush1.msra.mxu0 0.0
    %1443 = vmatprep.subr.mxu0 0.0
    %1444 = vmatpush1.msra.mxu0 0.0
    %1445 = vmatprep.subr.mxu0 0.0
    %1446 = vmatpush1.msra.mxu0 0.0
    %1447 = vmatprep.subr.mxu0 0.0
    %1448 = vmatpush1.msra.mxu0 0.0
    %1449 = vmatprep.subr.mxu0 0.0
    %1450 = vmatpush1.msra.mxu0 0.0
    %1451 = vmatprep.subr.mxu0 0.0
    %1452 = vmatpush1.msra.mxu0 0.0
    %1453 = vmatprep.subr.mxu0 0.0
    %1454 = vmatpush1.msra.mxu0 0.0
    %1455 = vmatprep.subr.mxu0 0.0
    %1456 = vmatpush1.msra.mxu0 0.0
    %1457 = vmatprep.subr.mxu0 0.0
    %1458 = vmatpush1.msra.mxu0 0.0
    %1459 = vmatprep.subr.mxu0 0.0
    %1460 = vmatpush1.msra.mxu0 0.0
    %1461 = vmatprep.subr.mxu0 0.0
    %1462 = vmatpush1.msra.mxu0 0.0
    %1463 = vmatprep.subr.mxu0 0.0
    %1464 = vmatpush1.msra.mxu0 0.0
    %1465 = vmatprep.subr.mxu0 0.0
    %1466 = vmatpush1.msra.mxu0 0.0
    %1467 = vmatprep.subr.mxu0 0.0
    %1468 = vmatpush1.msra.mxu0 0.0
    %1469 = vmatprep.subr.mxu0 0.0
    %1470 = vmatpush1.msra.mxu0 0.0
    %1471 = vmatprep.subr.mxu0 0.0
    %1472 = vmatpush1.msra.mxu0 0.0
    %1473 = vmatprep.subr.mxu0 0.0
    %1474 = vmatpush1.msra.mxu0 0.0
    %1475 = vmatprep.subr.mxu0 0.0
    %1476 = vmatpush1.msra.mxu0 0.0
    %1477 = vmatprep.subr.mxu0 0.0
    %1478 = vmatpush1.msra.mxu0 0.0
    %1479 = vmatprep.subr.mxu0 0.0
    %1480 = vmatpush1.msra.mxu0 0.0
    %1481 = vmatprep.subr.mxu0 0.0
    %1482 = vmatpush1.msra.mxu0 0.0
    %1483 = vmatprep.subr.mxu0 0.0
    %1484 = vmatpush1.msra.mxu0 0.0
    %1485 = vmatprep.subr.mxu0 0.0
    %1486 = vmatpush1.msra.mxu0 0.0
    %1487 = vmatprep.subr.mxu0 0.0
    %1488 = vmatpush1.msra.mxu0 0.0
    %1489 = vmatprep.subr.mxu0 0.0
    %1490 = vmatpush1.msra.mxu0 0.0
    %1491 = vmatprep.subr.mxu0 0.0
    %1492 = vmatpush1.msra.mxu0 0.0
    %1493 = vmatprep.subr.mxu0 0.0
    %1494 = vmatpush1.msra.mxu0 0.0
    %1495 = vmatprep.mubr.f32.mxu0 0.0
    %1496 = vmatmul.mubr.f32.gmra.mrb[0].mxu0 %v1429
    %v1497 = vpop.f32.mrb[0].mxu0
    %v1498 = vadd.f32 0.0, %v1497
    %v1499 = vpop.f32.mrb[0].mxu0
    %1500 = vdwg.mxu0
    %1501 = vrot.lane.b32.xlu0 %v413, 64
    %v1502 = vpop.permute.xlu0 %1501
    %1503 = vrot.lane.b32.xlu0 %v415, 64
    %v1504 = vpop.permute.xlu0 %1503
    %v1505 = vsel %vm496, %v1502, 0
    %v1507 = vsel %vm496, %v1504, 0
    %1509 = vmatprep.subr.mxu0 0.0
    %1510 = vmatpush1.xpose.msra.mxu0 %v1507
    %1511 = vmatprep.subr.mxu0 0.0
    %1512 = vmatpush1.xpose.msra.mxu0 0.0
    %1513 = vmatprep.subr.mxu0 0.0
    %1514 = vmatpush1.xpose.msra.mxu0 0.0
    %1515 = vmatprep.subr.mxu0 0.0
    %1516 = vmatpush1.xpose.msra.mxu0 0.0
    %1517 = vmatprep.subr.mxu0 0.0
    %1518 = vmatpush1.xpose.msra.mxu0 0.0
    %1519 = vmatprep.subr.mxu0 0.0
    %1520 = vmatpush1.xpose.msra.mxu0 0.0
    %1521 = vmatprep.subr.mxu0 0.0
    %1522 = vmatpush1.xpose.msra.mxu0 0.0
    %1523 = vmatprep.subr.mxu0 0.0
    %1524 = vmatpush1.xpose.msra.mxu0 0.0
    %1525 = vmatprep.subr.mxu0 0.0
    %1526 = vmatpush1.xpose.msra.mxu0 0.0
    %1527 = vmatprep.subr.mxu0 0.0
    %1528 = vmatpush1.xpose.msra.mxu0 0.0
    %1529 = vmatprep.subr.mxu0 0.0
    %1530 = vmatpush1.xpose.msra.mxu0 0.0
    %1531 = vmatprep.subr.mxu0 0.0
    %1532 = vmatpush1.xpose.msra.mxu0 0.0
    %1533 = vmatprep.subr.mxu0 0.0
    %1534 = vmatpush1.xpose.msra.mxu0 0.0
    %1535 = vmatprep.subr.mxu0 0.0
    %1536 = vmatpush1.xpose.msra.mxu0 0.0
    %1537 = vmatprep.subr.mxu0 0.0
    %1538 = vmatpush1.xpose.msra.mxu0 0.0
    %1539 = vmatprep.subr.mxu0 0.0
    %1540 = vmatpush1.xpose.msra.mxu0 0.0
    %1541 = vmatprep.subr.mxu0 0.0
    %1542 = vmatpush1.xpose.msra.mxu0 0.0
    %1543 = vmatprep.subr.mxu0 0.0
    %1544 = vmatpush1.xpose.msra.mxu0 0.0
    %1545 = vmatprep.subr.mxu0 0.0
    %1546 = vmatpush1.xpose.msra.mxu0 0.0
    %1547 = vmatprep.subr.mxu0 0.0
    %1548 = vmatpush1.xpose.msra.mxu0 0.0
    %1549 = vmatprep.subr.mxu0 0.0
    %1550 = vmatpush1.xpose.msra.mxu0 0.0
    %1551 = vmatprep.subr.mxu0 0.0
    %1552 = vmatpush1.xpose.msra.mxu0 0.0
    %1553 = vmatprep.subr.mxu0 0.0
    %1554 = vmatpush1.xpose.msra.mxu0 0.0
    %1555 = vmatprep.subr.mxu0 0.0
    %1556 = vmatpush1.xpose.msra.mxu0 0.0
    %1557 = vmatprep.subr.mxu0 0.0
    %1558 = vmatpush1.xpose.msra.mxu0 0.0
    %1559 = vmatprep.subr.mxu0 0.0
    %1560 = vmatpush1.xpose.msra.mxu0 0.0
    %1561 = vmatprep.subr.mxu0 0.0
    %1562 = vmatpush1.xpose.msra.mxu0 0.0
    %1563 = vmatprep.subr.mxu0 0.0
    %1564 = vmatpush1.xpose.msra.mxu0 0.0
    %1565 = vmatprep.subr.mxu0 0.0
    %1566 = vmatpush1.xpose.msra.mxu0 0.0
    %1567 = vmatprep.subr.mxu0 0.0
    %1568 = vmatpush1.xpose.msra.mxu0 0.0
    %1569 = vmatprep.subr.mxu0 0.0
    %1570 = vmatpush1.xpose.msra.mxu0 0.0
    %1571 = vmatprep.subr.mxu0 0.0
    %1572 = vmatpush1.xpose.msra.mxu0 0.0
    %1573 = vmatprep.mubr.f32.mxu0 0.0
    %1574 = vmatmul.mubr.f32.gmra.mrb[0].mxu0 %v1505
    %v1575 = vpop.f32.mrb[0].mxu0
    %v1576 = vadd.f32 %v1174, %v1575
    %v1577 = vpop.f32.mrb[0].mxu0
    %1578 = vdwg.mxu0
    %v1579 = vsel %vm573, %v1576, -inf
    %1580 = vmax.xlane.f32.xlu0 %v1579
    %v1581 = vpop.xlane.xlu0 %1580
    %v1582 = vsub.f32 %v1576, %v1581
    %v1583 = vmul.f32 %v1582, 1.442695
    %v1584 = vpow.pop %v1583
    %v1585 = vsel %vm573, %v1584, 0.0
    %1586 = vadd.xlane.f32.xlu0 %v1585
    %v1587 = vpop.xlane.xlu0 %1586
    %v1588 = vrcp.pop %v1587
    %v1589 = vmul.f32 %v1584, %v1588
    %1590 = vrot.lane.b32.xlu0 %v489, 64
    %v1591 = vpop.permute.xlu0 %1590
    %v1594 = vsel %vm573, %v1589, 0
    %1596 = vmatprep.subr.mxu0 0.0
    %1597 = vmatpush1.msra.mxu0 %v1591
    %1598 = vmatprep.subr.mxu0 0.0
    %1599 = vmatpush1.msra.mxu0 0.0
    %1600 = vmatprep.subr.mxu0 0.0
    %1601 = vmatpush1.msra.mxu0 0.0
    %1602 = vmatprep.subr.mxu0 0.0
    %1603 = vmatpush1.msra.mxu0 0.0
    %1604 = vmatprep.subr.mxu0 0.0
    %1605 = vmatpush1.msra.mxu0 0.0
    %1606 = vmatprep.subr.mxu0 0.0
    %1607 = vmatpush1.msra.mxu0 0.0
    %1608 = vmatprep.subr.mxu0 0.0
    %1609 = vmatpush1.msra.mxu0 0.0
    %1610 = vmatprep.subr.mxu0 0.0
    %1611 = vmatpush1.msra.mxu0 0.0
    %1612 = vmatprep.subr.mxu0 0.0
    %1613 = vmatpush1.msra.mxu0 0.0
    %1614 = vmatprep.subr.mxu0 0.0
    %1615 = vmatpush1.msra.mxu0 0.0
    %1616 = vmatprep.subr.mxu0 0.0
    %1617 = vmatpush1.msra.mxu0 0.0
    %1618 = vmatprep.subr.mxu0 0.0
    %1619 = vmatpush1.msra.mxu0 0.0
    %1620 = vmatprep.subr.mxu0 0.0
    %1621 = vmatpush1.msra.mxu0 0.0
    %1622 = vmatprep.subr.mxu0 0.0
    %1623 = vmatpush1.msra.mxu0 0.0
    %1624 = vmatprep.subr.mxu0 0.0
    %1625 = vmatpush1.msra.mxu0 0.0
    %1626 = vmatprep.subr.mxu0 0.0
    %1627 = vmatpush1.msra.mxu0 0.0
    %1628 = vmatprep.subr.mxu0 0.0
    %1629 = vmatpush1.msra.mxu0 0.0
    %1630 = vmatprep.subr.mxu0 0.0
    %1631 = vmatpush1.msra.mxu0 0.0
    %1632 = vmatprep.subr.mxu0 0.0
    %1633 = vmatpush1.msra.mxu0 0.0
    %1634 = vmatprep.subr.mxu0 0.0
    %1635 = vmatpush1.msra.mxu0 0.0
    %1636 = vmatprep.subr.mxu0 0.0
    %1637 = vmatpush1.msra.mxu0 0.0
    %1638 = vmatprep.subr.mxu0 0.0
    %1639 = vmatpush1.msra.mxu0 0.0
    %1640 = vmatprep.subr.mxu0 0.0
    %1641 = vmatpush1.msra.mxu0 0.0
    %1642 = vmatprep.subr.mxu0 0.0
    %1643 = vmatpush1.msra.mxu0 0.0
    %1644 = vmatprep.subr.mxu0 0.0
    %1645 = vmatpush1.msra.mxu0 0.0
    %1646 = vmatprep.subr.mxu0 0.0
    %1647 = vmatpush1.msra.mxu0 0.0
    %1648 = vmatprep.subr.mxu0 0.0
    %1649 = vmatpush1.msra.mxu0 0.0
    %1650 = vmatprep.subr.mxu0 0.0
    %1651 = vmatpush1.msra.mxu0 0.0
    %1652 = vmatprep.subr.mxu0 0.0
    %1653 = vmatpush1.msra.mxu0 0.0
    %1654 = vmatprep.subr.mxu0 0.0
    %1655 = vmatpush1.msra.mxu0 0.0
    %1656 = vmatprep.subr.mxu0 0.0
    %1657 = vmatpush1.msra.mxu0 0.0
    %1658 = vmatprep.subr.mxu0 0.0
    %1659 = vmatpush1.msra.mxu0 0.0
    %1660 = vmatprep.mubr.f32.mxu0 0.0
    %1661 = vmatmul.mubr.f32.gmra.mrb[0].mxu0 %v1594
    %v1662 = vpop.f32.mrb[0].mxu0
    %v1663 = vadd.f32 0.0, %v1662
    %v1664 = vpop.f32.mrb[0].mxu0
    %1665 = vdwg.mxu0
    %1666 = vrot.lane.b32.xlu0 %v413, 32
    %v1667 = vpop.permute.xlu0 %1666
    %1668 = vrot.lane.b32.xlu0 %v415, 32
    %v1669 = vpop.permute.xlu0 %1668
    %v1670 = vsel %vm496, %v1667, 0
    %v1672 = vsel %vm496, %v1669, 0
    %1674 = vmatprep.subr.mxu0 0.0
    %1675 = vmatpush1.xpose.msra.mxu0 %v1672
    %1676 = vmatprep.subr.mxu0 0.0
    %1677 = vmatpush1.xpose.msra.mxu0 0.0
    %1678 = vmatprep.subr.mxu0 0.0
    %1679 = vmatpush1.xpose.msra.mxu0 0.0
    %1680 = vmatprep.subr.mxu0 0.0
    %1681 = vmatpush1.xpose.msra.mxu0 0.0
    %1682 = vmatprep.subr.mxu0 0.0
    %1683 = vmatpush1.xpose.msra.mxu0 0.0
    %1684 = vmatprep.subr.mxu0 0.0
    %1685 = vmatpush1.xpose.msra.mxu0 0.0
    %1686 = vmatprep.subr.mxu0 0.0
    %1687 = vmatpush1.xpose.msra.mxu0 0.0
    %1688 = vmatprep.subr.mxu0 0.0
    %1689 = vmatpush1.xpose.msra.mxu0 0.0
    %1690 = vmatprep.subr.mxu0 0.0
    %1691 = vmatpush1.xpose.msra.mxu0 0.0
    %1692 = vmatprep.subr.mxu0 0.0
    %1693 = vmatpush1.xpose.msra.mxu0 0.0
    %1694 = vmatprep.subr.mxu0 0.0
    %1695 = vmatpush1.xpose.msra.mxu0 0.0
    %1696 = vmatprep.subr.mxu0 0.0
    %1697 = vmatpush1.xpose.msra.mxu0 0.0
    %1698 = vmatprep.subr.mxu0 0.0
    %1699 = vmatpush1.xpose.msra.mxu0 0.0
    %1700 = vmatprep.subr.mxu0 0.0
    %1701 = vmatpush1.xpose.msra.mxu0 0.0
    %1702 = vmatprep.subr.mxu0 0.0
    %1703 = vmatpush1.xpose.msra.mxu0 0.0
    %1704 = vmatprep.subr.mxu0 0.0
    %1705 = vmatpush1.xpose.msra.mxu0 0.0
    %1706 = vmatprep.subr.mxu0 0.0
    %1707 = vmatpush1.xpose.msra.mxu0 0.0
    %1708 = vmatprep.subr.mxu0 0.0
    %1709 = vmatpush1.xpose.msra.mxu0 0.0
    %1710 = vmatprep.subr.mxu0 0.0
    %1711 = vmatpush1.xpose.msra.mxu0 0.0
    %1712 = vmatprep.subr.mxu0 0.0
    %1713 = vmatpush1.xpose.msra.mxu0 0.0
    %1714 = vmatprep.subr.mxu0 0.0
    %1715 = vmatpush1.xpose.msra.mxu0 0.0
    %1716 = vmatprep.subr.mxu0 0.0
    %1717 = vmatpush1.xpose.msra.mxu0 0.0
    %1718 = vmatprep.subr.mxu0 0.0
    %1719 = vmatpush1.xpose.msra.mxu0 0.0
    %1720 = vmatprep.subr.mxu0 0.0
    %1721 = vmatpush1.xpose.msra.mxu0 0.0
    %1722 = vmatprep.subr.mxu0 0.0
    %1723 = vmatpush1.xpose.msra.mxu0 0.0
    %1724 = vmatprep.subr.mxu0 0.0
    %1725 = vmatpush1.xpose.msra.mxu0 0.0
    %1726 = vmatprep.subr.mxu0 0.0
    %1727 = vmatpush1.xpose.msra.mxu0 0.0
    %1728 = vmatprep.subr.mxu0 0.0
    %1729 = vmatpush1.xpose.msra.mxu0 0.0
    %1730 = vmatprep.subr.mxu0 0.0
    %1731 = vmatpush1.xpose.msra.mxu0 0.0
    %1732 = vmatprep.subr.mxu0 0.0
    %1733 = vmatpush1.xpose.msra.mxu0 0.0
    %1734 = vmatprep.subr.mxu0 0.0
    %1735 = vmatpush1.xpose.msra.mxu0 0.0
    %1736 = vmatprep.subr.mxu0 0.0
    %1737 = vmatpush1.xpose.msra.mxu0 0.0
    %1738 = vmatprep.mubr.f32.mxu0 0.0
    %1739 = vmatmul.mubr.f32.gmra.mrb[0].mxu0 %v1670
    %v1740 = vpop.f32.mrb[0].mxu0
    %v1741 = vadd.f32 %v1174, %v1740
    %v1742 = vpop.f32.mrb[0].mxu0
    %1743 = vdwg.mxu0
    %v1744 = vsel %vm573, %v1741, -inf
    %1745 = vmax.xlane.f32.xlu0 %v1744
    %v1746 = vpop.xlane.xlu0 %1745
    %v1747 = vsub.f32 %v1741, %v1746
    %v1748 = vmul.f32 %v1747, 1.442695
    %v1749 = vpow.pop %v1748
    %v1750 = vsel %vm573, %v1749, 0.0
    %1751 = vadd.xlane.f32.xlu0 %v1750
    %v1752 = vpop.xlane.xlu0 %1751
    %v1753 = vrcp.pop %v1752
    %v1754 = vmul.f32 %v1749, %v1753
    %1755 = vrot.lane.b32.xlu0 %v489, 32
    %v1756 = vpop.permute.xlu0 %1755
    %v1759 = vsel %vm573, %v1754, 0
    %1761 = vmatprep.subr.mxu0 0.0
    %1762 = vmatpush1.msra.mxu0 %v1756
    %1763 = vmatprep.subr.mxu0 0.0
    %1764 = vmatpush1.msra.mxu0 0.0
    %1765 = vmatprep.subr.mxu0 0.0
    %1766 = vmatpush1.msra.mxu0 0.0
    %1767 = vmatprep.subr.mxu0 0.0
    %1768 = vmatpush1.msra.mxu0 0.0
    %1769 = vmatprep.subr.mxu0 0.0
    %1770 = vmatpush1.msra.mxu0 0.0
    %1771 = vmatprep.subr.mxu0 0.0
    %1772 = vmatpush1.msra.mxu0 0.0
    %1773 = vmatprep.subr.mxu0 0.0
    %1774 = vmatpush1.msra.mxu0 0.0
    %1775 = vmatprep.subr.mxu0 0.0
    %1776 = vmatpush1.msra.mxu0 0.0
    %1777 = vmatprep.subr.mxu0 0.0
    %1778 = vmatpush1.msra.mxu0 0.0
    %1779 = vmatprep.subr.mxu0 0.0
    %1780 = vmatpush1.msra.mxu0 0.0
    %1781 = vmatprep.subr.mxu0 0.0
    %1782 = vmatpush1.msra.mxu0 0.0
    %1783 = vmatprep.subr.mxu0 0.0
    %1784 = vmatpush1.msra.mxu0 0.0
    %1785 = vmatprep.subr.mxu0 0.0
    %1786 = vmatpush1.msra.mxu0 0.0
    %1787 = vmatprep.subr.mxu0 0.0
    %1788 = vmatpush1.msra.mxu0 0.0
    %1789 = vmatprep.subr.mxu0 0.0
    %1790 = vmatpush1.msra.mxu0 0.0
    %1791 = vmatprep.subr.mxu0 0.0
    %1792 = vmatpush1.msra.mxu0 0.0
    %1793 = vmatprep.subr.mxu0 0.0
    %1794 = vmatpush1.msra.mxu0 0.0
    %1795 = vmatprep.subr.mxu0 0.0
    %1796 = vmatpush1.msra.mxu0 0.0
    %1797 = vmatprep.subr.mxu0 0.0
    %1798 = vmatpush1.msra.mxu0 0.0
    %1799 = vmatprep.subr.mxu0 0.0
    %1800 = vmatpush1.msra.mxu0 0.0
    %1801 = vmatprep.subr.mxu0 0.0
    %1802 = vmatpush1.msra.mxu0 0.0
    %1803 = vmatprep.subr.mxu0 0.0
    %1804 = vmatpush1.msra.mxu0 0.0
    %1805 = vmatprep.subr.mxu0 0.0
    %1806 = vmatpush1.msra.mxu0 0.0
    %1807 = vmatprep.subr.mxu0 0.0
    %1808 = vmatpush1.msra.mxu0 0.0
    %1809 = vmatprep.subr.mxu0 0.0
    %1810 = vmatpush1.msra.mxu0 0.0
    %1811 = vmatprep.subr.mxu0 0.0
    %1812 = vmatpush1.msra.mxu0 0.0
    %1813 = vmatprep.subr.mxu0 0.0
    %1814 = vmatpush1.msra.mxu0 0.0
    %1815 = vmatprep.subr.mxu0 0.0
    %1816 = vmatpush1.msra.mxu0 0.0
    %1817 = vmatprep.subr.mxu0 0.0
    %1818 = vmatpush1.msra.mxu0 0.0
    %1819 = vmatprep.subr.mxu0 0.0
    %1820 = vmatpush1.msra.mxu0 0.0
    %1821 = vmatprep.subr.mxu0 0.0
    %1822 = vmatpush1.msra.mxu0 0.0
    %1823 = vmatprep.subr.mxu0 0.0
    %1824 = vmatpush1.msra.mxu0 0.0
    %1825 = vmatprep.mubr.f32.mxu0 0.0
    %1826 = vmatmul.mubr.f32.gmra.mrb[0].mxu0 %v1759
    %v1827 = vpop.f32.mrb[0].mxu0
    %v1828 = vadd.f32 0.0, %v1827
    %v1829 = vpop.f32.mrb[0].mxu0
    %1830 = vdwg.mxu0
    %1832 = vrot.lane.b32.xlu0 %v1498, 32
    %v1833 = vpop.permute.xlu0 %1832
    %1836 = vrot.lane.b32.xlu0 %v1663, 64
    %v1837 = vpop.permute.xlu0 %1836
    %1840 = vrot.lane.b32.xlu0 %v1828, 96
    %v1841 = vpop.permute.xlu0 %1840
    %v1843 = vsel %vm496, %v1332, %v1833
    %v1844 = vsel %vm1167, %v1843, %v1837
    %v1845 = vsel %vm1169, %v1844, %v1841
    %1846 = vmatprep.subr.mxu0 0.0
    %1847 = vmatpush1.msra.mxu0 %v208
    %1848 = vmatprep.subr.mxu0 0.0
    %1849 = vmatpush1.msra.mxu0 %v209
    %1850 = vmatprep.subr.mxu0 0.0
    %1851 = vmatpush1.msra.mxu0 %v210
    %1852 = vmatprep.subr.mxu0 0.0
    %1853 = vmatpush1.msra.mxu0 %v211
    %1854 = vmatprep.subr.mxu0 0.0
    %1855 = vmatpush1.msra.mxu0 %v212
    %1856 = vmatprep.subr.mxu0 0.0
    %1857 = vmatpush1.msra.mxu0 %v213
    %1858 = vmatprep.subr.mxu0 0.0
    %1859 = vmatpush1.msra.mxu0 %v214
    %1860 = vmatprep.subr.mxu0 0.0
    %1861 = vmatpush1.msra.mxu0 %v215
    %1862 = vmatprep.subr.mxu0 0.0
    %1863 = vmatpush1.msra.mxu0 %v216
    %1864 = vmatprep.subr.mxu0 0.0
    %1865 = vmatpush1.msra.mxu0 %v217
    %1866 = vmatprep.subr.mxu0 0.0
    %1867 = vmatpush1.msra.mxu0 %v218
    %1868 = vmatprep.subr.mxu0 0.0
    %1869 = vmatpush1.msra.mxu0 %v219
    %1870 = vmatprep.subr.mxu0 0.0
    %1871 = vmatpush1.msra.mxu0 %v220
    %1872 = vmatprep.subr.mxu0 0.0
    %1873 = vmatpush1.msra.mxu0 %v221
    %1874 = vmatprep.subr.mxu0 0.0
    %1875 = vmatpush1.msra.mxu0 %v222
    %1876 = vmatprep.subr.mxu0 0.0
    %1877 = vmatpush1.msra.mxu0 %v223
    %1878 = vmatprep.subr.mxu0 0.0
    %1879 = vmatpush1.msra.mxu0 0.0
    %1880 = vmatprep.subr.mxu0 0.0
    %1881 = vmatpush1.msra.mxu0 0.0
    %1882 = vmatprep.subr.mxu0 0.0
    %1883 = vmatpush1.msra.mxu0 0.0
    %1884 = vmatprep.subr.mxu0 0.0
    %1885 = vmatpush1.msra.mxu0 0.0
    %1886 = vmatprep.subr.mxu0 0.0
    %1887 = vmatpush1.msra.mxu0 0.0
    %1888 = vmatprep.subr.mxu0 0.0
    %1889 = vmatpush1.msra.mxu0 0.0
    %1890 = vmatprep.subr.mxu0 0.0
    %1891 = vmatpush1.msra.mxu0 0.0
    %1892 = vmatprep.subr.mxu0 0.0
    %1893 = vmatpush1.msra.mxu0 0.0
    %1894 = vmatprep.subr.mxu0 0.0
    %1895 = vmatpush1.msra.mxu0 0.0
    %1896 = vmatprep.subr.mxu0 0.0
    %1897 = vmatpush1.msra.mxu0 0.0
    %1898 = vmatprep.subr.mxu0 0.0
    %1899 = vmatpush1.msra.mxu0 0.0
    %1900 = vmatprep.subr.mxu0 0.0
    %1901 = vmatpush1.msra.mxu0 0.0
    %1902 = vmatprep.subr.mxu0 0.0
    %1903 = vmatpush1.msra.mxu0 0.0
    %1904 = vmatprep.subr.mxu0 0.0
    %1905 = vmatpush1.msra.mxu0 0.0
    %1906 = vmatprep.subr.mxu0 0.0
    %1907 = vmatpush1.msra.mxu0 0.0
    %1908 = vmatprep.subr.mxu0 0.0
    %1909 = vmatpush1.msra.mxu0 0.0
    %1910 = vmatprep.mubr.f32.mxu0 0.0
    %1911 = vmatmul.mubr.f32.gmra.mrb[0].mxu0 %v1170
    %v1912 = vpop.f32.mrb[0].mxu0
    %v1913 = vadd.f32 0.0, %v1912
    %v1914 = vpop.f32.mrb[0].mxu0
    %1915 = vmatprep.mubr.f32.mxu0 0.0
    %1916 = vmatmul.mubr.f32.gmra.mrb[0].mxu0 %v1845
    %v1917 = vpop.f32.mrb[0].mxu0
    %v1918 = vadd.f32 0.0, %v1917
    %v1919 = vpop.f32.mrb[0].mxu0
    %1920 = vdwg.mxu0
    %v1921 = vadd.f32 %v156, %v1913
    %v1922 = vadd.f32 %v157, %v1918
    %v1923 = vlaneseq
    %v1924 = vshrl.u32 %v1923, 7
    %v1925 = vsub.s32 2, %v1924
    %v1926 = vrot.slane %v289, %v1925
    %v1927 = vadd.f32 %v1921, %v1926
    %v1928 = vadd.f32 %v1922, %v1926
    %1929 = vadd.xlane.f32.xlu0 %v1927
    %v1930 = vpop.xlane.xlu0 %1929
    %1931 = vadd.xlane.f32.xlu0 %v1928
    %v1932 = vpop.xlane.xlu0 %1931
    %v1933 = vmul.f32 %v1930, %v113
    %v1934 = vmul.f32 %v1932, %v113
    %v1935 = vsub.f32 %v1927, %v1933
    %v1936 = vsub.f32 %v1928, %v1934
    %v1937 = vmul.f32 %v1935, %v1935
    %v1938 = vmul.f32 %v1936, %v1936
    %1939 = vadd.xlane.f32.xlu0 %v1937
    %v1940 = vpop.xlane.xlu0 %1939
    %1941 = vadd.xlane.f32.xlu0 %v1938
    %v1942 = vpop.xlane.xlu0 %1941
    %v1943 = vmul.f32 %v1940, %v113
    %v1944 = vmul.f32 %v1942, %v113
    %v1945 = vadd.f32 %v1943, 1e-05
    %v1946 = vadd.f32 %v1944, 1e-05
    %v1947 = vrsqrt.pop %v1945
    %v1948 = vrsqrt.pop %v1946
    %v1949 = vmul.f32 %v1935, %v1947
    %v1950 = vmul.f32 %v1936, %v1948
    %v1951 = vlaneseq
    %v1952 = vshrl.u32 %v1951, 7
    %v1953 = vsub.s32 3, %v1952
    %v1954 = vrot.slane %v289, %v1953
    %v1955 = vmul.f32 %v1949, %v1954
    %v1956 = vmul.f32 %v1950, %v1954
    %v1957 = vlaneseq
    %v1958 = vshrl.u32 %v1957, 7
    %v1959 = vsub.s32 4, %v1958
    %v1960 = vrot.slane %v289, %v1959
    %v1961 = vadd.f32 %v1955, %v1960
    %v1962 = vadd.f32 %v1956, %v1960
    %v1964 = vlaneseq
    %v1965 = vshrl.u32 %v1964, 7
    %v1966 = vsub.s32 0, %v1965
    %v1967 = vrot.slane %v256, %v1966
    %v1968 = vlaneseq
    %v1969 = vshrl.u32 %v1968, 7
    %v1970 = vsub.s32 1, %v1969
    %v1971 = vrot.slane %v256, %v1970
    %1974 = vmatprep.subr.mxu0 %v225
    %1975 = vmatpush1.msra.mxu0 %v224
    %1976 = vmatprep.subr.mxu0 %v227
    %1977 = vmatpush1.msra.mxu0 %v226
    %1978 = vmatprep.subr.mxu0 %v229
    %1979 = vmatpush1.msra.mxu0 %v228
    %1980 = vmatprep.subr.mxu0 %v231
    %1981 = vmatpush1.msra.mxu0 %v230
    %1982 = vmatprep.subr.mxu0 %v233
    %1983 = vmatpush1.msra.mxu0 %v232
    %1984 = vmatprep.subr.mxu0 %v235
    %1985 = vmatpush1.msra.mxu0 %v234
    %1986 = vmatprep.subr.mxu0 %v237
    %1987 = vmatpush1.msra.mxu0 %v236
    %1988 = vmatprep.subr.mxu0 %v239
    %1989 = vmatpush1.msra.mxu0 %v238
    %1990 = vmatprep.subr.mxu0 %v241
    %1991 = vmatpush1.msra.mxu0 %v240
    %1992 = vmatprep.subr.mxu0 %v243
    %1993 = vmatpush1.msra.mxu0 %v242
    %1994 = vmatprep.subr.mxu0 %v245
    %1995 = vmatpush1.msra.mxu0 %v244
    %1996 = vmatprep.subr.mxu0 %v247
    %1997 = vmatpush1.msra.mxu0 %v246
    %1998 = vmatprep.subr.mxu0 %v249
    %1999 = vmatpush1.msra.mxu0 %v248
    %2000 = vmatprep.subr.mxu0 %v251
    %2001 = vmatpush1.msra.mxu0 %v250
    %2002 = vmatprep.subr.mxu0 %v253
    %2003 = vmatpush1.msra.mxu0 %v252
    %2004 = vmatprep.subr.mxu0 %v255
    %2005 = vmatpush1.msra.mxu0 %v254
    %2006 = vmatprep.subr.mxu0 0.0
    %2007 = vmatpush1.msra.mxu0 0.0
    %2008 = vmatprep.subr.mxu0 0.0
    %2009 = vmatpush1.msra.mxu0 0.0
    %2010 = vmatprep.subr.mxu0 0.0
    %2011 = vmatpush1.msra.mxu0 0.0
    %2012 = vmatprep.subr.mxu0 0.0
    %2013 = vmatpush1.msra.mxu0 0.0
    %2014 = vmatprep.subr.mxu0 0.0
    %2015 = vmatpush1.msra.mxu0 0.0
    %2016 = vmatprep.subr.mxu0 0.0
    %2017 = vmatpush1.msra.mxu0 0.0
    %2018 = vmatprep.subr.mxu0 0.0
    %2019 = vmatpush1.msra.mxu0 0.0
    %2020 = vmatprep.subr.mxu0 0.0
    %2021 = vmatpush1.msra.mxu0 0.0
    %2022 = vmatprep.subr.mxu0 0.0
    %2023 = vmatpush1.msra.mxu0 0.0
    %2024 = vmatprep.subr.mxu0 0.0
    %2025 = vmatpush1.msra.mxu0 0.0
    %2026 = vmatprep.subr.mxu0 0.0
    %2027 = vmatpush1.msra.mxu0 0.0
    %2028 = vmatprep.subr.mxu0 0.0
    %2029 = vmatpush1.msra.mxu0 0.0
    %2030 = vmatprep.subr.mxu0 0.0
    %2031 = vmatpush1.msra.mxu0 0.0
    %2032 = vmatprep.subr.mxu0 0.0
    %2033 = vmatpush1.msra.mxu0 0.0
    %2034 = vmatprep.subr.mxu0 0.0
    %2035 = vmatpush1.msra.mxu0 0.0
    %2036 = vmatprep.subr.mxu0 0.0
    %2037 = vmatpush1.msra.mxu0 0.0
    %2038 = vmatprep.mubr.f32.mxu0 0.0
    %2039 = vmatmul.mubr.f32.gmra.mrb[0].mxu0 %v1961
    %v2040 = vpop.f32.mrb[0].mxu0
    %v2041 = vadd.f32 %v1967, %v2040
    %v2042 = vpop.f32.mrb[0].mxu0
    %v2043 = vadd.f32 %v1971, %v2042
    %2044 = vmatprep.mubr.f32.mxu0 0.0
    %2045 = vmatmul.mubr.f32.gmra.mrb[0].mxu0 %v1962
    %v2046 = vpop.f32.mrb[0].mxu0
    %v2047 = vadd.f32 %v1967, %v2046
    %v2048 = vpop.f32.mrb[0].mxu0
    %v2049 = vadd.f32 %v1971, %v2048
    %2050 = vdwg.mxu0
    %v2051 = vmax.f32 %v2041, 0.0
    %v2052 = vmax.f32 %v2043, 0.0
    %v2053 = vmax.f32 %v2047, 0.0
    %v2054 = vmax.f32 %v2049, 0.0
    %2055 = vmatprep.subr.mxu0 0.0
    %2056 = vmatpush1.msra.mxu0 %v257
    %2057 = vmatprep.subr.mxu0 0.0
    %2058 = vmatpush1.msra.mxu0 %v258
    %2059 = vmatprep.subr.mxu0 0.0
    %2060 = vmatpush1.msra.mxu0 %v259
    %2061 = vmatprep.subr.mxu0 0.0
    %2062 = vmatpush1.msra.mxu0 %v260
    %2063 = vmatprep.subr.mxu0 0.0
    %2064 = vmatpush1.msra.mxu0 %v261
    %2065 = vmatprep.subr.mxu0 0.0
    %2066 = vmatpush1.msra.mxu0 %v262
    %2067 = vmatprep.subr.mxu0 0.0
    %2068 = vmatpush1.msra.mxu0 %v263
    %2069 = vmatprep.subr.mxu0 0.0
    %2070 = vmatpush1.msra.mxu0 %v264
    %2071 = vmatprep.subr.mxu0 0.0
    %2072 = vmatpush1.msra.mxu0 %v265
    %2073 = vmatprep.subr.mxu0 0.0
    %2074 = vmatpush1.msra.mxu0 %v266
    %2075 = vmatprep.subr.mxu0 0.0
    %2076 = vmatpush1.msra.mxu0 %v267
    %2077 = vmatprep.subr.mxu0 0.0
    %2078 = vmatpush1.msra.mxu0 %v268
    %2079 = vmatprep.subr.mxu0 0.0
    %2080 = vmatpush1.msra.mxu0 %v269
    %2081 = vmatprep.subr.mxu0 0.0
    %2082 = vmatpush1.msra.mxu0 %v270
    %2083 = vmatprep.subr.mxu0 0.0
    %2084 = vmatpush1.msra.mxu0 %v271
    %2085 = vmatprep.subr.mxu0 0.0
    %2086 = vmatpush1.msra.mxu0 %v272
    %2087 = vmatprep.subr.mxu0 0.0
    %2088 = vmatpush1.msra.mxu0 %v273
    %2089 = vmatprep.subr.mxu0 0.0
    %2090 = vmatpush1.msra.mxu0 %v274
    %2091 = vmatprep.subr.mxu0 0.0
    %2092 = vmatpush1.msra.mxu0 %v275
    %2093 = vmatprep.subr.mxu0 0.0
    %2094 = vmatpush1.msra.mxu0 %v276
    %2095 = vmatprep.subr.mxu0 0.0
    %2096 = vmatpush1.msra.mxu0 %v277
    %2097 = vmatprep.subr.mxu0 0.0
    %2098 = vmatpush1.msra.mxu0 %v278
    %2099 = vmatprep.subr.mxu0 0.0
    %2100 = vmatpush1.msra.mxu0 %v279
    %2101 = vmatprep.subr.mxu0 0.0
    %2102 = vmatpush1.msra.mxu0 %v280
    %2103 = vmatprep.subr.mxu0 0.0
    %2104 = vmatpush1.msra.mxu0 %v281
    %2105 = vmatprep.subr.mxu0 0.0
    %2106 = vmatpush1.msra.mxu0 %v282
    %2107 = vmatprep.subr.mxu0 0.0
    %2108 = vmatpush1.msra.mxu0 %v283
    %2109 = vmatprep.subr.mxu0 0.0
    %2110 = vmatpush1.msra.mxu0 %v284
    %2111 = vmatprep.subr.mxu0 0.0
    %2112 = vmatpush1.msra.mxu0 %v285
    %2113 = vmatprep.subr.mxu0 0.0
    %2114 = vmatpush1.msra.mxu0 %v286
    %2115 = vmatprep.subr.mxu0 0.0
    %2116 = vmatpush1.msra.mxu0 %v287
    %2117 = vmatprep.subr.mxu0 0.0
    %2118 = vmatpush1.msra.mxu0 %v288
    %2119 = vmatprep.mubr.f32.mxu0 %v2052
    %2120 = vmatmul.mubr.f32.gmra.mrb[0].mxu0 %v2051
    %v2121 = vpop.f32.mrb[0].mxu0
    %v2122 = vadd.f32 0.0, %v2121
    %v2123 = vpop.f32.mrb[0].mxu0
    %2124 = vmatprep.mubr.f32.mxu0 %v2054
    %2125 = vmatmul.mubr.f32.gmra.mrb[0].mxu0 %v2053
    %v2126 = vpop.f32.mrb[0].mxu0
    %v2127 = vadd.f32 0.0, %v2126
    %v2128 = vpop.f32.mrb[0].mxu0
    %2129 = vdwg.mxu0
    %v2130 = vadd.f32 %v1927, %v2122
    %v2131 = vadd.f32 %v1928, %v2127
    %v2132 = vlaneseq
    %v2133 = vshrl.u32 %v2132, 7
    %v2134 = vsub.s32 5, %v2133
    %v2135 = vrot.slane %v289, %v2134
    %v2136 = vadd.f32 %v2130, %v2135
    %v2137 = vadd.f32 %v2131, %v2135
    %s2138 = scalar_lea.vmem [#allocation2], 384
    %v2139 = vld [vmem:[%s2138] sm:$0xff]
    %v2140 = vld [vmem:[%s2138 + $0x8] sm:$0xff]
    %v2141 = vld [vmem:[%s2138 + $0x10] sm:$0xff]
    %v2142 = vld [vmem:[%s2138 + $0x18] sm:$0xff]
    %v2143 = vld [vmem:[%s2138 + $0x20] sm:$0xff]
    %v2144 = vld [vmem:[%s2138 + $0x28] sm:$0xff]
    %v2145 = vld [vmem:[%s2138 + $0x30] sm:$0xff]
    %v2146 = vld [vmem:[%s2138 + $0x38] sm:$0xff]
    %v2147 = vld [vmem:[%s2138 + $0x40] sm:$0xff]
    %v2148 = vld [vmem:[%s2138 + $0x48] sm:$0xff]
    %v2149 = vld [vmem:[%s2138 + $0x50] sm:$0xff]
    %v2150 = vld [vmem:[%s2138 + $0x58] sm:$0xff]
    %v2151 = vld [vmem:[%s2138 + $0x60] sm:$0xff]
    %v2152 = vld [vmem:[%s2138 + $0x68] sm:$0xff]
    %v2153 = vld [vmem:[%s2138 + $0x70] sm:$0xff]
    %v2154 = vld [vmem:[%s2138 + $0x78] sm:$0xff]
    %v2155 = vld [vmem:[%s2138 + $0x80] sm:$0xff]
    %v2156 = vld [vmem:[%s2138 + $0x88] sm:$0xff]
    %v2157 = vld [vmem:[%s2138 + $0x90] sm:$0xff]
    %v2158 = vld [vmem:[%s2138 + $0x98] sm:$0xff]
    %v2159 = vld [vmem:[%s2138 + $0xa0] sm:$0xff]
    %v2160 = vld [vmem:[%s2138 + $0xa8] sm:$0xff]
    %v2161 = vld [vmem:[%s2138 + $0xb0] sm:$0xff]
    %v2162 = vld [vmem:[%s2138 + $0xb8] sm:$0xff]
    %v2163 = vld [vmem:[%s2138 + $0xc0] sm:$0xff]
    %v2164 = vld [vmem:[%s2138 + $0xc8] sm:$0xff]
    %v2165 = vld [vmem:[%s2138 + $0xd0] sm:$0xff]
    %v2166 = vld [vmem:[%s2138 + $0xd8] sm:$0xff]
    %v2167 = vld [vmem:[%s2138 + $0xe0] sm:$0xff]
    %v2168 = vld [vmem:[%s2138 + $0xe8] sm:$0xff]
    %v2169 = vld [vmem:[%s2138 + $0xf0] sm:$0xff]
    %v2170 = vld [vmem:[%s2138 + $0xf8] sm:$0xff]
    %v2171 = vld [vmem:[%s2138 + $0x100] sm:$0xff]
    %v2172 = vld [vmem:[%s2138 + $0x108] sm:$0xff]
    %v2173 = vld [vmem:[%s2138 + $0x110] sm:$0xff]
    %v2174 = vld [vmem:[%s2138 + $0x118] sm:$0xff]
    %v2175 = vld [vmem:[%s2138 + $0x120] sm:$0xff]
    %v2176 = vld [vmem:[%s2138 + $0x128] sm:$0xff]
    %v2177 = vld [vmem:[%s2138 + $0x130] sm:$0xff]
    %v2178 = vld [vmem:[%s2138 + $0x138] sm:$0xff]
    %v2179 = vld [vmem:[%s2138 + $0x140] sm:$0xff]
    %v2180 = vld [vmem:[%s2138 + $0x148] sm:$0xff]
    %v2181 = vld [vmem:[%s2138 + $0x150] sm:$0xff]
    %v2182 = vld [vmem:[%s2138 + $0x158] sm:$0xff]
    %v2183 = vld [vmem:[%s2138 + $0x160] sm:$0xff]
    %v2184 = vld [vmem:[%s2138 + $0x168] sm:$0xff]
    %v2185 = vld [vmem:[%s2138 + $0x170] sm:$0xff]
    %v2186 = vld [vmem:[%s2138 + $0x178] sm:$0xff]
    %s2187 = scalar_lea.vmem %s6, 3
    %v2188 = vld [vmem:[%s2187] sm:$0x7]
    %s2189 = scalar_lea.vmem [#allocation4], 128
    %v2190 = vld [vmem:[%s2189] sm:$0xff]
    %v2191 = vld [vmem:[%s2189 + $0x8] sm:$0xff]
    %v2192 = vld [vmem:[%s2189 + $0x10] sm:$0xff]
    %v2193 = vld [vmem:[%s2189 + $0x18] sm:$0xff]
    %v2194 = vld [vmem:[%s2189 + $0x20] sm:$0xff]
    %v2195 = vld [vmem:[%s2189 + $0x28] sm:$0xff]
    %v2196 = vld [vmem:[%s2189 + $0x30] sm:$0xff]
    %v2197 = vld [vmem:[%s2189 + $0x38] sm:$0xff]
    %v2198 = vld [vmem:[%s2189 + $0x40] sm:$0xff]
    %v2199 = vld [vmem:[%s2189 + $0x48] sm:$0xff]
    %v2200 = vld [vmem:[%s2189 + $0x50] sm:$0xff]
    %v2201 = vld [vmem:[%s2189 + $0x58] sm:$0xff]
    %v2202 = vld [vmem:[%s2189 + $0x60] sm:$0xff]
    %v2203 = vld [vmem:[%s2189 + $0x68] sm:$0xff]
    %v2204 = vld [vmem:[%s2189 + $0x70] sm:$0xff]
    %v2205 = vld [vmem:[%s2189 + $0x78] sm:$0xff]
    %s2206 = scalar_lea.vmem [#allocation6], 256
    %v2207 = vld [vmem:[%s2206] sm:$0xff]
    %v2208 = vld [vmem:[%s2206 + $0x8] sm:$0xff]
    %v2209 = vld [vmem:[%s2206 + $0x10] sm:$0xff]
    %v2210 = vld [vmem:[%s2206 + $0x18] sm:$0xff]
    %v2211 = vld [vmem:[%s2206 + $0x20] sm:$0xff]
    %v2212 = vld [vmem:[%s2206 + $0x28] sm:$0xff]
    %v2213 = vld [vmem:[%s2206 + $0x30] sm:$0xff]
    %v2214 = vld [vmem:[%s2206 + $0x38] sm:$0xff]
    %v2215 = vld [vmem:[%s2206 + $0x40] sm:$0xff]
    %v2216 = vld [vmem:[%s2206 + $0x48] sm:$0xff]
    %v2217 = vld [vmem:[%s2206 + $0x50] sm:$0xff]
    %v2218 = vld [vmem:[%s2206 + $0x58] sm:$0xff]
    %v2219 = vld [vmem:[%s2206 + $0x60] sm:$0xff]
    %v2220 = vld [vmem:[%s2206 + $0x68] sm:$0xff]
    %v2221 = vld [vmem:[%s2206 + $0x70] sm:$0xff]
    %v2222 = vld [vmem:[%s2206 + $0x78] sm:$0xff]
    %v2223 = vld [vmem:[%s2206 + $0x80] sm:$0xff]
    %v2224 = vld [vmem:[%s2206 + $0x88] sm:$0xff]
    %v2225 = vld [vmem:[%s2206 + $0x90] sm:$0xff]
    %v2226 = vld [vmem:[%s2206 + $0x98] sm:$0xff]
    %v2227 = vld [vmem:[%s2206 + $0xa0] sm:$0xff]
    %v2228 = vld [vmem:[%s2206 + $0xa8] sm:$0xff]
    %v2229 = vld [vmem:[%s2206 + $0xb0] sm:$0xff]
    %v2230 = vld [vmem:[%s2206 + $0xb8] sm:$0xff]
    %v2231 = vld [vmem:[%s2206 + $0xc0] sm:$0xff]
    %v2232 = vld [vmem:[%s2206 + $0xc8] sm:$0xff]
    %v2233 = vld [vmem:[%s2206 + $0xd0] sm:$0xff]
    %v2234 = vld [vmem:[%s2206 + $0xd8] sm:$0xff]
    %v2235 = vld [vmem:[%s2206 + $0xe0] sm:$0xff]
    %v2236 = vld [vmem:[%s2206 + $0xe8] sm:$0xff]
    %v2237 = vld [vmem:[%s2206 + $0xf0] sm:$0xff]
    %v2238 = vld [vmem:[%s2206 + $0xf8] sm:$0xff]
    %s2239 = scalar_lea.vmem %s9, 2
    %v2240 = vld [vmem:[%s2239] sm:$0x3]
    %s2241 = scalar_lea.vmem [#allocation7], 256
    %v2242 = vld [vmem:[%s2241] sm:$0xff]
    %v2243 = vld [vmem:[%s2241 + $0x8] sm:$0xff]
    %v2244 = vld [vmem:[%s2241 + $0x10] sm:$0xff]
    %v2245 = vld [vmem:[%s2241 + $0x18] sm:$0xff]
    %v2246 = vld [vmem:[%s2241 + $0x20] sm:$0xff]
    %v2247 = vld [vmem:[%s2241 + $0x28] sm:$0xff]
    %v2248 = vld [vmem:[%s2241 + $0x30] sm:$0xff]
    %v2249 = vld [vmem:[%s2241 + $0x38] sm:$0xff]
    %v2250 = vld [vmem:[%s2241 + $0x40] sm:$0xff]
    %v2251 = vld [vmem:[%s2241 + $0x48] sm:$0xff]
    %v2252 = vld [vmem:[%s2241 + $0x50] sm:$0xff]
    %v2253 = vld [vmem:[%s2241 + $0x58] sm:$0xff]
    %v2254 = vld [vmem:[%s2241 + $0x60] sm:$0xff]
    %v2255 = vld [vmem:[%s2241 + $0x68] sm:$0xff]
    %v2256 = vld [vmem:[%s2241 + $0x70] sm:$0xff]
    %v2257 = vld [vmem:[%s2241 + $0x78] sm:$0xff]
    %v2258 = vld [vmem:[%s2241 + $0x80] sm:$0xff]
    %v2259 = vld [vmem:[%s2241 + $0x88] sm:$0xff]
    %v2260 = vld [vmem:[%s2241 + $0x90] sm:$0xff]
    %v2261 = vld [vmem:[%s2241 + $0x98] sm:$0xff]
    %v2262 = vld [vmem:[%s2241 + $0xa0] sm:$0xff]
    %v2263 = vld [vmem:[%s2241 + $0xa8] sm:$0xff]
    %v2264 = vld [vmem:[%s2241 + $0xb0] sm:$0xff]
    %v2265 = vld [vmem:[%s2241 + $0xb8] sm:$0xff]
    %v2266 = vld [vmem:[%s2241 + $0xc0] sm:$0xff]
    %v2267 = vld [vmem:[%s2241 + $0xc8] sm:$0xff]
    %v2268 = vld [vmem:[%s2241 + $0xd0] sm:$0xff]
    %v2269 = vld [vmem:[%s2241 + $0xd8] sm:$0xff]
    %v2270 = vld [vmem:[%s2241 + $0xe0] sm:$0xff]
    %v2271 = vld [vmem:[%s2241 + $0xe8] sm:$0xff]
    %v2272 = vld [vmem:[%s2241 + $0xf0] sm:$0xff]
    %v2273 = vld [vmem:[%s2241 + $0xf8] sm:$0xff]
    %s2274 = scalar_lea.vmem %s11, 8
    %v2275 = vld [vmem:[%s2274] sm:$0xff]
    %2276 = vadd.xlane.f32.xlu0 %v2136
    %v2277 = vpop.xlane.xlu0 %2276
    %2278 = vadd.xlane.f32.xlu0 %v2137
    %v2279 = vpop.xlane.xlu0 %2278
    %v2280 = vmul.f32 %v2277, %v113
    %v2281 = vmul.f32 %v2279, %v113
    %v2282 = vsub.f32 %v2136, %v2280
    %v2283 = vsub.f32 %v2137, %v2281
    %v2284 = vmul.f32 %v2282, %v2282
    %v2285 = vmul.f32 %v2283, %v2283
    %2286 = vadd.xlane.f32.xlu0 %v2284
    %v2287 = vpop.xlane.xlu0 %2286
    %2288 = vadd.xlane.f32.xlu0 %v2285
    %v2289 = vpop.xlane.xlu0 %2288
    %v2290 = vmul.f32 %v2287, %v113
    %v2291 = vmul.f32 %v2289, %v113
    %v2292 = vadd.f32 %v2290, 1e-05
    %v2293 = vadd.f32 %v2291, 1e-05
    %v2294 = vrsqrt.pop %v2292
    %v2295 = vrsqrt.pop %v2293
    %v2296 = vmul.f32 %v2282, %v2294
    %v2297 = vmul.f32 %v2283, %v2295
    %v2298 = vlaneseq
    %v2299 = vshrl.u32 %v2298, 7
    %v2300 = vsub.s32 0, %v2299
    %v2301 = vrot.slane %v2275, %v2300
    %v2302 = vmul.f32 %v2296, %v2301
    %v2303 = vmul.f32 %v2297, %v2301
    %v2304 = vlaneseq
    %v2305 = vshrl.u32 %v2304, 7
    %v2306 = vsub.s32 1, %v2305
    %v2307 = vrot.slane %v2275, %v2306
    %v2308 = vadd.f32 %v2302, %v2307
    %v2309 = vadd.f32 %v2303, %v2307
    %v2311 = vlaneseq
    %v2312 = vshrl.u32 %v2311, 7
    %v2313 = vsub.s32 0, %v2312
    %v2314 = vrot.slane %v2188, %v2313
    %v2315 = vlaneseq
    %v2316 = vshrl.u32 %v2315, 7
    %v2317 = vsub.s32 1, %v2316
    %v2318 = vrot.slane %v2188, %v2317
    %v2319 = vlaneseq
    %v2320 = vshrl.u32 %v2319, 7
    %v2321 = vsub.s32 2, %v2320
    %v2322 = vrot.slane %v2188, %v2321
    %2326 = vmatprep.subr.mxu0 %v2140
    %2327 = vmatpush1.msra.mxu0 %v2139
    %2328 = vmatprep.subr.mxu0 %v2143
    %2329 = vmatpush1.msra.mxu0 %v2142
    %2330 = vmatprep.subr.mxu0 %v2146
    %2331 = vmatpush1.msra.mxu0 %v2145
    %2332 = vmatprep.subr.mxu0 %v2149
    %2333 = vmatpush1.msra.mxu0 %v2148
    %2334 = vmatprep.subr.mxu0 %v2152
    %2335 = vmatpush1.msra.mxu0 %v2151
    %2336 = vmatprep.subr.mxu0 %v2155
    %2337 = vmatpush1.msra.mxu0 %v2154
    %2338 = vmatprep.subr.mxu0 %v2158
    %2339 = vmatpush1.msra.mxu0 %v2157
    %2340 = vmatprep.subr.mxu0 %v2161
    %2341 = vmatpush1.msra.mxu0 %v2160
    %2342 = vmatprep.subr.mxu0 %v2164
    %2343 = vmatpush1.msra.mxu0 %v2163
    %2344 = vmatprep.subr.mxu0 %v2167
    %2345 = vmatpush1.msra.mxu0 %v2166
    %2346 = vmatprep.subr.mxu0 %v2170
    %2347 = vmatpush1.msra.mxu0 %v2169
    %2348 = vmatprep.subr.mxu0 %v2173
    %2349 = vmatpush1.msra.mxu0 %v2172
    %2350 = vmatprep.subr.mxu0 %v2176
    %2351 = vmatpush1.msra.mxu0 %v2175
    %2352 = vmatprep.subr.mxu0 %v2179
    %2353 = vmatpush1.msra.mxu0 %v2178
    %2354 = vmatprep.subr.mxu0 %v2182
    %2355 = vmatpush1.msra.mxu0 %v2181
    %2356 = vmatprep.subr.mxu0 %v2185
    %2357 = vmatpush1.msra.mxu0 %v2184
    %2358 = vmatprep.subr.mxu0 0.0
    %2359 = vmatpush1.msra.mxu0 0.0
    %2360 = vmatprep.subr.mxu0 0.0
    %2361 = vmatpush1.msra.mxu0 0.0
    %2362 = vmatprep.subr.mxu0 0.0
    %2363 = vmatpush1.msra.mxu0 0.0
    %2364 = vmatprep.subr.mxu0 0.0
    %2365 = vmatpush1.msra.mxu0 0.0
    %2366 = vmatprep.subr.mxu0 0.0
    %2367 = vmatpush1.msra.mxu0 0.0
    %2368 = vmatprep.subr.mxu0 0.0
    %2369 = vmatpush1.msra.mxu0 0.0
    %2370 = vmatprep.subr.mxu0 0.0
    %2371 = vmatpush1.msra.mxu0 0.0
    %2372 = vmatprep.subr.mxu0 0.0
    %2373 = vmatpush1.msra.mxu0 0.0
    %2374 = vmatprep.subr.mxu0 0.0
    %2375 = vmatpush1.msra.mxu0 0.0
    %2376 = vmatprep.subr.mxu0 0.0
    %2377 = vmatpush1.msra.mxu0 0.0
    %2378 = vmatprep.subr.mxu0 0.0
    %2379 = vmatpush1.msra.mxu0 0.0
    %2380 = vmatprep.subr.mxu0 0.0
    %2381 = vmatpush1.msra.mxu0 0.0
    %2382 = vmatprep.subr.mxu0 0.0
    %2383 = vmatpush1.msra.mxu0 0.0
    %2384 = vmatprep.subr.mxu0 0.0
    %2385 = vmatpush1.msra.mxu0 0.0
    %2386 = vmatprep.subr.mxu0 0.0
    %2387 = vmatpush1.msra.mxu0 0.0
    %2388 = vmatprep.subr.mxu0 0.0
    %2389 = vmatpush1.msra.mxu0 0.0
    %2390 = vmatprep.mubr.f32.mxu0 0.0
    %2391 = vmatmul.mubr.f32.gmra.mrb[0].mxu0 %v2308
    %v2392 = vpop.f32.mrb[0].mxu0
    %v2393 = vadd.f32 %v2314, %v2392
    %v2394 = vpop.f32.mrb[0].mxu0
    %v2395 = vadd.f32 %v2318, %v2394
    %2396 = vmatprep.mubr.f32.mxu0 0.0
    %2397 = vmatmul.mubr.f32.gmra.mrb[0].mxu0 %v2309
    %v2398 = vpop.f32.mrb[0].mxu0
    %v2399 = vadd.f32 %v2314, %v2398
    %v2400 = vpop.f32.mrb[0].mxu0
    %v2401 = vadd.f32 %v2318, %v2400
    %2402 = vdwg.mxu0
    %2403 = vmatprep.subr.mxu0 0.0
    %2404 = vmatpush1.msra.mxu0 %v2141
    %2405 = vmatprep.subr.mxu0 0.0
    %2406 = vmatpush1.msra.mxu0 %v2144
    %2407 = vmatprep.subr.mxu0 0.0
    %2408 = vmatpush1.msra.mxu0 %v2147
    %2409 = vmatprep.subr.mxu0 0.0
    %2410 = vmatpush1.msra.mxu0 %v2150
    %2411 = vmatprep.subr.mxu0 0.0
    %2412 = vmatpush1.msra.mxu0 %v2153
    %2413 = vmatprep.subr.mxu0 0.0
    %2414 = vmatpush1.msra.mxu0 %v2156
    %2415 = vmatprep.subr.mxu0 0.0
    %2416 = vmatpush1.msra.mxu0 %v2159
    %2417 = vmatprep.subr.mxu0 0.0
    %2418 = vmatpush1.msra.mxu0 %v2162
    %2419 = vmatprep.subr.mxu0 0.0
    %2420 = vmatpush1.msra.mxu0 %v2165
    %2421 = vmatprep.subr.mxu0 0.0
    %2422 = vmatpush1.msra.mxu0 %v2168
    %2423 = vmatprep.subr.mxu0 0.0
    %2424 = vmatpush1.msra.mxu0 %v2171
    %2425 = vmatprep.subr.mxu0 0.0
    %2426 = vmatpush1.msra.mxu0 %v2174
    %2427 = vmatprep.subr.mxu0 0.0
    %2428 = vmatpush1.msra.mxu0 %v2177
    %2429 = vmatprep.subr.mxu0 0.0
    %2430 = vmatpush1.msra.mxu0 %v2180
    %2431 = vmatprep.subr.mxu0 0.0
    %2432 = vmatpush1.msra.mxu0 %v2183
    %2433 = vmatprep.subr.mxu0 0.0
    %2434 = vmatpush1.msra.mxu0 %v2186
    %2435 = vmatprep.subr.mxu0 0.0
    %2436 = vmatpush1.msra.mxu0 0.0
    %2437 = vmatprep.subr.mxu0 0.0
    %2438 = vmatpush1.msra.mxu0 0.0
    %2439 = vmatprep.subr.mxu0 0.0
    %2440 = vmatpush1.msra.mxu0 0.0
    %2441 = vmatprep.subr.mxu0 0.0
    %2442 = vmatpush1.msra.mxu0 0.0
    %2443 = vmatprep.subr.mxu0 0.0
    %2444 = vmatpush1.msra.mxu0 0.0
    %2445 = vmatprep.subr.mxu0 0.0
    %2446 = vmatpush1.msra.mxu0 0.0
    %2447 = vmatprep.subr.mxu0 0.0
    %2448 = vmatpush1.msra.mxu0 0.0
    %2449 = vmatprep.subr.mxu0 0.0
    %2450 = vmatpush1.msra.mxu0 0.0
    %2451 = vmatprep.subr.mxu0 0.0
    %2452 = vmatpush1.msra.mxu0 0.0
    %2453 = vmatprep.subr.mxu0 0.0
    %2454 = vmatpush1.msra.mxu0 0.0
    %2455 = vmatprep.subr.mxu0 0.0
    %2456 = vmatpush1.msra.mxu0 0.0
    %2457 = vmatprep.subr.mxu0 0.0
    %2458 = vmatpush1.msra.mxu0 0.0
    %2459 = vmatprep.subr.mxu0 0.0
    %2460 = vmatpush1.msra.mxu0 0.0
    %2461 = vmatprep.subr.mxu0 0.0
    %2462 = vmatpush1.msra.mxu0 0.0
    %2463 = vmatprep.subr.mxu0 0.0
    %2464 = vmatpush1.msra.mxu0 0.0
    %2465 = vmatprep.subr.mxu0 0.0
    %2466 = vmatpush1.msra.mxu0 0.0
    %2467 = vmatprep.mubr.f32.mxu0 0.0
    %2468 = vmatmul.mubr.f32.gmra.mrb[0].mxu0 %v2308
    %v2469 = vpop.f32.mrb[0].mxu0
    %v2470 = vadd.f32 %v2322, %v2469
    %v2471 = vpop.f32.mrb[0].mxu0
    %2472 = vmatprep.mubr.f32.mxu0 0.0
    %2473 = vmatmul.mubr.f32.gmra.mrb[0].mxu0 %v2309
    %v2474 = vpop.f32.mrb[0].mxu0
    %v2475 = vadd.f32 %v2322, %v2474
    %v2476 = vpop.f32.mrb[0].mxu0
    %2477 = vdwg.mxu0
    %v2479 = vsel %vm496, %v2393, 0
    %v2482 = vsel %vm496, %v2395, 0
    %2484 = vmatprep.subr.mxu0 0.0
    %2485 = vmatpush1.xpose.msra.mxu0 %v2482
    %2486 = vmatprep.subr.mxu0 0.0
    %2487 = vmatpush1.xpose.msra.mxu0 0.0
    %2488 = vmatprep.subr.mxu0 0.0
    %2489 = vmatpush1.xpose.msra.mxu0 0.0
    %2490 = vmatprep.subr.mxu0 0.0
    %2491 = vmatpush1.xpose.msra.mxu0 0.0
    %2492 = vmatprep.subr.mxu0 0.0
    %2493 = vmatpush1.xpose.msra.mxu0 0.0
    %2494 = vmatprep.subr.mxu0 0.0
    %2495 = vmatpush1.xpose.msra.mxu0 0.0
    %2496 = vmatprep.subr.mxu0 0.0
    %2497 = vmatpush1.xpose.msra.mxu0 0.0
    %2498 = vmatprep.subr.mxu0 0.0
    %2499 = vmatpush1.xpose.msra.mxu0 0.0
    %2500 = vmatprep.subr.mxu0 0.0
    %2501 = vmatpush1.xpose.msra.mxu0 0.0
    %2502 = vmatprep.subr.mxu0 0.0
    %2503 = vmatpush1.xpose.msra.mxu0 0.0
    %2504 = vmatprep.subr.mxu0 0.0
    %2505 = vmatpush1.xpose.msra.mxu0 0.0
    %2506 = vmatprep.subr.mxu0 0.0
    %2507 = vmatpush1.xpose.msra.mxu0 0.0
    %2508 = vmatprep.subr.mxu0 0.0
    %2509 = vmatpush1.xpose.msra.mxu0 0.0
    %2510 = vmatprep.subr.mxu0 0.0
    %2511 = vmatpush1.xpose.msra.mxu0 0.0
    %2512 = vmatprep.subr.mxu0 0.0
    %2513 = vmatpush1.xpose.msra.mxu0 0.0
    %2514 = vmatprep.subr.mxu0 0.0
    %2515 = vmatpush1.xpose.msra.mxu0 0.0
    %2516 = vmatprep.subr.mxu0 0.0
    %2517 = vmatpush1.xpose.msra.mxu0 0.0
    %2518 = vmatprep.subr.mxu0 0.0
    %2519 = vmatpush1.xpose.msra.mxu0 0.0
    %2520 = vmatprep.subr.mxu0 0.0
    %2521 = vmatpush1.xpose.msra.mxu0 0.0
    %2522 = vmatprep.subr.mxu0 0.0
    %2523 = vmatpush1.xpose.msra.mxu0 0.0
    %2524 = vmatprep.subr.mxu0 0.0
    %2525 = vmatpush1.xpose.msra.mxu0 0.0
    %2526 = vmatprep.subr.mxu0 0.0
    %2527 = vmatpush1.xpose.msra.mxu0 0.0
    %2528 = vmatprep.subr.mxu0 0.0
    %2529 = vmatpush1.xpose.msra.mxu0 0.0
    %2530 = vmatprep.subr.mxu0 0.0
    %2531 = vmatpush1.xpose.msra.mxu0 0.0
    %2532 = vmatprep.subr.mxu0 0.0
    %2533 = vmatpush1.xpose.msra.mxu0 0.0
    %2534 = vmatprep.subr.mxu0 0.0
    %2535 = vmatpush1.xpose.msra.mxu0 0.0
    %2536 = vmatprep.subr.mxu0 0.0
    %2537 = vmatpush1.xpose.msra.mxu0 0.0
    %2538 = vmatprep.subr.mxu0 0.0
    %2539 = vmatpush1.xpose.msra.mxu0 0.0
    %2540 = vmatprep.subr.mxu0 0.0
    %2541 = vmatpush1.xpose.msra.mxu0 0.0
    %2542 = vmatprep.subr.mxu0 0.0
    %2543 = vmatpush1.xpose.msra.mxu0 0.0
    %2544 = vmatprep.subr.mxu0 0.0
    %2545 = vmatpush1.xpose.msra.mxu0 0.0
    %2546 = vmatprep.subr.mxu0 0.0
    %2547 = vmatpush1.xpose.msra.mxu0 0.0
    %2548 = vmatprep.mubr.f32.mxu0 0.0
    %2549 = vmatmul.mubr.f32.gmra.mrb[0].mxu0 %v2479
    %v2550 = vpop.f32.mrb[0].mxu0
    %v2551 = vadd.f32 %v495, %v2550
    %v2552 = vpop.f32.mrb[0].mxu0
    %2553 = vdwg.mxu0
    %v2554 = vsel %vm573, %v2551, -inf
    %2555 = vmax.xlane.f32.xlu0 %v2554
    %v2556 = vpop.xlane.xlu0 %2555
    %v2557 = vsub.f32 %v2551, %v2556
    %v2558 = vmul.f32 %v2557, 1.442695
    %v2559 = vpow.pop %v2558
    %v2560 = vsel %vm573, %v2559, 0.0
    %2561 = vadd.xlane.f32.xlu0 %v2560
    %v2562 = vpop.xlane.xlu0 %2561
    %v2563 = vrcp.pop %v2562
    %v2564 = vmul.f32 %v2559, %v2563
    %v2566 = vsel %vm573, %v2564, 0
    %2568 = vmatprep.subr.mxu0 0.0
    %2569 = vmatpush1.msra.mxu0 %v2470
    %2570 = vmatprep.subr.mxu0 0.0
    %2571 = vmatpush1.msra.mxu0 0.0
    %2572 = vmatprep.subr.mxu0 0.0
    %2573 = vmatpush1.msra.mxu0 0.0
    %2574 = vmatprep.subr.mxu0 0.0
    %2575 = vmatpush1.msra.mxu0 0.0
    %2576 = vmatprep.subr.mxu0 0.0
    %2577 = vmatpush1.msra.mxu0 0.0
    %2578 = vmatprep.subr.mxu0 0.0
    %2579 = vmatpush1.msra.mxu0 0.0
    %2580 = vmatprep.subr.mxu0 0.0
    %2581 = vmatpush1.msra.mxu0 0.0
    %2582 = vmatprep.subr.mxu0 0.0
    %2583 = vmatpush1.msra.mxu0 0.0
    %2584 = vmatprep.subr.mxu0 0.0
    %2585 = vmatpush1.msra.mxu0 0.0
    %2586 = vmatprep.subr.mxu0 0.0
    %2587 = vmatpush1.msra.mxu0 0.0
    %2588 = vmatprep.subr.mxu0 0.0
    %2589 = vmatpush1.msra.mxu0 0.0
    %2590 = vmatprep.subr.mxu0 0.0
    %2591 = vmatpush1.msra.mxu0 0.0
    %2592 = vmatprep.subr.mxu0 0.0
    %2593 = vmatpush1.msra.mxu0 0.0
    %2594 = vmatprep.subr.mxu0 0.0
    %2595 = vmatpush1.msra.mxu0 0.0
    %2596 = vmatprep.subr.mxu0 0.0
    %2597 = vmatpush1.msra.mxu0 0.0
    %2598 = vmatprep.subr.mxu0 0.0
    %2599 = vmatpush1.msra.mxu0 0.0
    %2600 = vmatprep.subr.mxu0 0.0
    %2601 = vmatpush1.msra.mxu0 0.0
    %2602 = vmatprep.subr.mxu0 0.0
    %2603 = vmatpush1.msra.mxu0 0.0
    %2604 = vmatprep.subr.mxu0 0.0
    %2605 = vmatpush1.msra.mxu0 0.0
    %2606 = vmatprep.subr.mxu0 0.0
    %2607 = vmatpush1.msra.mxu0 0.0
    %2608 = vmatprep.subr.mxu0 0.0
    %2609 = vmatpush1.msra.mxu0 0.0
    %2610 = vmatprep.subr.mxu0 0.0
    %2611 = vmatpush1.msra.mxu0 0.0
    %2612 = vmatprep.subr.mxu0 0.0
    %2613 = vmatpush1.msra.mxu0 0.0
    %2614 = vmatprep.subr.mxu0 0.0
    %2615 = vmatpush1.msra.mxu0 0.0
    %2616 = vmatprep.subr.mxu0 0.0
    %2617 = vmatpush1.msra.mxu0 0.0
    %2618 = vmatprep.subr.mxu0 0.0
    %2619 = vmatpush1.msra.mxu0 0.0
    %2620 = vmatprep.subr.mxu0 0.0
    %2621 = vmatpush1.msra.mxu0 0.0
    %2622 = vmatprep.subr.mxu0 0.0
    %2623 = vmatpush1.msra.mxu0 0.0
    %2624 = vmatprep.subr.mxu0 0.0
    %2625 = vmatpush1.msra.mxu0 0.0
    %2626 = vmatprep.subr.mxu0 0.0
    %2627 = vmatpush1.msra.mxu0 0.0
    %2628 = vmatprep.subr.mxu0 0.0
    %2629 = vmatpush1.msra.mxu0 0.0
    %2630 = vmatprep.subr.mxu0 0.0
    %2631 = vmatpush1.msra.mxu0 0.0
    %2632 = vmatprep.mubr.f32.mxu0 0.0
    %2633 = vmatmul.mubr.f32.gmra.mrb[0].mxu0 %v2566
    %v2634 = vpop.f32.mrb[0].mxu0
    %v2635 = vadd.f32 0.0, %v2634
    %v2636 = vpop.f32.mrb[0].mxu0
    %2637 = vdwg.mxu0
    %2638 = vrot.lane.b32.xlu0 %v2393, 96
    %v2639 = vpop.permute.xlu0 %2638
    %2640 = vrot.lane.b32.xlu0 %v2395, 96
    %v2641 = vpop.permute.xlu0 %2640
    %v2642 = vsel %vm496, %v2639, 0
    %v2644 = vsel %vm496, %v2641, 0
    %2646 = vmatprep.subr.mxu0 0.0
    %2647 = vmatpush1.xpose.msra.mxu0 %v2644
    %2648 = vmatprep.subr.mxu0 0.0
    %2649 = vmatpush1.xpose.msra.mxu0 0.0
    %2650 = vmatprep.subr.mxu0 0.0
    %2651 = vmatpush1.xpose.msra.mxu0 0.0
    %2652 = vmatprep.subr.mxu0 0.0
    %2653 = vmatpush1.xpose.msra.mxu0 0.0
    %2654 = vmatprep.subr.mxu0 0.0
    %2655 = vmatpush1.xpose.msra.mxu0 0.0
    %2656 = vmatprep.subr.mxu0 0.0
    %2657 = vmatpush1.xpose.msra.mxu0 0.0
    %2658 = vmatprep.subr.mxu0 0.0
    %2659 = vmatpush1.xpose.msra.mxu0 0.0
    %2660 = vmatprep.subr.mxu0 0.0
    %2661 = vmatpush1.xpose.msra.mxu0 0.0
    %2662 = vmatprep.subr.mxu0 0.0
    %2663 = vmatpush1.xpose.msra.mxu0 0.0
    %2664 = vmatprep.subr.mxu0 0.0
    %2665 = vmatpush1.xpose.msra.mxu0 0.0
    %2666 = vmatprep.subr.mxu0 0.0
    %2667 = vmatpush1.xpose.msra.mxu0 0.0
    %2668 = vmatprep.subr.mxu0 0.0
    %2669 = vmatpush1.xpose.msra.mxu0 0.0
    %2670 = vmatprep.subr.mxu0 0.0
    %2671 = vmatpush1.xpose.msra.mxu0 0.0
    %2672 = vmatprep.subr.mxu0 0.0
    %2673 = vmatpush1.xpose.msra.mxu0 0.0
    %2674 = vmatprep.subr.mxu0 0.0
    %2675 = vmatpush1.xpose.msra.mxu0 0.0
    %2676 = vmatprep.subr.mxu0 0.0
    %2677 = vmatpush1.xpose.msra.mxu0 0.0
    %2678 = vmatprep.subr.mxu0 0.0
    %2679 = vmatpush1.xpose.msra.mxu0 0.0
    %2680 = vmatprep.subr.mxu0 0.0
    %2681 = vmatpush1.xpose.msra.mxu0 0.0
    %2682 = vmatprep.subr.mxu0 0.0
    %2683 = vmatpush1.xpose.msra.mxu0 0.0
    %2684 = vmatprep.subr.mxu0 0.0
    %2685 = vmatpush1.xpose.msra.mxu0 0.0
    %2686 = vmatprep.subr.mxu0 0.0
    %2687 = vmatpush1.xpose.msra.mxu0 0.0
    %2688 = vmatprep.subr.mxu0 0.0
    %2689 = vmatpush1.xpose.msra.mxu0 0.0
    %2690 = vmatprep.subr.mxu0 0.0
    %2691 = vmatpush1.xpose.msra.mxu0 0.0
    %2692 = vmatprep.subr.mxu0 0.0
    %2693 = vmatpush1.xpose.msra.mxu0 0.0
    %2694 = vmatprep.subr.mxu0 0.0
    %2695 = vmatpush1.xpose.msra.mxu0 0.0
    %2696 = vmatprep.subr.mxu0 0.0
    %2697 = vmatpush1.xpose.msra.mxu0 0.0
    %2698 = vmatprep.subr.mxu0 0.0
    %2699 = vmatpush1.xpose.msra.mxu0 0.0
    %2700 = vmatprep.subr.mxu0 0.0
    %2701 = vmatpush1.xpose.msra.mxu0 0.0
    %2702 = vmatprep.subr.mxu0 0.0
    %2703 = vmatpush1.xpose.msra.mxu0 0.0
    %2704 = vmatprep.subr.mxu0 0.0
    %2705 = vmatpush1.xpose.msra.mxu0 0.0
    %2706 = vmatprep.subr.mxu0 0.0
    %2707 = vmatpush1.xpose.msra.mxu0 0.0
    %2708 = vmatprep.subr.mxu0 0.0
    %2709 = vmatpush1.xpose.msra.mxu0 0.0
    %2710 = vmatprep.mubr.f32.mxu0 0.0
    %2711 = vmatmul.mubr.f32.gmra.mrb[0].mxu0 %v2642
    %v2712 = vpop.f32.mrb[0].mxu0
    %v2713 = vadd.f32 %v495, %v2712
    %v2714 = vpop.f32.mrb[0].mxu0
    %2715 = vdwg.mxu0
    %v2716 = vsel %vm573, %v2713, -inf
    %2717 = vmax.xlane.f32.xlu0 %v2716
    %v2718 = vpop.xlane.xlu0 %2717
    %v2719 = vsub.f32 %v2713, %v2718
    %v2720 = vmul.f32 %v2719, 1.442695
    %v2721 = vpow.pop %v2720
    %v2722 = vsel %vm573, %v2721, 0.0
    %2723 = vadd.xlane.f32.xlu0 %v2722
    %v2724 = vpop.xlane.xlu0 %2723
    %v2725 = vrcp.pop %v2724
    %v2726 = vmul.f32 %v2721, %v2725
    %2728 = vrot.lane.b32.xlu0 %v2470, 96
    %v2729 = vpop.permute.xlu0 %2728
    %v2732 = vsel %vm573, %v2726, 0
    %2734 = vmatprep.subr.mxu0 0.0
    %2735 = vmatpush1.msra.mxu0 %v2729
    %2736 = vmatprep.subr.mxu0 0.0
    %2737 = vmatpush1.msra.mxu0 0.0
    %2738 = vmatprep.subr.mxu0 0.0
    %2739 = vmatpush1.msra.mxu0 0.0
    %2740 = vmatprep.subr.mxu0 0.0
    %2741 = vmatpush1.msra.mxu0 0.0
    %2742 = vmatprep.subr.mxu0 0.0
    %2743 = vmatpush1.msra.mxu0 0.0
    %2744 = vmatprep.subr.mxu0 0.0
    %2745 = vmatpush1.msra.mxu0 0.0
    %2746 = vmatprep.subr.mxu0 0.0
    %2747 = vmatpush1.msra.mxu0 0.0
    %2748 = vmatprep.subr.mxu0 0.0
    %2749 = vmatpush1.msra.mxu0 0.0
    %2750 = vmatprep.subr.mxu0 0.0
    %2751 = vmatpush1.msra.mxu0 0.0
    %2752 = vmatprep.subr.mxu0 0.0
    %2753 = vmatpush1.msra.mxu0 0.0
    %2754 = vmatprep.subr.mxu0 0.0
    %2755 = vmatpush1.msra.mxu0 0.0
    %2756 = vmatprep.subr.mxu0 0.0
    %2757 = vmatpush1.msra.mxu0 0.0
    %2758 = vmatprep.subr.mxu0 0.0
    %2759 = vmatpush1.msra.mxu0 0.0
    %2760 = vmatprep.subr.mxu0 0.0
    %2761 = vmatpush1.msra.mxu0 0.0
    %2762 = vmatprep.subr.mxu0 0.0
    %2763 = vmatpush1.msra.mxu0 0.0
    %2764 = vmatprep.subr.mxu0 0.0
    %2765 = vmatpush1.msra.mxu0 0.0
    %2766 = vmatprep.subr.mxu0 0.0
    %2767 = vmatpush1.msra.mxu0 0.0
    %2768 = vmatprep.subr.mxu0 0.0
    %2769 = vmatpush1.msra.mxu0 0.0
    %2770 = vmatprep.subr.mxu0 0.0
    %2771 = vmatpush1.msra.mxu0 0.0
    %2772 = vmatprep.subr.mxu0 0.0
    %2773 = vmatpush1.msra.mxu0 0.0
    %2774 = vmatprep.subr.mxu0 0.0
    %2775 = vmatpush1.msra.mxu0 0.0
    %2776 = vmatprep.subr.mxu0 0.0
    %2777 = vmatpush1.msra.mxu0 0.0
    %2778 = vmatprep.subr.mxu0 0.0
    %2779 = vmatpush1.msra.mxu0 0.0
    %2780 = vmatprep.subr.mxu0 0.0
    %2781 = vmatpush1.msra.mxu0 0.0
    %2782 = vmatprep.subr.mxu0 0.0
    %2783 = vmatpush1.msra.mxu0 0.0
    %2784 = vmatprep.subr.mxu0 0.0
    %2785 = vmatpush1.msra.mxu0 0.0
    %2786 = vmatprep.subr.mxu0 0.0
    %2787 = vmatpush1.msra.mxu0 0.0
    %2788 = vmatprep.subr.mxu0 0.0
    %2789 = vmatpush1.msra.mxu0 0.0
    %2790 = vmatprep.subr.mxu0 0.0
    %2791 = vmatpush1.msra.mxu0 0.0
    %2792 = vmatprep.subr.mxu0 0.0
    %2793 = vmatpush1.msra.mxu0 0.0
    %2794 = vmatprep.subr.mxu0 0.0
    %2795 = vmatpush1.msra.mxu0 0.0
    %2796 = vmatprep.subr.mxu0 0.0
    %2797 = vmatpush1.msra.mxu0 0.0
    %2798 = vmatprep.mubr.f32.mxu0 0.0
    %2799 = vmatmul.mubr.f32.gmra.mrb[0].mxu0 %v2732
    %v2800 = vpop.f32.mrb[0].mxu0
    %v2801 = vadd.f32 0.0, %v2800
    %v2802 = vpop.f32.mrb[0].mxu0
    %2803 = vdwg.mxu0
    %2804 = vrot.lane.b32.xlu0 %v2393, 64
    %v2805 = vpop.permute.xlu0 %2804
    %2806 = vrot.lane.b32.xlu0 %v2395, 64
    %v2807 = vpop.permute.xlu0 %2806
    %v2808 = vsel %vm496, %v2805, 0
    %v2810 = vsel %vm496, %v2807, 0
    %2812 = vmatprep.subr.mxu0 0.0
    %2813 = vmatpush1.xpose.msra.mxu0 %v2810
    %2814 = vmatprep.subr.mxu0 0.0
    %2815 = vmatpush1.xpose.msra.mxu0 0.0
    %2816 = vmatprep.subr.mxu0 0.0
    %2817 = vmatpush1.xpose.msra.mxu0 0.0
    %2818 = vmatprep.subr.mxu0 0.0
    %2819 = vmatpush1.xpose.msra.mxu0 0.0
    %2820 = vmatprep.subr.mxu0 0.0
    %2821 = vmatpush1.xpose.msra.mxu0 0.0
    %2822 = vmatprep.subr.mxu0 0.0
    %2823 = vmatpush1.xpose.msra.mxu0 0.0
    %2824 = vmatprep.subr.mxu0 0.0
    %2825 = vmatpush1.xpose.msra.mxu0 0.0
    %2826 = vmatprep.subr.mxu0 0.0
    %2827 = vmatpush1.xpose.msra.mxu0 0.0
    %2828 = vmatprep.subr.mxu0 0.0
    %2829 = vmatpush1.xpose.msra.mxu0 0.0
    %2830 = vmatprep.subr.mxu0 0.0
    %2831 = vmatpush1.xpose.msra.mxu0 0.0
    %2832 = vmatprep.subr.mxu0 0.0
    %2833 = vmatpush1.xpose.msra.mxu0 0.0
    %2834 = vmatprep.subr.mxu0 0.0
    %2835 = vmatpush1.xpose.msra.mxu0 0.0
    %2836 = vmatprep.subr.mxu0 0.0
    %2837 = vmatpush1.xpose.msra.mxu0 0.0
    %2838 = vmatprep.subr.mxu0 0.0
    %2839 = vmatpush1.xpose.msra.mxu0 0.0
    %2840 = vmatprep.subr.mxu0 0.0
    %2841 = vmatpush1.xpose.msra.mxu0 0.0
    %2842 = vmatprep.subr.mxu0 0.0
    %2843 = vmatpush1.xpose.msra.mxu0 0.0
    %2844 = vmatprep.subr.mxu0 0.0
    %2845 = vmatpush1.xpose.msra.mxu0 0.0
    %2846 = vmatprep.subr.mxu0 0.0
    %2847 = vmatpush1.xpose.msra.mxu0 0.0
    %2848 = vmatprep.subr.mxu0 0.0
    %2849 = vmatpush1.xpose.msra.mxu0 0.0
    %2850 = vmatprep.subr.mxu0 0.0
    %2851 = vmatpush1.xpose.msra.mxu0 0.0
    %2852 = vmatprep.subr.mxu0 0.0
    %2853 = vmatpush1.xpose.msra.mxu0 0.0
    %2854 = vmatprep.subr.mxu0 0.0
    %2855 = vmatpush1.xpose.msra.mxu0 0.0
    %2856 = vmatprep.subr.mxu0 0.0
    %2857 = vmatpush1.xpose.msra.mxu0 0.0
    %2858 = vmatprep.subr.mxu0 0.0
    %2859 = vmatpush1.xpose.msra.mxu0 0.0
    %2860 = vmatprep.subr.mxu0 0.0
    %2861 = vmatpush1.xpose.msra.mxu0 0.0
    %2862 = vmatprep.subr.mxu0 0.0
    %2863 = vmatpush1.xpose.msra.mxu0 0.0
    %2864 = vmatprep.subr.mxu0 0.0
    %2865 = vmatpush1.xpose.msra.mxu0 0.0
    %2866 = vmatprep.subr.mxu0 0.0
    %2867 = vmatpush1.xpose.msra.mxu0 0.0
    %2868 = vmatprep.subr.mxu0 0.0
    %2869 = vmatpush1.xpose.msra.mxu0 0.0
    %2870 = vmatprep.subr.mxu0 0.0
    %2871 = vmatpush1.xpose.msra.mxu0 0.0
    %2872 = vmatprep.subr.mxu0 0.0
    %2873 = vmatpush1.xpose.msra.mxu0 0.0
    %2874 = vmatprep.subr.mxu0 0.0
    %2875 = vmatpush1.xpose.msra.mxu0 0.0
    %2876 = vmatprep.mubr.f32.mxu0 0.0
    %2877 = vmatmul.mubr.f32.gmra.mrb[0].mxu0 %v2808
    %v2878 = vpop.f32.mrb[0].mxu0
    %v2879 = vadd.f32 %v495, %v2878
    %v2880 = vpop.f32.mrb[0].mxu0
    %2881 = vdwg.mxu0
    %v2882 = vsel %vm573, %v2879, -inf
    %2883 = vmax.xlane.f32.xlu0 %v2882
    %v2884 = vpop.xlane.xlu0 %2883
    %v2885 = vsub.f32 %v2879, %v2884
    %v2886 = vmul.f32 %v2885, 1.442695
    %v2887 = vpow.pop %v2886
    %v2888 = vsel %vm573, %v2887, 0.0
    %2889 = vadd.xlane.f32.xlu0 %v2888
    %v2890 = vpop.xlane.xlu0 %2889
    %v2891 = vrcp.pop %v2890
    %v2892 = vmul.f32 %v2887, %v2891
    %2893 = vrot.lane.b32.xlu0 %v2470, 64
    %v2894 = vpop.permute.xlu0 %2893
    %v2897 = vsel %vm573, %v2892, 0
    %2899 = vmatprep.subr.mxu0 0.0
    %2900 = vmatpush1.msra.mxu0 %v2894
    %2901 = vmatprep.subr.mxu0 0.0
    %2902 = vmatpush1.msra.mxu0 0.0
    %2903 = vmatprep.subr.mxu0 0.0
    %2904 = vmatpush1.msra.mxu0 0.0
    %2905 = vmatprep.subr.mxu0 0.0
    %2906 = vmatpush1.msra.mxu0 0.0
    %2907 = vmatprep.subr.mxu0 0.0
    %2908 = vmatpush1.msra.mxu0 0.0
    %2909 = vmatprep.subr.mxu0 0.0
    %2910 = vmatpush1.msra.mxu0 0.0
    %2911 = vmatprep.subr.mxu0 0.0
    %2912 = vmatpush1.msra.mxu0 0.0
    %2913 = vmatprep.subr.mxu0 0.0
    %2914 = vmatpush1.msra.mxu0 0.0
    %2915 = vmatprep.subr.mxu0 0.0
    %2916 = vmatpush1.msra.mxu0 0.0
    %2917 = vmatprep.subr.mxu0 0.0
    %2918 = vmatpush1.msra.mxu0 0.0
    %2919 = vmatprep.subr.mxu0 0.0
    %2920 = vmatpush1.msra.mxu0 0.0
    %2921 = vmatprep.subr.mxu0 0.0
    %2922 = vmatpush1.msra.mxu0 0.0
    %2923 = vmatprep.subr.mxu0 0.0
    %2924 = vmatpush1.msra.mxu0 0.0
    %2925 = vmatprep.subr.mxu0 0.0
    %2926 = vmatpush1.msra.mxu0 0.0
    %2927 = vmatprep.subr.mxu0 0.0
    %2928 = vmatpush1.msra.mxu0 0.0
    %2929 = vmatprep.subr.mxu0 0.0
    %2930 = vmatpush1.msra.mxu0 0.0
    %2931 = vmatprep.subr.mxu0 0.0
    %2932 = vmatpush1.msra.mxu0 0.0
    %2933 = vmatprep.subr.mxu0 0.0
    %2934 = vmatpush1.msra.mxu0 0.0
    %2935 = vmatprep.subr.mxu0 0.0
    %2936 = vmatpush1.msra.mxu0 0.0
    %2937 = vmatprep.subr.mxu0 0.0
    %2938 = vmatpush1.msra.mxu0 0.0
    %2939 = vmatprep.subr.mxu0 0.0
    %2940 = vmatpush1.msra.mxu0 0.0
    %2941 = vmatprep.subr.mxu0 0.0
    %2942 = vmatpush1.msra.mxu0 0.0
    %2943 = vmatprep.subr.mxu0 0.0
    %2944 = vmatpush1.msra.mxu0 0.0
    %2945 = vmatprep.subr.mxu0 0.0
    %2946 = vmatpush1.msra.mxu0 0.0
    %2947 = vmatprep.subr.mxu0 0.0
    %2948 = vmatpush1.msra.mxu0 0.0
    %2949 = vmatprep.subr.mxu0 0.0
    %2950 = vmatpush1.msra.mxu0 0.0
    %2951 = vmatprep.subr.mxu0 0.0
    %2952 = vmatpush1.msra.mxu0 0.0
    %2953 = vmatprep.subr.mxu0 0.0
    %2954 = vmatpush1.msra.mxu0 0.0
    %2955 = vmatprep.subr.mxu0 0.0
    %2956 = vmatpush1.msra.mxu0 0.0
    %2957 = vmatprep.subr.mxu0 0.0
    %2958 = vmatpush1.msra.mxu0 0.0
    %2959 = vmatprep.subr.mxu0 0.0
    %2960 = vmatpush1.msra.mxu0 0.0
    %2961 = vmatprep.subr.mxu0 0.0
    %2962 = vmatpush1.msra.mxu0 0.0
    %2963 = vmatprep.mubr.f32.mxu0 0.0
    %2964 = vmatmul.mubr.f32.gmra.mrb[0].mxu0 %v2897
    %v2965 = vpop.f32.mrb[0].mxu0
    %v2966 = vadd.f32 0.0, %v2965
    %v2967 = vpop.f32.mrb[0].mxu0
    %2968 = vdwg.mxu0
    %2969 = vrot.lane.b32.xlu0 %v2393, 32
    %v2970 = vpop.permute.xlu0 %2969
    %2971 = vrot.lane.b32.xlu0 %v2395, 32
    %v2972 = vpop.permute.xlu0 %2971
    %v2973 = vsel %vm496, %v2970, 0
    %v2975 = vsel %vm496, %v2972, 0
    %2977 = vmatprep.subr.mxu0 0.0
    %2978 = vmatpush1.xpose.msra.mxu0 %v2975
    %2979 = vmatprep.subr.mxu0 0.0
    %2980 = vmatpush1.xpose.msra.mxu0 0.0
    %2981 = vmatprep.subr.mxu0 0.0
    %2982 = vmatpush1.xpose.msra.mxu0 0.0
    %2983 = vmatprep.subr.mxu0 0.0
    %2984 = vmatpush1.xpose.msra.mxu0 0.0
    %2985 = vmatprep.subr.mxu0 0.0
    %2986 = vmatpush1.xpose.msra.mxu0 0.0
    %2987 = vmatprep.subr.mxu0 0.0
    %2988 = vmatpush1.xpose.msra.mxu0 0.0
    %2989 = vmatprep.subr.mxu0 0.0
    %2990 = vmatpush1.xpose.msra.mxu0 0.0
    %2991 = vmatprep.subr.mxu0 0.0
    %2992 = vmatpush1.xpose.msra.mxu0 0.0
    %2993 = vmatprep.subr.mxu0 0.0
    %2994 = vmatpush1.xpose.msra.mxu0 0.0
    %2995 = vmatprep.subr.mxu0 0.0
    %2996 = vmatpush1.xpose.msra.mxu0 0.0
    %2997 = vmatprep.subr.mxu0 0.0
    %2998 = vmatpush1.xpose.msra.mxu0 0.0
    %2999 = vmatprep.subr.mxu0 0.0
    %3000 = vmatpush1.xpose.msra.mxu0 0.0
    %3001 = vmatprep.subr.mxu0 0.0
    %3002 = vmatpush1.xpose.msra.mxu0 0.0
    %3003 = vmatprep.subr.mxu0 0.0
    %3004 = vmatpush1.xpose.msra.mxu0 0.0
    %3005 = vmatprep.subr.mxu0 0.0
    %3006 = vmatpush1.xpose.msra.mxu0 0.0
    %3007 = vmatprep.subr.mxu0 0.0
    %3008 = vmatpush1.xpose.msra.mxu0 0.0
    %3009 = vmatprep.subr.mxu0 0.0
    %3010 = vmatpush1.xpose.msra.mxu0 0.0
    %3011 = vmatprep.subr.mxu0 0.0
    %3012 = vmatpush1.xpose.msra.mxu0 0.0
    %3013 = vmatprep.subr.mxu0 0.0
    %3014 = vmatpush1.xpose.msra.mxu0 0.0
    %3015 = vmatprep.subr.mxu0 0.0
    %3016 = vmatpush1.xpose.msra.mxu0 0.0
    %3017 = vmatprep.subr.mxu0 0.0
    %3018 = vmatpush1.xpose.msra.mxu0 0.0
    %3019 = vmatprep.subr.mxu0 0.0
    %3020 = vmatpush1.xpose.msra.mxu0 0.0
    %3021 = vmatprep.subr.mxu0 0.0
    %3022 = vmatpush1.xpose.msra.mxu0 0.0
    %3023 = vmatprep.subr.mxu0 0.0
    %3024 = vmatpush1.xpose.msra.mxu0 0.0
    %3025 = vmatprep.subr.mxu0 0.0
    %3026 = vmatpush1.xpose.msra.mxu0 0.0
    %3027 = vmatprep.subr.mxu0 0.0
    %3028 = vmatpush1.xpose.msra.mxu0 0.0
    %3029 = vmatprep.subr.mxu0 0.0
    %3030 = vmatpush1.xpose.msra.mxu0 0.0
    %3031 = vmatprep.subr.mxu0 0.0
    %3032 = vmatpush1.xpose.msra.mxu0 0.0
    %3033 = vmatprep.subr.mxu0 0.0
    %3034 = vmatpush1.xpose.msra.mxu0 0.0
    %3035 = vmatprep.subr.mxu0 0.0
    %3036 = vmatpush1.xpose.msra.mxu0 0.0
    %3037 = vmatprep.subr.mxu0 0.0
    %3038 = vmatpush1.xpose.msra.mxu0 0.0
    %3039 = vmatprep.subr.mxu0 0.0
    %3040 = vmatpush1.xpose.msra.mxu0 0.0
    %3041 = vmatprep.mubr.f32.mxu0 0.0
    %3042 = vmatmul.mubr.f32.gmra.mrb[0].mxu0 %v2973
    %v3043 = vpop.f32.mrb[0].mxu0
    %v3044 = vadd.f32 %v495, %v3043
    %v3045 = vpop.f32.mrb[0].mxu0
    %3046 = vdwg.mxu0
    %v3047 = vsel %vm573, %v3044, -inf
    %3048 = vmax.xlane.f32.xlu0 %v3047
    %v3049 = vpop.xlane.xlu0 %3048
    %v3050 = vsub.f32 %v3044, %v3049
    %v3051 = vmul.f32 %v3050, 1.442695
    %v3052 = vpow.pop %v3051
    %v3053 = vsel %vm573, %v3052, 0.0
    %3054 = vadd.xlane.f32.xlu0 %v3053
    %v3055 = vpop.xlane.xlu0 %3054
    %v3056 = vrcp.pop %v3055
    %v3057 = vmul.f32 %v3052, %v3056
    %3058 = vrot.lane.b32.xlu0 %v2470, 32
    %v3059 = vpop.permute.xlu0 %3058
    %v3062 = vsel %vm573, %v3057, 0
    %3064 = vmatprep.subr.mxu0 0.0
    %3065 = vmatpush1.msra.mxu0 %v3059
    %3066 = vmatprep.subr.mxu0 0.0
    %3067 = vmatpush1.msra.mxu0 0.0
    %3068 = vmatprep.subr.mxu0 0.0
    %3069 = vmatpush1.msra.mxu0 0.0
    %3070 = vmatprep.subr.mxu0 0.0
    %3071 = vmatpush1.msra.mxu0 0.0
    %3072 = vmatprep.subr.mxu0 0.0
    %3073 = vmatpush1.msra.mxu0 0.0
    %3074 = vmatprep.subr.mxu0 0.0
    %3075 = vmatpush1.msra.mxu0 0.0
    %3076 = vmatprep.subr.mxu0 0.0
    %3077 = vmatpush1.msra.mxu0 0.0
    %3078 = vmatprep.subr.mxu0 0.0
    %3079 = vmatpush1.msra.mxu0 0.0
    %3080 = vmatprep.subr.mxu0 0.0
    %3081 = vmatpush1.msra.mxu0 0.0
    %3082 = vmatprep.subr.mxu0 0.0
    %3083 = vmatpush1.msra.mxu0 0.0
    %3084 = vmatprep.subr.mxu0 0.0
    %3085 = vmatpush1.msra.mxu0 0.0
    %3086 = vmatprep.subr.mxu0 0.0
    %3087 = vmatpush1.msra.mxu0 0.0
    %3088 = vmatprep.subr.mxu0 0.0
    %3089 = vmatpush1.msra.mxu0 0.0
    %3090 = vmatprep.subr.mxu0 0.0
    %3091 = vmatpush1.msra.mxu0 0.0
    %3092 = vmatprep.subr.mxu0 0.0
    %3093 = vmatpush1.msra.mxu0 0.0
    %3094 = vmatprep.subr.mxu0 0.0
    %3095 = vmatpush1.msra.mxu0 0.0
    %3096 = vmatprep.subr.mxu0 0.0
    %3097 = vmatpush1.msra.mxu0 0.0
    %3098 = vmatprep.subr.mxu0 0.0
    %3099 = vmatpush1.msra.mxu0 0.0
    %3100 = vmatprep.subr.mxu0 0.0
    %3101 = vmatpush1.msra.mxu0 0.0
    %3102 = vmatprep.subr.mxu0 0.0
    %3103 = vmatpush1.msra.mxu0 0.0
    %3104 = vmatprep.subr.mxu0 0.0
    %3105 = vmatpush1.msra.mxu0 0.0
    %3106 = vmatprep.subr.mxu0 0.0
    %3107 = vmatpush1.msra.mxu0 0.0
    %3108 = vmatprep.subr.mxu0 0.0
    %3109 = vmatpush1.msra.mxu0 0.0
    %3110 = vmatprep.subr.mxu0 0.0
    %3111 = vmatpush1.msra.mxu0 0.0
    %3112 = vmatprep.subr.mxu0 0.0
    %3113 = vmatpush1.msra.mxu0 0.0
    %3114 = vmatprep.subr.mxu0 0.0
    %3115 = vmatpush1.msra.mxu0 0.0
    %3116 = vmatprep.subr.mxu0 0.0
    %3117 = vmatpush1.msra.mxu0 0.0
    %3118 = vmatprep.subr.mxu0 0.0
    %3119 = vmatpush1.msra.mxu0 0.0
    %3120 = vmatprep.subr.mxu0 0.0
    %3121 = vmatpush1.msra.mxu0 0.0
    %3122 = vmatprep.subr.mxu0 0.0
    %3123 = vmatpush1.msra.mxu0 0.0
    %3124 = vmatprep.subr.mxu0 0.0
    %3125 = vmatpush1.msra.mxu0 0.0
    %3126 = vmatprep.subr.mxu0 0.0
    %3127 = vmatpush1.msra.mxu0 0.0
    %3128 = vmatprep.mubr.f32.mxu0 0.0
    %3129 = vmatmul.mubr.f32.gmra.mrb[0].mxu0 %v3062
    %v3130 = vpop.f32.mrb[0].mxu0
    %v3131 = vadd.f32 0.0, %v3130
    %v3132 = vpop.f32.mrb[0].mxu0
    %3133 = vdwg.mxu0
    %3135 = vrot.lane.b32.xlu0 %v2801, 32
    %v3136 = vpop.permute.xlu0 %3135
    %3139 = vrot.lane.b32.xlu0 %v2966, 64
    %v3140 = vpop.permute.xlu0 %3139
    %3143 = vrot.lane.b32.xlu0 %v3131, 96
    %v3144 = vpop.permute.xlu0 %3143
    %v3146 = vsel %vm496, %v2635, %v3136
    %v3147 = vsel %vm1167, %v3146, %v3140
    %v3148 = vsel %vm1169, %v3147, %v3144
    %v3150 = vsel %vm496, %v2399, 0
    %v3153 = vsel %vm496, %v2401, 0
    %3155 = vmatprep.subr.mxu0 0.0
    %3156 = vmatpush1.xpose.msra.mxu0 %v3153
    %3157 = vmatprep.subr.mxu0 0.0
    %3158 = vmatpush1.xpose.msra.mxu0 0.0
    %3159 = vmatprep.subr.mxu0 0.0
    %3160 = vmatpush1.xpose.msra.mxu0 0.0
    %3161 = vmatprep.subr.mxu0 0.0
    %3162 = vmatpush1.xpose.msra.mxu0 0.0
    %3163 = vmatprep.subr.mxu0 0.0
    %3164 = vmatpush1.xpose.msra.mxu0 0.0
    %3165 = vmatprep.subr.mxu0 0.0
    %3166 = vmatpush1.xpose.msra.mxu0 0.0
    %3167 = vmatprep.subr.mxu0 0.0
    %3168 = vmatpush1.xpose.msra.mxu0 0.0
    %3169 = vmatprep.subr.mxu0 0.0
    %3170 = vmatpush1.xpose.msra.mxu0 0.0
    %3171 = vmatprep.subr.mxu0 0.0
    %3172 = vmatpush1.xpose.msra.mxu0 0.0
    %3173 = vmatprep.subr.mxu0 0.0
    %3174 = vmatpush1.xpose.msra.mxu0 0.0
    %3175 = vmatprep.subr.mxu0 0.0
    %3176 = vmatpush1.xpose.msra.mxu0 0.0
    %3177 = vmatprep.subr.mxu0 0.0
    %3178 = vmatpush1.xpose.msra.mxu0 0.0
    %3179 = vmatprep.subr.mxu0 0.0
    %3180 = vmatpush1.xpose.msra.mxu0 0.0
    %3181 = vmatprep.subr.mxu0 0.0
    %3182 = vmatpush1.xpose.msra.mxu0 0.0
    %3183 = vmatprep.subr.mxu0 0.0
    %3184 = vmatpush1.xpose.msra.mxu0 0.0
    %3185 = vmatprep.subr.mxu0 0.0
    %3186 = vmatpush1.xpose.msra.mxu0 0.0
    %3187 = vmatprep.subr.mxu0 0.0
    %3188 = vmatpush1.xpose.msra.mxu0 0.0
    %3189 = vmatprep.subr.mxu0 0.0
    %3190 = vmatpush1.xpose.msra.mxu0 0.0
    %3191 = vmatprep.subr.mxu0 0.0
    %3192 = vmatpush1.xpose.msra.mxu0 0.0
    %3193 = vmatprep.subr.mxu0 0.0
    %3194 = vmatpush1.xpose.msra.mxu0 0.0
    %3195 = vmatprep.subr.mxu0 0.0
    %3196 = vmatpush1.xpose.msra.mxu0 0.0
    %3197 = vmatprep.subr.mxu0 0.0
    %3198 = vmatpush1.xpose.msra.mxu0 0.0
    %3199 = vmatprep.subr.mxu0 0.0
    %3200 = vmatpush1.xpose.msra.mxu0 0.0
    %3201 = vmatprep.subr.mxu0 0.0
    %3202 = vmatpush1.xpose.msra.mxu0 0.0
    %3203 = vmatprep.subr.mxu0 0.0
    %3204 = vmatpush1.xpose.msra.mxu0 0.0
    %3205 = vmatprep.subr.mxu0 0.0
    %3206 = vmatpush1.xpose.msra.mxu0 0.0
    %3207 = vmatprep.subr.mxu0 0.0
    %3208 = vmatpush1.xpose.msra.mxu0 0.0
    %3209 = vmatprep.subr.mxu0 0.0
    %3210 = vmatpush1.xpose.msra.mxu0 0.0
    %3211 = vmatprep.subr.mxu0 0.0
    %3212 = vmatpush1.xpose.msra.mxu0 0.0
    %3213 = vmatprep.subr.mxu0 0.0
    %3214 = vmatpush1.xpose.msra.mxu0 0.0
    %3215 = vmatprep.subr.mxu0 0.0
    %3216 = vmatpush1.xpose.msra.mxu0 0.0
    %3217 = vmatprep.subr.mxu0 0.0
    %3218 = vmatpush1.xpose.msra.mxu0 0.0
    %3219 = vmatprep.mubr.f32.mxu0 0.0
    %3220 = vmatmul.mubr.f32.gmra.mrb[0].mxu0 %v3150
    %v3221 = vpop.f32.mrb[0].mxu0
    %v3222 = vadd.f32 %v1174, %v3221
    %v3223 = vpop.f32.mrb[0].mxu0
    %3224 = vdwg.mxu0
    %v3225 = vsel %vm573, %v3222, -inf
    %3226 = vmax.xlane.f32.xlu0 %v3225
    %v3227 = vpop.xlane.xlu0 %3226
    %v3228 = vsub.f32 %v3222, %v3227
    %v3229 = vmul.f32 %v3228, 1.442695
    %v3230 = vpow.pop %v3229
    %v3231 = vsel %vm573, %v3230, 0.0
    %3232 = vadd.xlane.f32.xlu0 %v3231
    %v3233 = vpop.xlane.xlu0 %3232
    %v3234 = vrcp.pop %v3233
    %v3235 = vmul.f32 %v3230, %v3234
    %v3237 = vsel %vm573, %v3235, 0
    %3239 = vmatprep.subr.mxu0 0.0
    %3240 = vmatpush1.msra.mxu0 %v2475
    %3241 = vmatprep.subr.mxu0 0.0
    %3242 = vmatpush1.msra.mxu0 0.0
    %3243 = vmatprep.subr.mxu0 0.0
    %3244 = vmatpush1.msra.mxu0 0.0
    %3245 = vmatprep.subr.mxu0 0.0
    %3246 = vmatpush1.msra.mxu0 0.0
    %3247 = vmatprep.subr.mxu0 0.0
    %3248 = vmatpush1.msra.mxu0 0.0
    %3249 = vmatprep.subr.mxu0 0.0
    %3250 = vmatpush1.msra.mxu0 0.0
    %3251 = vmatprep.subr.mxu0 0.0
    %3252 = vmatpush1.msra.mxu0 0.0
    %3253 = vmatprep.subr.mxu0 0.0
    %3254 = vmatpush1.msra.mxu0 0.0
    %3255 = vmatprep.subr.mxu0 0.0
    %3256 = vmatpush1.msra.mxu0 0.0
    %3257 = vmatprep.subr.mxu0 0.0
    %3258 = vmatpush1.msra.mxu0 0.0
    %3259 = vmatprep.subr.mxu0 0.0
    %3260 = vmatpush1.msra.mxu0 0.0
    %3261 = vmatprep.subr.mxu0 0.0
    %3262 = vmatpush1.msra.mxu0 0.0
    %3263 = vmatprep.subr.mxu0 0.0
    %3264 = vmatpush1.msra.mxu0 0.0
    %3265 = vmatprep.subr.mxu0 0.0
    %3266 = vmatpush1.msra.mxu0 0.0
    %3267 = vmatprep.subr.mxu0 0.0
    %3268 = vmatpush1.msra.mxu0 0.0
    %3269 = vmatprep.subr.mxu0 0.0
    %3270 = vmatpush1.msra.mxu0 0.0
    %3271 = vmatprep.subr.mxu0 0.0
    %3272 = vmatpush1.msra.mxu0 0.0
    %3273 = vmatprep.subr.mxu0 0.0
    %3274 = vmatpush1.msra.mxu0 0.0
    %3275 = vmatprep.subr.mxu0 0.0
    %3276 = vmatpush1.msra.mxu0 0.0
    %3277 = vmatprep.subr.mxu0 0.0
    %3278 = vmatpush1.msra.mxu0 0.0
    %3279 = vmatprep.subr.mxu0 0.0
    %3280 = vmatpush1.msra.mxu0 0.0
    %3281 = vmatprep.subr.mxu0 0.0
    %3282 = vmatpush1.msra.mxu0 0.0
    %3283 = vmatprep.subr.mxu0 0.0
    %3284 = vmatpush1.msra.mxu0 0.0
    %3285 = vmatprep.subr.mxu0 0.0
    %3286 = vmatpush1.msra.mxu0 0.0
    %3287 = vmatprep.subr.mxu0 0.0
    %3288 = vmatpush1.msra.mxu0 0.0
    %3289 = vmatprep.subr.mxu0 0.0
    %3290 = vmatpush1.msra.mxu0 0.0
    %3291 = vmatprep.subr.mxu0 0.0
    %3292 = vmatpush1.msra.mxu0 0.0
    %3293 = vmatprep.subr.mxu0 0.0
    %3294 = vmatpush1.msra.mxu0 0.0
    %3295 = vmatprep.subr.mxu0 0.0
    %3296 = vmatpush1.msra.mxu0 0.0
    %3297 = vmatprep.subr.mxu0 0.0
    %3298 = vmatpush1.msra.mxu0 0.0
    %3299 = vmatprep.subr.mxu0 0.0
    %3300 = vmatpush1.msra.mxu0 0.0
    %3301 = vmatprep.subr.mxu0 0.0
    %3302 = vmatpush1.msra.mxu0 0.0
    %3303 = vmatprep.mubr.f32.mxu0 0.0
    %3304 = vmatmul.mubr.f32.gmra.mrb[0].mxu0 %v3237
    %v3305 = vpop.f32.mrb[0].mxu0
    %v3306 = vadd.f32 0.0, %v3305
    %v3307 = vpop.f32.mrb[0].mxu0
    %3308 = vdwg.mxu0
    %3309 = vrot.lane.b32.xlu0 %v2399, 96
    %v3310 = vpop.permute.xlu0 %3309
    %3311 = vrot.lane.b32.xlu0 %v2401, 96
    %v3312 = vpop.permute.xlu0 %3311
    %v3313 = vsel %vm496, %v3310, 0
    %v3315 = vsel %vm496, %v3312, 0
    %3317 = vmatprep.subr.mxu0 0.0
    %3318 = vmatpush1.xpose.msra.mxu0 %v3315
    %3319 = vmatprep.subr.mxu0 0.0
    %3320 = vmatpush1.xpose.msra.mxu0 0.0
    %3321 = vmatprep.subr.mxu0 0.0
    %3322 = vmatpush1.xpose.msra.mxu0 0.0
    %3323 = vmatprep.subr.mxu0 0.0
    %3324 = vmatpush1.xpose.msra.mxu0 0.0
    %3325 = vmatprep.subr.mxu0 0.0
    %3326 = vmatpush1.xpose.msra.mxu0 0.0
    %3327 = vmatprep.subr.mxu0 0.0
    %3328 = vmatpush1.xpose.msra.mxu0 0.0
    %3329 = vmatprep.subr.mxu0 0.0
    %3330 = vmatpush1.xpose.msra.mxu0 0.0
    %3331 = vmatprep.subr.mxu0 0.0
    %3332 = vmatpush1.xpose.msra.mxu0 0.0
    %3333 = vmatprep.subr.mxu0 0.0
    %3334 = vmatpush1.xpose.msra.mxu0 0.0
    %3335 = vmatprep.subr.mxu0 0.0
    %3336 = vmatpush1.xpose.msra.mxu0 0.0
    %3337 = vmatprep.subr.mxu0 0.0
    %3338 = vmatpush1.xpose.msra.mxu0 0.0
    %3339 = vmatprep.subr.mxu0 0.0
    %3340 = vmatpush1.xpose.msra.mxu0 0.0
    %3341 = vmatprep.subr.mxu0 0.0
    %3342 = vmatpush1.xpose.msra.mxu0 0.0
    %3343 = vmatprep.subr.mxu0 0.0
    %3344 = vmatpush1.xpose.msra.mxu0 0.0
    %3345 = vmatprep.subr.mxu0 0.0
    %3346 = vmatpush1.xpose.msra.mxu0 0.0
    %3347 = vmatprep.subr.mxu0 0.0
    %3348 = vmatpush1.xpose.msra.mxu0 0.0
    %3349 = vmatprep.subr.mxu0 0.0
    %3350 = vmatpush1.xpose.msra.mxu0 0.0
    %3351 = vmatprep.subr.mxu0 0.0
    %3352 = vmatpush1.xpose.msra.mxu0 0.0
    %3353 = vmatprep.subr.mxu0 0.0
    %3354 = vmatpush1.xpose.msra.mxu0 0.0
    %3355 = vmatprep.subr.mxu0 0.0
    %3356 = vmatpush1.xpose.msra.mxu0 0.0
    %3357 = vmatprep.subr.mxu0 0.0
    %3358 = vmatpush1.xpose.msra.mxu0 0.0
    %3359 = vmatprep.subr.mxu0 0.0
    %3360 = vmatpush1.xpose.msra.mxu0 0.0
    %3361 = vmatprep.subr.mxu0 0.0
    %3362 = vmatpush1.xpose.msra.mxu0 0.0
    %3363 = vmatprep.subr.mxu0 0.0
    %3364 = vmatpush1.xpose.msra.mxu0 0.0
    %3365 = vmatprep.subr.mxu0 0.0
    %3366 = vmatpush1.xpose.msra.mxu0 0.0
    %3367 = vmatprep.subr.mxu0 0.0
    %3368 = vmatpush1.xpose.msra.mxu0 0.0
    %3369 = vmatprep.subr.mxu0 0.0
    %3370 = vmatpush1.xpose.msra.mxu0 0.0
    %3371 = vmatprep.subr.mxu0 0.0
    %3372 = vmatpush1.xpose.msra.mxu0 0.0
    %3373 = vmatprep.subr.mxu0 0.0
    %3374 = vmatpush1.xpose.msra.mxu0 0.0
    %3375 = vmatprep.subr.mxu0 0.0
    %3376 = vmatpush1.xpose.msra.mxu0 0.0
    %3377 = vmatprep.subr.mxu0 0.0
    %3378 = vmatpush1.xpose.msra.mxu0 0.0
    %3379 = vmatprep.subr.mxu0 0.0
    %3380 = vmatpush1.xpose.msra.mxu0 0.0
    %3381 = vmatprep.mubr.f32.mxu0 0.0
    %3382 = vmatmul.mubr.f32.gmra.mrb[0].mxu0 %v3313
    %v3383 = vpop.f32.mrb[0].mxu0
    %v3384 = vadd.f32 %v1174, %v3383
    %v3385 = vpop.f32.mrb[0].mxu0
    %3386 = vdwg.mxu0
    %v3387 = vsel %vm573, %v3384, -inf
    %3388 = vmax.xlane.f32.xlu0 %v3387
    %v3389 = vpop.xlane.xlu0 %3388
    %v3390 = vsub.f32 %v3384, %v3389
    %v3391 = vmul.f32 %v3390, 1.442695
    %v3392 = vpow.pop %v3391
    %v3393 = vsel %vm573, %v3392, 0.0
    %3394 = vadd.xlane.f32.xlu0 %v3393
    %v3395 = vpop.xlane.xlu0 %3394
    %v3396 = vrcp.pop %v3395
    %v3397 = vmul.f32 %v3392, %v3396
    %3399 = vrot.lane.b32.xlu0 %v2475, 96
    %v3400 = vpop.permute.xlu0 %3399
    %v3403 = vsel %vm573, %v3397, 0
    %3405 = vmatprep.subr.mxu0 0.0
    %3406 = vmatpush1.msra.mxu0 %v3400
    %3407 = vmatprep.subr.mxu0 0.0
    %3408 = vmatpush1.msra.mxu0 0.0
    %3409 = vmatprep.subr.mxu0 0.0
    %3410 = vmatpush1.msra.mxu0 0.0
    %3411 = vmatprep.subr.mxu0 0.0
    %3412 = vmatpush1.msra.mxu0 0.0
    %3413 = vmatprep.subr.mxu0 0.0
    %3414 = vmatpush1.msra.mxu0 0.0
    %3415 = vmatprep.subr.mxu0 0.0
    %3416 = vmatpush1.msra.mxu0 0.0
    %3417 = vmatprep.subr.mxu0 0.0
    %3418 = vmatpush1.msra.mxu0 0.0
    %3419 = vmatprep.subr.mxu0 0.0
    %3420 = vmatpush1.msra.mxu0 0.0
    %3421 = vmatprep.subr.mxu0 0.0
    %3422 = vmatpush1.msra.mxu0 0.0
    %3423 = vmatprep.subr.mxu0 0.0
    %3424 = vmatpush1.msra.mxu0 0.0
    %3425 = vmatprep.subr.mxu0 0.0
    %3426 = vmatpush1.msra.mxu0 0.0
    %3427 = vmatprep.subr.mxu0 0.0
    %3428 = vmatpush1.msra.mxu0 0.0
    %3429 = vmatprep.subr.mxu0 0.0
    %3430 = vmatpush1.msra.mxu0 0.0
    %3431 = vmatprep.subr.mxu0 0.0
    %3432 = vmatpush1.msra.mxu0 0.0
    %3433 = vmatprep.subr.mxu0 0.0
    %3434 = vmatpush1.msra.mxu0 0.0
    %3435 = vmatprep.subr.mxu0 0.0
    %3436 = vmatpush1.msra.mxu0 0.0
    %3437 = vmatprep.subr.mxu0 0.0
    %3438 = vmatpush1.msra.mxu0 0.0
    %3439 = vmatprep.subr.mxu0 0.0
    %3440 = vmatpush1.msra.mxu0 0.0
    %3441 = vmatprep.subr.mxu0 0.0
    %3442 = vmatpush1.msra.mxu0 0.0
    %3443 = vmatprep.subr.mxu0 0.0
    %3444 = vmatpush1.msra.mxu0 0.0
    %3445 = vmatprep.subr.mxu0 0.0
    %3446 = vmatpush1.msra.mxu0 0.0
    %3447 = vmatprep.subr.mxu0 0.0
    %3448 = vmatpush1.msra.mxu0 0.0
    %3449 = vmatprep.subr.mxu0 0.0
    %3450 = vmatpush1.msra.mxu0 0.0
    %3451 = vmatprep.subr.mxu0 0.0
    %3452 = vmatpush1.msra.mxu0 0.0
    %3453 = vmatprep.subr.mxu0 0.0
    %3454 = vmatpush1.msra.mxu0 0.0
    %3455 = vmatprep.subr.mxu0 0.0
    %3456 = vmatpush1.msra.mxu0 0.0
    %3457 = vmatprep.subr.mxu0 0.0
    %3458 = vmatpush1.msra.mxu0 0.0
    %3459 = vmatprep.subr.mxu0 0.0
    %3460 = vmatpush1.msra.mxu0 0.0
    %3461 = vmatprep.subr.mxu0 0.0
    %3462 = vmatpush1.msra.mxu0 0.0
    %3463 = vmatprep.subr.mxu0 0.0
    %3464 = vmatpush1.msra.mxu0 0.0
    %3465 = vmatprep.subr.mxu0 0.0
    %3466 = vmatpush1.msra.mxu0 0.0
    %3467 = vmatprep.subr.mxu0 0.0
    %3468 = vmatpush1.msra.mxu0 0.0
    %3469 = vmatprep.mubr.f32.mxu0 0.0
    %3470 = vmatmul.mubr.f32.gmra.mrb[0].mxu0 %v3403
    %v3471 = vpop.f32.mrb[0].mxu0
    %v3472 = vadd.f32 0.0, %v3471
    %v3473 = vpop.f32.mrb[0].mxu0
    %3474 = vdwg.mxu0
    %3475 = vrot.lane.b32.xlu0 %v2399, 64
    %v3476 = vpop.permute.xlu0 %3475
    %3477 = vrot.lane.b32.xlu0 %v2401, 64
    %v3478 = vpop.permute.xlu0 %3477
    %v3479 = vsel %vm496, %v3476, 0
    %v3481 = vsel %vm496, %v3478, 0
    %3483 = vmatprep.subr.mxu0 0.0
    %3484 = vmatpush1.xpose.msra.mxu0 %v3481
    %3485 = vmatprep.subr.mxu0 0.0
    %3486 = vmatpush1.xpose.msra.mxu0 0.0
    %3487 = vmatprep.subr.mxu0 0.0
    %3488 = vmatpush1.xpose.msra.mxu0 0.0
    %3489 = vmatprep.subr.mxu0 0.0
    %3490 = vmatpush1.xpose.msra.mxu0 0.0
    %3491 = vmatprep.subr.mxu0 0.0
    %3492 = vmatpush1.xpose.msra.mxu0 0.0
    %3493 = vmatprep.subr.mxu0 0.0
    %3494 = vmatpush1.xpose.msra.mxu0 0.0
    %3495 = vmatprep.subr.mxu0 0.0
    %3496 = vmatpush1.xpose.msra.mxu0 0.0
    %3497 = vmatprep.subr.mxu0 0.0
    %3498 = vmatpush1.xpose.msra.mxu0 0.0
    %3499 = vmatprep.subr.mxu0 0.0
    %3500 = vmatpush1.xpose.msra.mxu0 0.0
    %3501 = vmatprep.subr.mxu0 0.0
    %3502 = vmatpush1.xpose.msra.mxu0 0.0
    %3503 = vmatprep.subr.mxu0 0.0
    %3504 = vmatpush1.xpose.msra.mxu0 0.0
    %3505 = vmatprep.subr.mxu0 0.0
    %3506 = vmatpush1.xpose.msra.mxu0 0.0
    %3507 = vmatprep.subr.mxu0 0.0
    %3508 = vmatpush1.xpose.msra.mxu0 0.0
    %3509 = vmatprep.subr.mxu0 0.0
    %3510 = vmatpush1.xpose.msra.mxu0 0.0
    %3511 = vmatprep.subr.mxu0 0.0
    %3512 = vmatpush1.xpose.msra.mxu0 0.0
    %3513 = vmatprep.subr.mxu0 0.0
    %3514 = vmatpush1.xpose.msra.mxu0 0.0
    %3515 = vmatprep.subr.mxu0 0.0
    %3516 = vmatpush1.xpose.msra.mxu0 0.0
    %3517 = vmatprep.subr.mxu0 0.0
    %3518 = vmatpush1.xpose.msra.mxu0 0.0
    %3519 = vmatprep.subr.mxu0 0.0
    %3520 = vmatpush1.xpose.msra.mxu0 0.0
    %3521 = vmatprep.subr.mxu0 0.0
    %3522 = vmatpush1.xpose.msra.mxu0 0.0
    %3523 = vmatprep.subr.mxu0 0.0
    %3524 = vmatpush1.xpose.msra.mxu0 0.0
    %3525 = vmatprep.subr.mxu0 0.0
    %3526 = vmatpush1.xpose.msra.mxu0 0.0
    %3527 = vmatprep.subr.mxu0 0.0
    %3528 = vmatpush1.xpose.msra.mxu0 0.0
    %3529 = vmatprep.subr.mxu0 0.0
    %3530 = vmatpush1.xpose.msra.mxu0 0.0
    %3531 = vmatprep.subr.mxu0 0.0
    %3532 = vmatpush1.xpose.msra.mxu0 0.0
    %3533 = vmatprep.subr.mxu0 0.0
    %3534 = vmatpush1.xpose.msra.mxu0 0.0
    %3535 = vmatprep.subr.mxu0 0.0
    %3536 = vmatpush1.xpose.msra.mxu0 0.0
    %3537 = vmatprep.subr.mxu0 0.0
    %3538 = vmatpush1.xpose.msra.mxu0 0.0
    %3539 = vmatprep.subr.mxu0 0.0
    %3540 = vmatpush1.xpose.msra.mxu0 0.0
    %3541 = vmatprep.subr.mxu0 0.0
    %3542 = vmatpush1.xpose.msra.mxu0 0.0
    %3543 = vmatprep.subr.mxu0 0.0
    %3544 = vmatpush1.xpose.msra.mxu0 0.0
    %3545 = vmatprep.subr.mxu0 0.0
    %3546 = vmatpush1.xpose.msra.mxu0 0.0
    %3547 = vmatprep.mubr.f32.mxu0 0.0
    %3548 = vmatmul.mubr.f32.gmra.mrb[0].mxu0 %v3479
    %v3549 = vpop.f32.mrb[0].mxu0
    %v3550 = vadd.f32 %v1174, %v3549
    %v3551 = vpop.f32.mrb[0].mxu0
    %3552 = vdwg.mxu0
    %v3553 = vsel %vm573, %v3550, -inf
    %3554 = vmax.xlane.f32.xlu0 %v3553
    %v3555 = vpop.xlane.xlu0 %3554
    %v3556 = vsub.f32 %v3550, %v3555
    %v3557 = vmul.f32 %v3556, 1.442695
    %v3558 = vpow.pop %v3557
    %v3559 = vsel %vm573, %v3558, 0.0
    %3560 = vadd.xlane.f32.xlu0 %v3559
    %v3561 = vpop.xlane.xlu0 %3560
    %v3562 = vrcp.pop %v3561
    %v3563 = vmul.f32 %v3558, %v3562
    %3564 = vrot.lane.b32.xlu0 %v2475, 64
    %v3565 = vpop.permute.xlu0 %3564
    %v3568 = vsel %vm573, %v3563, 0
    %3570 = vmatprep.subr.mxu0 0.0
    %3571 = vmatpush1.msra.mxu0 %v3565
    %3572 = vmatprep.subr.mxu0 0.0
    %3573 = vmatpush1.msra.mxu0 0.0
    %3574 = vmatprep.subr.mxu0 0.0
    %3575 = vmatpush1.msra.mxu0 0.0
    %3576 = vmatprep.subr.mxu0 0.0
    %3577 = vmatpush1.msra.mxu0 0.0
    %3578 = vmatprep.subr.mxu0 0.0
    %3579 = vmatpush1.msra.mxu0 0.0
    %3580 = vmatprep.subr.mxu0 0.0
    %3581 = vmatpush1.msra.mxu0 0.0
    %3582 = vmatprep.subr.mxu0 0.0
    %3583 = vmatpush1.msra.mxu0 0.0
    %3584 = vmatprep.subr.mxu0 0.0
    %3585 = vmatpush1.msra.mxu0 0.0
    %3586 = vmatprep.subr.mxu0 0.0
    %3587 = vmatpush1.msra.mxu0 0.0
    %3588 = vmatprep.subr.mxu0 0.0
    %3589 = vmatpush1.msra.mxu0 0.0
    %3590 = vmatprep.subr.mxu0 0.0
    %3591 = vmatpush1.msra.mxu0 0.0
    %3592 = vmatprep.subr.mxu0 0.0
    %3593 = vmatpush1.msra.mxu0 0.0
    %3594 = vmatprep.subr.mxu0 0.0
    %3595 = vmatpush1.msra.mxu0 0.0
    %3596 = vmatprep.subr.mxu0 0.0
    %3597 = vmatpush1.msra.mxu0 0.0
    %3598 = vmatprep.subr.mxu0 0.0
    %3599 = vmatpush1.msra.mxu0 0.0
    %3600 = vmatprep.subr.mxu0 0.0
    %3601 = vmatpush1.msra.mxu0 0.0
    %3602 = vmatprep.subr.mxu0 0.0
    %3603 = vmatpush1.msra.mxu0 0.0
    %3604 = vmatprep.subr.mxu0 0.0
    %3605 = vmatpush1.msra.mxu0 0.0
    %3606 = vmatprep.subr.mxu0 0.0
    %3607 = vmatpush1.msra.mxu0 0.0
    %3608 = vmatprep.subr.mxu0 0.0
    %3609 = vmatpush1.msra.mxu0 0.0
    %3610 = vmatprep.subr.mxu0 0.0
    %3611 = vmatpush1.msra.mxu0 0.0
    %3612 = vmatprep.subr.mxu0 0.0
    %3613 = vmatpush1.msra.mxu0 0.0
    %3614 = vmatprep.subr.mxu0 0.0
    %3615 = vmatpush1.msra.mxu0 0.0
    %3616 = vmatprep.subr.mxu0 0.0
    %3617 = vmatpush1.msra.mxu0 0.0
    %3618 = vmatprep.subr.mxu0 0.0
    %3619 = vmatpush1.msra.mxu0 0.0
    %3620 = vmatprep.subr.mxu0 0.0
    %3621 = vmatpush1.msra.mxu0 0.0
    %3622 = vmatprep.subr.mxu0 0.0
    %3623 = vmatpush1.msra.mxu0 0.0
    %3624 = vmatprep.subr.mxu0 0.0
    %3625 = vmatpush1.msra.mxu0 0.0
    %3626 = vmatprep.subr.mxu0 0.0
    %3627 = vmatpush1.msra.mxu0 0.0
    %3628 = vmatprep.subr.mxu0 0.0
    %3629 = vmatpush1.msra.mxu0 0.0
    %3630 = vmatprep.subr.mxu0 0.0
    %3631 = vmatpush1.msra.mxu0 0.0
    %3632 = vmatprep.subr.mxu0 0.0
    %3633 = vmatpush1.msra.mxu0 0.0
    %3634 = vmatprep.mubr.f32.mxu0 0.0
    %3635 = vmatmul.mubr.f32.gmra.mrb[0].mxu0 %v3568
    %v3636 = vpop.f32.mrb[0].mxu0
    %v3637 = vadd.f32 0.0, %v3636
    %v3638 = vpop.f32.mrb[0].mxu0
    %3639 = vdwg.mxu0
    %3640 = vrot.lane.b32.xlu0 %v2399, 32
    %v3641 = vpop.permute.xlu0 %3640
    %3642 = vrot.lane.b32.xlu0 %v2401, 32
    %v3643 = vpop.permute.xlu0 %3642
    %v3644 = vsel %vm496, %v3641, 0
    %v3646 = vsel %vm496, %v3643, 0
    %3648 = vmatprep.subr.mxu0 0.0
    %3649 = vmatpush1.xpose.msra.mxu0 %v3646
    %3650 = vmatprep.subr.mxu0 0.0
    %3651 = vmatpush1.xpose.msra.mxu0 0.0
    %3652 = vmatprep.subr.mxu0 0.0
    %3653 = vmatpush1.xpose.msra.mxu0 0.0
    %3654 = vmatprep.subr.mxu0 0.0
    %3655 = vmatpush1.xpose.msra.mxu0 0.0
    %3656 = vmatprep.subr.mxu0 0.0
    %3657 = vmatpush1.xpose.msra.mxu0 0.0
    %3658 = vmatprep.subr.mxu0 0.0
    %3659 = vmatpush1.xpose.msra.mxu0 0.0
    %3660 = vmatprep.subr.mxu0 0.0
    %3661 = vmatpush1.xpose.msra.mxu0 0.0
    %3662 = vmatprep.subr.mxu0 0.0
    %3663 = vmatpush1.xpose.msra.mxu0 0.0
    %3664 = vmatprep.subr.mxu0 0.0
    %3665 = vmatpush1.xpose.msra.mxu0 0.0
    %3666 = vmatprep.subr.mxu0 0.0
    %3667 = vmatpush1.xpose.msra.mxu0 0.0
    %3668 = vmatprep.subr.mxu0 0.0
    %3669 = vmatpush1.xpose.msra.mxu0 0.0
    %3670 = vmatprep.subr.mxu0 0.0
    %3671 = vmatpush1.xpose.msra.mxu0 0.0
    %3672 = vmatprep.subr.mxu0 0.0
    %3673 = vmatpush1.xpose.msra.mxu0 0.0
    %3674 = vmatprep.subr.mxu0 0.0
    %3675 = vmatpush1.xpose.msra.mxu0 0.0
    %3676 = vmatprep.subr.mxu0 0.0
    %3677 = vmatpush1.xpose.msra.mxu0 0.0
    %3678 = vmatprep.subr.mxu0 0.0
    %3679 = vmatpush1.xpose.msra.mxu0 0.0
    %3680 = vmatprep.subr.mxu0 0.0
    %3681 = vmatpush1.xpose.msra.mxu0 0.0
    %3682 = vmatprep.subr.mxu0 0.0
    %3683 = vmatpush1.xpose.msra.mxu0 0.0
    %3684 = vmatprep.subr.mxu0 0.0
    %3685 = vmatpush1.xpose.msra.mxu0 0.0
    %3686 = vmatprep.subr.mxu0 0.0
    %3687 = vmatpush1.xpose.msra.mxu0 0.0
    %3688 = vmatprep.subr.mxu0 0.0
    %3689 = vmatpush1.xpose.msra.mxu0 0.0
    %3690 = vmatprep.subr.mxu0 0.0
    %3691 = vmatpush1.xpose.msra.mxu0 0.0
    %3692 = vmatprep.subr.mxu0 0.0
    %3693 = vmatpush1.xpose.msra.mxu0 0.0
    %3694 = vmatprep.subr.mxu0 0.0
    %3695 = vmatpush1.xpose.msra.mxu0 0.0
    %3696 = vmatprep.subr.mxu0 0.0
    %3697 = vmatpush1.xpose.msra.mxu0 0.0
    %3698 = vmatprep.subr.mxu0 0.0
    %3699 = vmatpush1.xpose.msra.mxu0 0.0
    %3700 = vmatprep.subr.mxu0 0.0
    %3701 = vmatpush1.xpose.msra.mxu0 0.0
    %3702 = vmatprep.subr.mxu0 0.0
    %3703 = vmatpush1.xpose.msra.mxu0 0.0
    %3704 = vmatprep.subr.mxu0 0.0
    %3705 = vmatpush1.xpose.msra.mxu0 0.0
    %3706 = vmatprep.subr.mxu0 0.0
    %3707 = vmatpush1.xpose.msra.mxu0 0.0
    %3708 = vmatprep.subr.mxu0 0.0
    %3709 = vmatpush1.xpose.msra.mxu0 0.0
    %3710 = vmatprep.subr.mxu0 0.0
    %3711 = vmatpush1.xpose.msra.mxu0 0.0
    %3712 = vmatprep.mubr.f32.mxu0 0.0
    %3713 = vmatmul.mubr.f32.gmra.mrb[0].mxu0 %v3644
    %v3714 = vpop.f32.mrb[0].mxu0
    %v3715 = vadd.f32 %v1174, %v3714
    %v3716 = vpop.f32.mrb[0].mxu0
    %3717 = vdwg.mxu0
    %v3718 = vsel %vm573, %v3715, -inf
    %3719 = vmax.xlane.f32.xlu0 %v3718
    %v3720 = vpop.xlane.xlu0 %3719
    %v3721 = vsub.f32 %v3715, %v3720
    %v3722 = vmul.f32 %v3721, 1.442695
    %v3723 = vpow.pop %v3722
    %v3724 = vsel %vm573, %v3723, 0.0
    %3725 = vadd.xlane.f32.xlu0 %v3724
    %v3726 = vpop.xlane.xlu0 %3725
    %v3727 = vrcp.pop %v3726
    %v3728 = vmul.f32 %v3723, %v3727
    %3729 = vrot.lane.b32.xlu0 %v2475, 32
    %v3730 = vpop.permute.xlu0 %3729
    %v3733 = vsel %vm573, %v3728, 0
    %3735 = vmatprep.subr.mxu0 0.0
    %3736 = vmatpush1.msra.mxu0 %v3730
    %3737 = vmatprep.subr.mxu0 0.0
    %3738 = vmatpush1.msra.mxu0 0.0
    %3739 = vmatprep.subr.mxu0 0.0
    %3740 = vmatpush1.msra.mxu0 0.0
    %3741 = vmatprep.subr.mxu0 0.0
    %3742 = vmatpush1.msra.mxu0 0.0
    %3743 = vmatprep.subr.mxu0 0.0
    %3744 = vmatpush1.msra.mxu0 0.0
    %3745 = vmatprep.subr.mxu0 0.0
    %3746 = vmatpush1.msra.mxu0 0.0
    %3747 = vmatprep.subr.mxu0 0.0
    %3748 = vmatpush1.msra.mxu0 0.0
    %3749 = vmatprep.subr.mxu0 0.0
    %3750 = vmatpush1.msra.mxu0 0.0
    %3751 = vmatprep.subr.mxu0 0.0
    %3752 = vmatpush1.msra.mxu0 0.0
    %3753 = vmatprep.subr.mxu0 0.0
    %3754 = vmatpush1.msra.mxu0 0.0
    %3755 = vmatprep.subr.mxu0 0.0
    %3756 = vmatpush1.msra.mxu0 0.0
    %3757 = vmatprep.subr.mxu0 0.0
    %3758 = vmatpush1.msra.mxu0 0.0
    %3759 = vmatprep.subr.mxu0 0.0
    %3760 = vmatpush1.msra.mxu0 0.0
    %3761 = vmatprep.subr.mxu0 0.0
    %3762 = vmatpush1.msra.mxu0 0.0
    %3763 = vmatprep.subr.mxu0 0.0
    %3764 = vmatpush1.msra.mxu0 0.0
    %3765 = vmatprep.subr.mxu0 0.0
    %3766 = vmatpush1.msra.mxu0 0.0
    %3767 = vmatprep.subr.mxu0 0.0
    %3768 = vmatpush1.msra.mxu0 0.0
    %3769 = vmatprep.subr.mxu0 0.0
    %3770 = vmatpush1.msra.mxu0 0.0
    %3771 = vmatprep.subr.mxu0 0.0
    %3772 = vmatpush1.msra.mxu0 0.0
    %3773 = vmatprep.subr.mxu0 0.0
    %3774 = vmatpush1.msra.mxu0 0.0
    %3775 = vmatprep.subr.mxu0 0.0
    %3776 = vmatpush1.msra.mxu0 0.0
    %3777 = vmatprep.subr.mxu0 0.0
    %3778 = vmatpush1.msra.mxu0 0.0
    %3779 = vmatprep.subr.mxu0 0.0
    %3780 = vmatpush1.msra.mxu0 0.0
    %3781 = vmatprep.subr.mxu0 0.0
    %3782 = vmatpush1.msra.mxu0 0.0
    %3783 = vmatprep.subr.mxu0 0.0
    %3784 = vmatpush1.msra.mxu0 0.0
    %3785 = vmatprep.subr.mxu0 0.0
    %3786 = vmatpush1.msra.mxu0 0.0
    %3787 = vmatprep.subr.mxu0 0.0
    %3788 = vmatpush1.msra.mxu0 0.0
    %3789 = vmatprep.subr.mxu0 0.0
    %3790 = vmatpush1.msra.mxu0 0.0
    %3791 = vmatprep.subr.mxu0 0.0
    %3792 = vmatpush1.msra.mxu0 0.0
    %3793 = vmatprep.subr.mxu0 0.0
    %3794 = vmatpush1.msra.mxu0 0.0
    %3795 = vmatprep.subr.mxu0 0.0
    %3796 = vmatpush1.msra.mxu0 0.0
    %3797 = vmatprep.subr.mxu0 0.0
    %3798 = vmatpush1.msra.mxu0 0.0
    %3799 = vmatprep.mubr.f32.mxu0 0.0
    %3800 = vmatmul.mubr.f32.gmra.mrb[0].mxu0 %v3733
    %v3801 = vpop.f32.mrb[0].mxu0
    %v3802 = vadd.f32 0.0, %v3801
    %v3803 = vpop.f32.mrb[0].mxu0
    %3804 = vdwg.mxu0
    %3806 = vrot.lane.b32.xlu0 %v3472, 32
    %v3807 = vpop.permute.xlu0 %3806
    %3810 = vrot.lane.b32.xlu0 %v3637, 64
    %v3811 = vpop.permute.xlu0 %3810
    %3814 = vrot.lane.b32.xlu0 %v3802, 96
    %v3815 = vpop.permute.xlu0 %3814
    %v3817 = vsel %vm496, %v3306, %v3807
    %v3818 = vsel %vm1167, %v3817, %v3811
    %v3819 = vsel %vm1169, %v3818, %v3815
    %3820 = vmatprep.subr.mxu0 0.0
    %3821 = vmatpush1.msra.mxu0 %v2190
    %3822 = vmatprep.subr.mxu0 0.0
    %3823 = vmatpush1.msra.mxu0 %v2191
    %3824 = vmatprep.subr.mxu0 0.0
    %3825 = vmatpush1.msra.mxu0 %v2192
    %3826 = vmatprep.subr.mxu0 0.0
    %3827 = vmatpush1.msra.mxu0 %v2193
    %3828 = vmatprep.subr.mxu0 0.0
    %3829 = vmatpush1.msra.mxu0 %v2194
    %3830 = vmatprep.subr.mxu0 0.0
    %3831 = vmatpush1.msra.mxu0 %v2195
    %3832 = vmatprep.subr.mxu0 0.0
    %3833 = vmatpush1.msra.mxu0 %v2196
    %3834 = vmatprep.subr.mxu0 0.0
    %3835 = vmatpush1.msra.mxu0 %v2197
    %3836 = vmatprep.subr.mxu0 0.0
    %3837 = vmatpush1.msra.mxu0 %v2198
    %3838 = vmatprep.subr.mxu0 0.0
    %3839 = vmatpush1.msra.mxu0 %v2199
    %3840 = vmatprep.subr.mxu0 0.0
    %3841 = vmatpush1.msra.mxu0 %v2200
    %3842 = vmatprep.subr.mxu0 0.0
    %3843 = vmatpush1.msra.mxu0 %v2201
    %3844 = vmatprep.subr.mxu0 0.0
    %3845 = vmatpush1.msra.mxu0 %v2202
    %3846 = vmatprep.subr.mxu0 0.0
    %3847 = vmatpush1.msra.mxu0 %v2203
    %3848 = vmatprep.subr.mxu0 0.0
    %3849 = vmatpush1.msra.mxu0 %v2204
    %3850 = vmatprep.subr.mxu0 0.0
    %3851 = vmatpush1.msra.mxu0 %v2205
    %3852 = vmatprep.subr.mxu0 0.0
    %3853 = vmatpush1.msra.mxu0 0.0
    %3854 = vmatprep.subr.mxu0 0.0
    %3855 = vmatpush1.msra.mxu0 0.0
    %3856 = vmatprep.subr.mxu0 0.0
    %3857 = vmatpush1.msra.mxu0 0.0
    %3858 = vmatprep.subr.mxu0 0.0
    %3859 = vmatpush1.msra.mxu0 0.0
    %3860 = vmatprep.subr.mxu0 0.0
    %3861 = vmatpush1.msra.mxu0 0.0
    %3862 = vmatprep.subr.mxu0 0.0
    %3863 = vmatpush1.msra.mxu0 0.0
    %3864 = vmatprep.subr.mxu0 0.0
    %3865 = vmatpush1.msra.mxu0 0.0
    %3866 = vmatprep.subr.mxu0 0.0
    %3867 = vmatpush1.msra.mxu0 0.0
    %3868 = vmatprep.subr.mxu0 0.0
    %3869 = vmatpush1.msra.mxu0 0.0
    %3870 = vmatprep.subr.mxu0 0.0
    %3871 = vmatpush1.msra.mxu0 0.0
    %3872 = vmatprep.subr.mxu0 0.0
    %3873 = vmatpush1.msra.mxu0 0.0
    %3874 = vmatprep.subr.mxu0 0.0
    %3875 = vmatpush1.msra.mxu0 0.0
    %3876 = vmatprep.subr.mxu0 0.0
    %3877 = vmatpush1.msra.mxu0 0.0
    %3878 = vmatprep.subr.mxu0 0.0
    %3879 = vmatpush1.msra.mxu0 0.0
    %3880 = vmatprep.subr.mxu0 0.0
    %3881 = vmatpush1.msra.mxu0 0.0
    %3882 = vmatprep.subr.mxu0 0.0
    %3883 = vmatpush1.msra.mxu0 0.0
    %3884 = vmatprep.mubr.f32.mxu0 0.0
    %3885 = vmatmul.mubr.f32.gmra.mrb[0].mxu0 %v3148
    %v3886 = vpop.f32.mrb[0].mxu0
    %v3887 = vadd.f32 0.0, %v3886
    %v3888 = vpop.f32.mrb[0].mxu0
    %3889 = vmatprep.mubr.f32.mxu0 0.0
    %3890 = vmatmul.mubr.f32.gmra.mrb[0].mxu0 %v3819
    %v3891 = vpop.f32.mrb[0].mxu0
    %v3892 = vadd.f32 0.0, %v3891
    %v3893 = vpop.f32.mrb[0].mxu0
    %3894 = vdwg.mxu0
    %v3895 = vadd.f32 %v2136, %v3887
    %v3896 = vadd.f32 %v2137, %v3892
    %v3897 = vlaneseq
    %v3898 = vshrl.u32 %v3897, 7
    %v3899 = vsub.s32 2, %v3898
    %v3900 = vrot.slane %v2275, %v3899
    %v3901 = vadd.f32 %v3895, %v3900
    %v3902 = vadd.f32 %v3896, %v3900
    %3903 = vadd.xlane.f32.xlu0 %v3901
    %v3904 = vpop.xlane.xlu0 %3903
    %3905 = vadd.xlane.f32.xlu0 %v3902
    %v3906 = vpop.xlane.xlu0 %3905
    %v3907 = vmul.f32 %v3904, %v113
    %v3908 = vmul.f32 %v3906, %v113
    %v3909 = vsub.f32 %v3901, %v3907
    %v3910 = vsub.f32 %v3902, %v3908
    %v3911 = vmul.f32 %v3909, %v3909
    %v3912 = vmul.f32 %v3910, %v3910
    %3913 = vadd.xlane.f32.xlu0 %v3911
    %v3914 = vpop.xlane.xlu0 %3913
    %3915 = vadd.xlane.f32.xlu0 %v3912
    %v3916 = vpop.xlane.xlu0 %3915
    %v3917 = vmul.f32 %v3914, %v113
    %v3918 = vmul.f32 %v3916, %v113
    %v3919 = vadd.f32 %v3917, 1e-05
    %v3920 = vadd.f32 %v3918, 1e-05
    %v3921 = vrsqrt.pop %v3919
    %v3922 = vrsqrt.pop %v3920
    %v3923 = vmul.f32 %v3909, %v3921
    %v3924 = vmul.f32 %v3910, %v3922
    %v3925 = vlaneseq
    %v3926 = vshrl.u32 %v3925, 7
    %v3927 = vsub.s32 3, %v3926
    %v3928 = vrot.slane %v2275, %v3927
    %v3929 = vmul.f32 %v3923, %v3928
    %v3930 = vmul.f32 %v3924, %v3928
    %v3931 = vlaneseq
    %v3932 = vshrl.u32 %v3931, 7
    %v3933 = vsub.s32 4, %v3932
    %v3934 = vrot.slane %v2275, %v3933
    %v3935 = vadd.f32 %v3929, %v3934
    %v3936 = vadd.f32 %v3930, %v3934
    %v3938 = vlaneseq
    %v3939 = vshrl.u32 %v3938, 7
    %v3940 = vsub.s32 0, %v3939
    %v3941 = vrot.slane %v2240, %v3940
    %v3942 = vlaneseq
    %v3943 = vshrl.u32 %v3942, 7
    %v3944 = vsub.s32 1, %v3943
    %v3945 = vrot.slane %v2240, %v3944
    %3948 = vmatprep.subr.mxu0 %v2208
    %3949 = vmatpush1.msra.mxu0 %v2207
    %3950 = vmatprep.subr.mxu0 %v2210
    %3951 = vmatpush1.msra.mxu0 %v2209
    %3952 = vmatprep.subr.mxu0 %v2212
    %3953 = vmatpush1.msra.mxu0 %v2211
    %3954 = vmatprep.subr.mxu0 %v2214
    %3955 = vmatpush1.msra.mxu0 %v2213
    %3956 = vmatprep.subr.mxu0 %v2216
    %3957 = vmatpush1.msra.mxu0 %v2215
    %3958 = vmatprep.subr.mxu0 %v2218
    %3959 = vmatpush1.msra.mxu0 %v2217
    %3960 = vmatprep.subr.mxu0 %v2220
    %3961 = vmatpush1.msra.mxu0 %v2219
    %3962 = vmatprep.subr.mxu0 %v2222
    %3963 = vmatpush1.msra.mxu0 %v2221
    %3964 = vmatprep.subr.mxu0 %v2224
    %3965 = vmatpush1.msra.mxu0 %v2223
    %3966 = vmatprep.subr.mxu0 %v2226
    %3967 = vmatpush1.msra.mxu0 %v2225
    %3968 = vmatprep.subr.mxu0 %v2228
    %3969 = vmatpush1.msra.mxu0 %v2227
    %3970 = vmatprep.subr.mxu0 %v2230
    %3971 = vmatpush1.msra.mxu0 %v2229
    %3972 = vmatprep.subr.mxu0 %v2232
    %3973 = vmatpush1.msra.mxu0 %v2231
    %3974 = vmatprep.subr.mxu0 %v2234
    %3975 = vmatpush1.msra.mxu0 %v2233
    %3976 = vmatprep.subr.mxu0 %v2236
    %3977 = vmatpush1.msra.mxu0 %v2235
    %3978 = vmatprep.subr.mxu0 %v2238
    %3979 = vmatpush1.msra.mxu0 %v2237
    %3980 = vmatprep.subr.mxu0 0.0
    %3981 = vmatpush1.msra.mxu0 0.0
    %3982 = vmatprep.subr.mxu0 0.0
    %3983 = vmatpush1.msra.mxu0 0.0
    %3984 = vmatprep.subr.mxu0 0.0
    %3985 = vmatpush1.msra.mxu0 0.0
    %3986 = vmatprep.subr.mxu0 0.0
    %3987 = vmatpush1.msra.mxu0 0.0
    %3988 = vmatprep.subr.mxu0 0.0
    %3989 = vmatpush1.msra.mxu0 0.0
    %3990 = vmatprep.subr.mxu0 0.0
    %3991 = vmatpush1.msra.mxu0 0.0
    %3992 = vmatprep.subr.mxu0 0.0
    %3993 = vmatpush1.msra.mxu0 0.0
    %3994 = vmatprep.subr.mxu0 0.0
    %3995 = vmatpush1.msra.mxu0 0.0
    %3996 = vmatprep.subr.mxu0 0.0
    %3997 = vmatpush1.msra.mxu0 0.0
    %3998 = vmatprep.subr.mxu0 0.0
    %3999 = vmatpush1.msra.mxu0 0.0
    %4000 = vmatprep.subr.mxu0 0.0
    %4001 = vmatpush1.msra.mxu0 0.0
    %4002 = vmatprep.subr.mxu0 0.0
    %4003 = vmatpush1.msra.mxu0 0.0
    %4004 = vmatprep.subr.mxu0 0.0
    %4005 = vmatpush1.msra.mxu0 0.0
    %4006 = vmatprep.subr.mxu0 0.0
    %4007 = vmatpush1.msra.mxu0 0.0
    %4008 = vmatprep.subr.mxu0 0.0
    %4009 = vmatpush1.msra.mxu0 0.0
    %4010 = vmatprep.subr.mxu0 0.0
    %4011 = vmatpush1.msra.mxu0 0.0
    %4012 = vmatprep.mubr.f32.mxu0 0.0
    %4013 = vmatmul.mubr.f32.gmra.mrb[0].mxu0 %v3935
    %v4014 = vpop.f32.mrb[0].mxu0
    %v4015 = vadd.f32 %v3941, %v4014
    %v4016 = vpop.f32.mrb[0].mxu0
    %v4017 = vadd.f32 %v3945, %v4016
    %4018 = vmatprep.mubr.f32.mxu0 0.0
    %4019 = vmatmul.mubr.f32.gmra.mrb[0].mxu0 %v3936
    %v4020 = vpop.f32.mrb[0].mxu0
    %v4021 = vadd.f32 %v3941, %v4020
    %v4022 = vpop.f32.mrb[0].mxu0
    %v4023 = vadd.f32 %v3945, %v4022
    %4024 = vdwg.mxu0
    %v4025 = vmax.f32 %v4015, 0.0
    %v4026 = vmax.f32 %v4017, 0.0
    %v4027 = vmax.f32 %v4021, 0.0
    %v4028 = vmax.f32 %v4023, 0.0
    %4029 = vmatprep.subr.mxu0 0.0
    %4030 = vmatpush1.msra.mxu0 %v2242
    %4031 = vmatprep.subr.mxu0 0.0
    %4032 = vmatpush1.msra.mxu0 %v2243
    %4033 = vmatprep.subr.mxu0 0.0
    %4034 = vmatpush1.msra.mxu0 %v2244
    %4035 = vmatprep.subr.mxu0 0.0
    %4036 = vmatpush1.msra.mxu0 %v2245
    %4037 = vmatprep.subr.mxu0 0.0
    %4038 = vmatpush1.msra.mxu0 %v2246
    %4039 = vmatprep.subr.mxu0 0.0
    %4040 = vmatpush1.msra.mxu0 %v2247
    %4041 = vmatprep.subr.mxu0 0.0
    %4042 = vmatpush1.msra.mxu0 %v2248
    %4043 = vmatprep.subr.mxu0 0.0
    %4044 = vmatpush1.msra.mxu0 %v2249
    %4045 = vmatprep.subr.mxu0 0.0
    %4046 = vmatpush1.msra.mxu0 %v2250
    %4047 = vmatprep.subr.mxu0 0.0
    %4048 = vmatpush1.msra.mxu0 %v2251
    %4049 = vmatprep.subr.mxu0 0.0
    %4050 = vmatpush1.msra.mxu0 %v2252
    %4051 = vmatprep.subr.mxu0 0.0
    %4052 = vmatpush1.msra.mxu0 %v2253
    %4053 = vmatprep.subr.mxu0 0.0
    %4054 = vmatpush1.msra.mxu0 %v2254
    %4055 = vmatprep.subr.mxu0 0.0
    %4056 = vmatpush1.msra.mxu0 %v2255
    %4057 = vmatprep.subr.mxu0 0.0
    %4058 = vmatpush1.msra.mxu0 %v2256
    %4059 = vmatprep.subr.mxu0 0.0
    %4060 = vmatpush1.msra.mxu0 %v2257
    %4061 = vmatprep.subr.mxu0 0.0
    %4062 = vmatpush1.msra.mxu0 %v2258
    %4063 = vmatprep.subr.mxu0 0.0
    %4064 = vmatpush1.msra.mxu0 %v2259
    %4065 = vmatprep.subr.mxu0 0.0
    %4066 = vmatpush1.msra.mxu0 %v2260
    %4067 = vmatprep.subr.mxu0 0.0
    %4068 = vmatpush1.msra.mxu0 %v2261
    %4069 = vmatprep.subr.mxu0 0.0
    %4070 = vmatpush1.msra.mxu0 %v2262
    %4071 = vmatprep.subr.mxu0 0.0
    %4072 = vmatpush1.msra.mxu0 %v2263
    %4073 = vmatprep.subr.mxu0 0.0
    %4074 = vmatpush1.msra.mxu0 %v2264
    %4075 = vmatprep.subr.mxu0 0.0
    %4076 = vmatpush1.msra.mxu0 %v2265
    %4077 = vmatprep.subr.mxu0 0.0
    %4078 = vmatpush1.msra.mxu0 %v2266
    %4079 = vmatprep.subr.mxu0 0.0
    %4080 = vmatpush1.msra.mxu0 %v2267
    %4081 = vmatprep.subr.mxu0 0.0
    %4082 = vmatpush1.msra.mxu0 %v2268
    %4083 = vmatprep.subr.mxu0 0.0
    %4084 = vmatpush1.msra.mxu0 %v2269
    %4085 = vmatprep.subr.mxu0 0.0
    %4086 = vmatpush1.msra.mxu0 %v2270
    %4087 = vmatprep.subr.mxu0 0.0
    %4088 = vmatpush1.msra.mxu0 %v2271
    %4089 = vmatprep.subr.mxu0 0.0
    %4090 = vmatpush1.msra.mxu0 %v2272
    %4091 = vmatprep.subr.mxu0 0.0
    %4092 = vmatpush1.msra.mxu0 %v2273
    %4093 = vmatprep.mubr.f32.mxu0 %v4026
    %4094 = vmatmul.mubr.f32.gmra.mrb[0].mxu0 %v4025
    %v4095 = vpop.f32.mrb[0].mxu0
    %v4096 = vadd.f32 0.0, %v4095
    %v4097 = vpop.f32.mrb[0].mxu0
    %4098 = vmatprep.mubr.f32.mxu0 %v4028
    %4099 = vmatmul.mubr.f32.gmra.mrb[0].mxu0 %v4027
    %v4100 = vpop.f32.mrb[0].mxu0
    %v4101 = vadd.f32 0.0, %v4100
    %v4102 = vpop.f32.mrb[0].mxu0
    %4103 = vdwg.mxu0
    %v4104 = vadd.f32 %v3901, %v4096
    %v4105 = vadd.f32 %v3902, %v4101
    %v4106 = vlaneseq
    %v4107 = vshrl.u32 %v4106, 7
    %v4108 = vsub.s32 5, %v4107
    %v4109 = vrot.slane %v2275, %v4108
    %v4110 = vadd.f32 %v4104, %v4109
    %v4111 = vadd.f32 %v4105, %v4109
    %v4112 = vld [vmem:[%s4 + $0x2] sm:$0x1]
    %v4113 = vld [vmem:[%s4 + $0x3] sm:$0x1]
    %4114 = vadd.xlane.f32.xlu0 %v4110
    %v4115 = vpop.xlane.xlu0 %4114
    %4116 = vadd.xlane.f32.xlu0 %v4111
    %v4117 = vpop.xlane.xlu0 %4116
    %v4118 = vmul.f32 %v4115, %v113
    %v4119 = vmul.f32 %v4117, %v113
    %v4120 = vsub.f32 %v4110, %v4118
    %v4121 = vsub.f32 %v4111, %v4119
    %v4122 = vmul.f32 %v4120, %v4120
    %v4123 = vmul.f32 %v4121, %v4121
    %4124 = vadd.xlane.f32.xlu0 %v4122
    %v4125 = vpop.xlane.xlu0 %4124
    %4126 = vadd.xlane.f32.xlu0 %v4123
    %v4127 = vpop.xlane.xlu0 %4126
    %v4128 = vmul.f32 %v4125, %v113
    %v4129 = vmul.f32 %v4127, %v113
    %v4130 = vadd.f32 %v4128, 1e-05
    %v4131 = vadd.f32 %v4129, 1e-05
    %v4132 = vrsqrt.pop %v4130
    %v4133 = vrsqrt.pop %v4131
    %v4134 = vmul.f32 %v4120, %v4132
    %v4135 = vmul.f32 %v4121, %v4133
    %v4136 = vlaneseq
    %v4137 = vshrl.u32 %v4136, 7
    %v4138 = vsub.s32 0, %v4137
    %v4139 = vrot.slane %v4112, %v4138
    %v4140 = vmul.f32 %v4134, %v4139
    %v4141 = vmul.f32 %v4135, %v4139
    %v4142 = vlaneseq
    %v4143 = vshrl.u32 %v4142, 7
    %v4144 = vsub.s32 0, %v4143
    %v4145 = vrot.slane %v4113, %v4144
    %v4146 = vadd.f32 %v4140, %v4145
    %v4147 = vadd.f32 %v4141, %v4145
    %v4148 = vld [vmem:[%s12] sm:$0xff]
    %v4149 = vld [vmem:[%s12 + $0x8] sm:$0xff]
    %v4150 = vld [vmem:[%s12 + $0x10] sm:$0xff]
    %v4151 = vld [vmem:[%s12 + $0x18] sm:$0xff]
    %v4152 = vld [vmem:[%s12 + $0x20] sm:$0xff]
    %v4153 = vld [vmem:[%s12 + $0x28] sm:$0xff]
    %v4154 = vld [vmem:[%s12 + $0x30] sm:$0xff]
    %v4155 = vld [vmem:[%s12 + $0x38] sm:$0xff]
    %v4156 = vld [vmem:[%s12 + $0x40] sm:$0xff]
    %v4157 = vld [vmem:[%s12 + $0x48] sm:$0xff]
    %v4158 = vld [vmem:[%s12 + $0x50] sm:$0xff]
    %v4159 = vld [vmem:[%s12 + $0x58] sm:$0xff]
    %v4160 = vld [vmem:[%s12 + $0x60] sm:$0xff]
    %v4161 = vld [vmem:[%s12 + $0x68] sm:$0xff]
    %v4162 = vld [vmem:[%s12 + $0x70] sm:$0xff]
    %v4163 = vld [vmem:[%s12 + $0x78] sm:$0xff]
    %4164 = vmatprep.subr.mxu0 0.0
    %4165 = vmatpush1.msra.mxu0 %v4148
    %4166 = vmatprep.subr.mxu0 0.0
    %4167 = vmatpush1.msra.mxu0 %v4149
    %4168 = vmatprep.subr.mxu0 0.0
    %4169 = vmatpush1.msra.mxu0 %v4150
    %4170 = vmatprep.subr.mxu0 0.0
    %4171 = vmatpush1.msra.mxu0 %v4151
    %4172 = vmatprep.subr.mxu0 0.0
    %4173 = vmatpush1.msra.mxu0 %v4152
    %4174 = vmatprep.subr.mxu0 0.0
    %4175 = vmatpush1.msra.mxu0 %v4153
    %4176 = vmatprep.subr.mxu0 0.0
    %4177 = vmatpush1.msra.mxu0 %v4154
    %4178 = vmatprep.subr.mxu0 0.0
    %4179 = vmatpush1.msra.mxu0 %v4155
    %4180 = vmatprep.subr.mxu0 0.0
    %4181 = vmatpush1.msra.mxu0 %v4156
    %4182 = vmatprep.subr.mxu0 0.0
    %4183 = vmatpush1.msra.mxu0 %v4157
    %4184 = vmatprep.subr.mxu0 0.0
    %4185 = vmatpush1.msra.mxu0 %v4158
    %4186 = vmatprep.subr.mxu0 0.0
    %4187 = vmatpush1.msra.mxu0 %v4159
    %4188 = vmatprep.subr.mxu0 0.0
    %4189 = vmatpush1.msra.mxu0 %v4160
    %4190 = vmatprep.subr.mxu0 0.0
    %4191 = vmatpush1.msra.mxu0 %v4161
    %4192 = vmatprep.subr.mxu0 0.0
    %4193 = vmatpush1.msra.mxu0 %v4162
    %4194 = vmatprep.subr.mxu0 0.0
    %4195 = vmatpush1.msra.mxu0 %v4163
    %4196 = vmatprep.subr.mxu0 0.0
    %4197 = vmatpush1.msra.mxu0 0.0
    %4198 = vmatprep.subr.mxu0 0.0
    %4199 = vmatpush1.msra.mxu0 0.0
    %4200 = vmatprep.subr.mxu0 0.0
    %4201 = vmatpush1.msra.mxu0 0.0
    %4202 = vmatprep.subr.mxu0 0.0
    %4203 = vmatpush1.msra.mxu0 0.0
    %4204 = vmatprep.subr.mxu0 0.0
    %4205 = vmatpush1.msra.mxu0 0.0
    %4206 = vmatprep.subr.mxu0 0.0
    %4207 = vmatpush1.msra.mxu0 0.0
    %4208 = vmatprep.subr.mxu0 0.0
    %4209 = vmatpush1.msra.mxu0 0.0
    %4210 = vmatprep.subr.mxu0 0.0
    %4211 = vmatpush1.msra.mxu0 0.0
    %4212 = vmatprep.subr.mxu0 0.0
    %4213 = vmatpush1.msra.mxu0 0.0
    %4214 = vmatprep.subr.mxu0 0.0
    %4215 = vmatpush1.msra.mxu0 0.0
    %4216 = vmatprep.subr.mxu0 0.0
    %4217 = vmatpush1.msra.mxu0 0.0
    %4218 = vmatprep.subr.mxu0 0.0
    %4219 = vmatpush1.msra.mxu0 0.0
    %4220 = vmatprep.subr.mxu0 0.0
    %4221 = vmatpush1.msra.mxu0 0.0
    %4222 = vmatprep.subr.mxu0 0.0
    %4223 = vmatpush1.msra.mxu0 0.0
    %4224 = vmatprep.subr.mxu0 0.0
    %4225 = vmatpush1.msra.mxu0 0.0
    %4226 = vmatprep.subr.mxu0 0.0
    %4227 = vmatpush1.msra.mxu0 0.0
    %4228 = vmatprep.mubr.f32.mxu0 0.0
    %4229 = vmatmul.mubr.f32.gmra.mrb[0].mxu0 %v4146
    %v4230 = vpop.f32.mrb[0].mxu0
    %v4231 = vadd.f32 0.0, %v4230
    %v4232 = vpop.f32.mrb[0].mxu0
    %4233 = vmatprep.mubr.f32.mxu0 0.0
    %4234 = vmatmul.mubr.f32.gmra.mrb[0].mxu0 %v4147
    %v4235 = vpop.f32.mrb[0].mxu0
    %v4236 = vadd.f32 0.0, %v4235
    %v4237 = vpop.f32.mrb[0].mxu0
    %4238 = vdwg.mxu0
    %4239 = vst [vmem:[%s13] sm:$0xff] %v4231
    %4240 = vst [vmem:[%s13 + $0x8] sm:$0xff] %v4236
    // Predicated region
    $region70: #{encoder_forward_pallas.1} parent=1 // pred_check
      _
    $region71: #{encoder_forward_pallas.1} parent=1 // pred_check_branch
      %4242 = sbr.rel (0) target = $region73
    $region72: #{encoder_forward_pallas.1} parent=1 // pred_region
      _
    $region73: #{encoder_forward_pallas.1} parent=1 // pred_fallthru
      _
    // Predicated region
    $region74: #{encoder_forward_pallas.1} parent=1 // pred_check
      _
    $region75: #{encoder_forward_pallas.1} parent=1 // pred_check_branch
      %4244 = sbr.rel (0) target = $region77
    $region76: #{encoder_forward_pallas.1} parent=1 // pred_region
      _
    $region77: #{encoder_forward_pallas.1} parent=1 // pred_fallthru
      _
    %4245 = vsyncpa [#allocation3], 1
    %4246 = vsyncpa [#allocation5], 1
    %4247 = vsyncpa [#allocation8], 1

</llo_original>
